<compile_context>
chip_gen: v6e
topology: v6e:2x2x1
jax: 0.10.0
libtpu: 0.0.40
codegen_flags: <defaults>
</compile_context>

<pallas_src>
import functools

import jax
import jax.numpy as jnp
from jax.experimental import pallas as pl
from jax.experimental.pallas import tpu as pltpu


def _relu(x):
    return jnp.maximum(x, 0.0)


def _round_up(n, m):
    return ((n + m - 1) // m) * m


def _pick_tile_b(b, max_tile=512):
    """Largest multiple-of-8 tile <= max_tile that keeps >= 2 grid steps.

    Two steps keep the batch axis shardable across v7x's two TensorCores and give
    the pipeliner something to overlap on v5e/v6e; tiny batches fall back to one
    step."""
    if b <= 8:
        return 8
    if b < 16:
        return _round_up(b, 8)
    half = _round_up((b + 1) // 2, 8)
    return min(max_tile, half)


def vae_kernel(x_ref, eps_ref, we0_ref, we1_ref, wmuls_ref, wd0_ref, wd1_ref,
               xrec_ref, zms_ref, *, z_dim):
    # ---- encode: bf16 MXU inputs, f32 accumulation, f32 elementwise ----
    h = _relu(jnp.dot(x_ref[...], we0_ref[...],              # x is already bf16
                      preferred_element_type=jnp.float32))
    h = _relu(jnp.dot(h.astype(jnp.bfloat16), we1_ref[...],
                      preferred_element_type=jnp.float32))

    # Fused [mean | log_std] head: one 64-lane dot instead of two 32-lane dots.
    ms = jnp.dot(h.astype(jnp.bfloat16), wmuls_ref[...],
                 preferred_element_type=jnp.float32)
    mean = ms[:, :z_dim]
    std = jnp.exp(ms[:, z_dim:])                 # torch.exp(log_std)

    # ---- reparameterized sample: Normal(mean, std).rsample() ----
    z = mean + std * eps_ref[...]

    # ---- decode ----
    d = _relu(jnp.dot(z.astype(jnp.bfloat16), wd0_ref[...],
                      preferred_element_type=jnp.float32))
    d = _relu(jnp.dot(d.astype(jnp.bfloat16), wd1_ref[...],
                      preferred_element_type=jnp.float32))
    # torch.sigmoid(x / 10); computed in f32, stored bf16 (halves the widest DMA).
    xrec_ref[...] = jax.nn.sigmoid(d * 0.1).astype(xrec_ref.dtype)

    # ---- lane-dense side outputs: direct lane-offset stores, no concat ----
    # slab layout: [ z | mean | std | zeros ]  -> (tile_b, 4*z_dim) = (tile_b, 128)
    zms_ref[:, 0 * z_dim:1 * z_dim] = z
    zms_ref[:, 1 * z_dim:2 * z_dim] = mean
    zms_ref[:, 2 * z_dim:3 * z_dim] = std
    zms_ref[:, 3 * z_dim:4 * z_dim] = jnp.zeros_like(z)


def vae_forward(x, eps, weights_bf16, *, max_tile_b=512):
    """x: (B, D_in) f32; eps: (B, Z) f32;
    weights_bf16 = (we0, we1, wmuls, wd0, wd1), each (in, out) bf16,
    where wmuls is the fused [w_mu | w_log_std] head.

    Returns (x_recon[bf16], z, mean, std)."""
    B, d_in = x.shape
    z_dim = eps.shape[1]
    we0, we1, wmuls, wd0, wd1 = weights_bf16
    d_out = wd1.shape[1]

    tile_b = _pick_tile_b(B, max_tile_b)
    n_steps = pl.cdiv(B, tile_b)
    Bp = n_steps * tile_b

    # Halve the widest input stream: cast to bf16 up front (first dot would cast
    # anyway, so numerics are unchanged). Pad ragged batches with zero rows
    # (finite everywhere: std = exp(0) = 1, z = 0) and slice back below.
    xb = x.astype(jnp.bfloat16)
    epsb = eps
    if Bp != B:
        xb = jnp.pad(xb, ((0, Bp - B), (0, 0)))
        epsb = jnp.pad(epsb, ((0, Bp - B), (0, 0)))

    batch_map = lambda i: (i, 0)
    const_map = lambda i: (0, 0)
    w_spec = lambda w: pl.BlockSpec(w.shape, const_map)   # VMEM-resident weights

    # Advisory cost hint for the XLA scheduler.
    flops = 2 * Bp * (d_in * we0.shape[1]
                      + we0.shape[1] * we1.shape[1]
                      + we1.shape[1] * wmuls.shape[1]
                      + z_dim * wd0.shape[1]
                      + wd0.shape[1] * d_out)
    bytes_accessed = (Bp * d_in * 2                        # x (bf16)
                      + Bp * z_dim * 4                     # eps (f32)
                      + sum(int(w.size) * 2 for w in weights_bf16)
                      + Bp * d_out * 2                     # x_recon (bf16)
                      + Bp * 4 * z_dim * 4)                # z|mean|std slab (f32)
    cost = pl.CostEstimate(flops=int(flops),
                           transcendentals=int(Bp * (z_dim + d_out)),
                           bytes_accessed=int(bytes_accessed))

    out_shape = (
        jax.ShapeDtypeStruct((Bp, d_out), jnp.bfloat16),      # x_recon
        jax.ShapeDtypeStruct((Bp, 4 * z_dim), jnp.float32),   # packed z|mean|std|0
    )

    xrec, zms = pl.pallas_call(
        functools.partial(vae_kernel, z_dim=z_dim),
        out_shape=out_shape,
        grid_spec=pltpu.PrefetchScalarGridSpec(
            num_scalar_prefetch=0,
            grid=(n_steps,),
            in_specs=[
                pl.BlockSpec((tile_b, d_in), batch_map),      # x (bf16)
                pl.BlockSpec((tile_b, z_dim), batch_map),     # eps (f32)
                w_spec(we0), w_spec(we1), w_spec(wmuls), w_spec(wd0), w_spec(wd1),
            ],
            out_specs=(
                pl.BlockSpec((tile_b, d_out), batch_map),
                pl.BlockSpec((tile_b, 4 * z_dim), batch_map),
            ),
        ),
        compiler_params=pltpu.CompilerParams(
            dimension_semantics=("parallel",)),
        cost_estimate=cost,
    )(xb, epsb, we0, we1, wmuls, wd0, wd1)

    # Split the packed slab and drop batch padding (glue, not hot path).
    xrec = xrec[:B]
    zms = zms[:B]
    z = zms[:, :z_dim]
    mean = zms[:, z_dim:2 * z_dim]
    std = zms[:, 2 * z_dim:3 * z_dim]
    return xrec, z, mean, std


def _init_linear(key, fan_in, fan_out):
    # PyTorch nn.Linear default init: U(-1/sqrt(fan_in), 1/sqrt(fan_in)), shape (out, in).
    bound = 1.0 / jnp.sqrt(jnp.float32(fan_in))
    return jax.random.uniform(key, (fan_out, fan_in), jnp.float32, -bound, bound)


if __name__ == "__main__":
    encoder_layer_sizes = [256, 128, 64]
    bottleneck = 32
    decoder_layer_sizes = [bottleneck, 128, 256]  # after the __init__ insert
    B = 512   # -> tile_b = 256, grid = (2,): big tiles + megacore-shardable

    key = jax.random.PRNGKey(0)
    k_x, k_eps, k_e0, k_e1, k_mu, k_ls, k_d0, k_d1 = jax.random.split(key, 8)

    x = jax.random.normal(k_x, (B, encoder_layer_sizes[0]), jnp.float32)
    eps = jax.random.normal(k_eps, (B, bottleneck), jnp.float32)

    w_e0 = _init_linear(k_e0, encoder_layer_sizes[0], encoder_layer_sizes[1])
    w_e1 = _init_linear(k_e1, encoder_layer_sizes[1], encoder_layer_sizes[2])
    w_mu = _init_linear(k_mu, encoder_layer_sizes[2], bottleneck)
    w_ls = _init_linear(k_ls, encoder_layer_sizes[2], bottleneck)
    w_d0 = _init_linear(k_d0, decoder_layer_sizes[0], decoder_layer_sizes[1])
    w_d1 = _init_linear(k_d1, decoder_layer_sizes[1], decoder_layer_sizes[2])

    # Kernel-side weights: (out, in) -> (in, out), fuse mu|log_std, cast to bf16.
    we0 = w_e0.T.astype(jnp.bfloat16)
    we1 = w_e1.T.astype(jnp.bfloat16)
    wmuls = jnp.concatenate([w_mu.T, w_ls.T], axis=1).astype(jnp.bfloat16)
    wd0 = w_d0.T.astype(jnp.bfloat16)
    wd1 = w_d1.T.astype(jnp.bfloat16)
    weights = (we0, we1, wmuls, wd0, wd1)

    x_recon, z, mean, std = jax.block_until_ready(vae_forward(x, eps, weights))

    # Pure-JAX reference with identical numerics (bf16 MXU inputs, f32 accumulation).
    def _dot(a, w):
        return jnp.dot(a.astype(jnp.bfloat16), w, preferred_element_type=jnp.float32)

    def ref(x):
        h = jnp.maximum(_dot(x, we0), 0.0)
        h = jnp.maximum(_dot(h, we1), 0.0)
        ms = _dot(h, wmuls)
        m = ms[:, :bottleneck]
        s = jnp.exp(ms[:, bottleneck:])
        zz = m + s * eps
        d = jnp.maximum(_dot(zz, wd0), 0.0)
        d = jnp.maximum(_dot(d, wd1), 0.0)
        return jax.nn.sigmoid(d / 10.0), zz, m, s

    r_xr, r_z, r_m, r_s = ref(x)
    # x_recon is emitted in bf16 (intentional: halves the widest DMA stream).
    r_xr_bf16 = r_xr.astype(jnp.bfloat16).astype(jnp.float32)
    assert jnp.allclose(x_recon.astype(jnp.float32), r_xr_bf16, atol=5e-3, rtol=5e-3)
    assert jnp.allclose(z, r_z, atol=2e-3, rtol=2e-3)
    assert jnp.allclose(mean, r_m, atol=2e-3, rtol=2e-3)
    assert jnp.allclose(std, r_s, atol=2e-3, rtol=2e-3)
    print("KERNEL_OK")
</pallas_src>

<mosaic_0001>
module attributes {stable_mosaic.version = 11 : i64} {
  func.func @vae_kernel(%arg0: i32, %arg1: memref<256x256xbf16, #tpu.memory_space<vmem>>, %arg2: memref<256x32xf32, #tpu.memory_space<vmem>>, %arg3: memref<256x128xbf16, #tpu.memory_space<vmem>>, %arg4: memref<128x64xbf16, #tpu.memory_space<vmem>>, %arg5: memref<64x64xbf16, #tpu.memory_space<vmem>>, %arg6: memref<32x128xbf16, #tpu.memory_space<vmem>>, %arg7: memref<128x256xbf16, #tpu.memory_space<vmem>>, %arg8: memref<256x256xbf16, #tpu.memory_space<vmem>>, %arg9: memref<256x128xf32, #tpu.memory_space<vmem>>) attributes {dimension_semantics = [#tpu.dimension_semantics<parallel>], iteration_bounds = array<i64: 2>, scalar_prefetch = 0 : i64, scratch_operands = 0 : i64, tpu.core_type = #tpu.core_type<tc>, window_params = [{transform_indices = @transform_0, window_bounds = array<i64: 256, 256>}, {transform_indices = @transform_1, window_bounds = array<i64: 256, 32>}, {pipeline_mode = #tpu.pipeline_mode<synchronous>, transform_indices = @transform_2, window_bounds = array<i64: 256, 128>}, {pipeline_mode = #tpu.pipeline_mode<synchronous>, transform_indices = @transform_3, window_bounds = array<i64: 128, 64>}, {pipeline_mode = #tpu.pipeline_mode<synchronous>, transform_indices = @transform_4, window_bounds = array<i64: 64, 64>}, {pipeline_mode = #tpu.pipeline_mode<synchronous>, transform_indices = @transform_5, window_bounds = array<i64: 32, 128>}, {pipeline_mode = #tpu.pipeline_mode<synchronous>, transform_indices = @transform_6, window_bounds = array<i64: 128, 256>}, {transform_indices = @transform_7, window_bounds = array<i64: 256, 256>}, {transform_indices = @transform_8, window_bounds = array<i64: 256, 128>}]} {
    %c0 = arith.constant 0 : index
    %c0_0 = arith.constant 0 : index
    %0 = vector.load %arg1[%c0, %c0_0] : memref<256x256xbf16, #tpu.memory_space<vmem>>, vector<256x256xbf16>
    %c0_1 = arith.constant 0 : index
    %c0_2 = arith.constant 0 : index
    %1 = vector.load %arg3[%c0_1, %c0_2] : memref<256x128xbf16, #tpu.memory_space<vmem>>, vector<256x128xbf16>
    %cst = arith.constant dense<0.000000e+00> : vector<256x128xf32>
    %2 = tpu.matmul %0, %1, %cst {dimension_numbers = #tpu.dot_dimension_numbers<[1], [0], [0], [1], [0, 0, 1, 1], [], []>} : vector<256x256xbf16>, vector<256x128xbf16>, vector<256x128xf32> -> vector<256x128xf32>
    %cst_3 = arith.constant 0.000000e+00 : f32
    %3 = vector.broadcast %cst_3 : f32 to vector<256x128xf32>
    %4 = arith.maximumf %2, %3 : vector<256x128xf32>
    %5 = arith.truncf %4 : vector<256x128xf32> to vector<256x128xbf16>
    %c0_4 = arith.constant 0 : index
    %c0_5 = arith.constant 0 : index
    %6 = vector.load %arg4[%c0_4, %c0_5] : memref<128x64xbf16, #tpu.memory_space<vmem>>, vector<128x64xbf16>
    %cst_6 = arith.constant dense<0.000000e+00> : vector<256x64xf32>
    %7 = tpu.matmul %5, %6, %cst_6 {dimension_numbers = #tpu.dot_dimension_numbers<[1], [0], [0], [1], [0, 0, 1, 1], [], []>} : vector<256x128xbf16>, vector<128x64xbf16>, vector<256x64xf32> -> vector<256x64xf32>
    %cst_7 = arith.constant 0.000000e+00 : f32
    %8 = vector.broadcast %cst_7 : f32 to vector<256x64xf32>
    %9 = arith.maximumf %7, %8 : vector<256x64xf32>
    %10 = arith.truncf %9 : vector<256x64xf32> to vector<256x64xbf16>
    %c0_8 = arith.constant 0 : index
    %c0_9 = arith.constant 0 : index
    %11 = vector.load %arg5[%c0_8, %c0_9] : memref<64x64xbf16, #tpu.memory_space<vmem>>, vector<64x64xbf16>
    %cst_10 = arith.constant dense<0.000000e+00> : vector<256x64xf32>
    %12 = tpu.matmul %10, %11, %cst_10 {dimension_numbers = #tpu.dot_dimension_numbers<[1], [0], [0], [1], [0, 0, 1, 1], [], []>} : vector<256x64xbf16>, vector<64x64xbf16>, vector<256x64xf32> -> vector<256x64xf32>
    %13 = vector.extract_strided_slice %12 {offsets = [0, 0], sizes = [256, 32], strides = [1, 1]} : vector<256x64xf32> to vector<256x32xf32>
    %14 = vector.extract_strided_slice %12 {offsets = [0, 32], sizes = [256, 32], strides = [1, 1]} : vector<256x64xf32> to vector<256x32xf32>
    %15 = math.exp %14 : vector<256x32xf32>
    %c0_11 = arith.constant 0 : index
    %c0_12 = arith.constant 0 : index
    %16 = vector.load %arg2[%c0_11, %c0_12] : memref<256x32xf32, #tpu.memory_space<vmem>>, vector<256x32xf32>
    %17 = arith.mulf %15, %16 : vector<256x32xf32>
    %18 = arith.addf %13, %17 : vector<256x32xf32>
    %19 = arith.truncf %18 : vector<256x32xf32> to vector<256x32xbf16>
    %c0_13 = arith.constant 0 : index
    %c0_14 = arith.constant 0 : index
    %20 = vector.load %arg6[%c0_13, %c0_14] : memref<32x128xbf16, #tpu.memory_space<vmem>>, vector<32x128xbf16>
    %cst_15 = arith.constant dense<0.000000e+00> : vector<256x128xf32>
    %21 = tpu.matmul %19, %20, %cst_15 {dimension_numbers = #tpu.dot_dimension_numbers<[1], [0], [0], [1], [0, 0, 1, 1], [], []>} : vector<256x32xbf16>, vector<32x128xbf16>, vector<256x128xf32> -> vector<256x128xf32>
    %cst_16 = arith.constant 0.000000e+00 : f32
    %22 = vector.broadcast %cst_16 : f32 to vector<256x128xf32>
    %23 = arith.maximumf %21, %22 : vector<256x128xf32>
    %24 = arith.truncf %23 : vector<256x128xf32> to vector<256x128xbf16>
    %c0_17 = arith.constant 0 : index
    %c0_18 = arith.constant 0 : index
    %25 = vector.load %arg7[%c0_17, %c0_18] : memref<128x256xbf16, #tpu.memory_space<vmem>>, vector<128x256xbf16>
    %cst_19 = arith.constant dense<0.000000e+00> : vector<256x256xf32>
    %26 = tpu.matmul %24, %25, %cst_19 {dimension_numbers = #tpu.dot_dimension_numbers<[1], [0], [0], [1], [0, 0, 1, 1], [], []>} : vector<256x128xbf16>, vector<128x256xbf16>, vector<256x256xf32> -> vector<256x256xf32>
    %cst_20 = arith.constant 0.000000e+00 : f32
    %27 = vector.broadcast %cst_20 : f32 to vector<256x256xf32>
    %28 = arith.maximumf %26, %27 : vector<256x256xf32>
    %cst_21 = arith.constant 1.000000e-01 : f32
    %29 = vector.broadcast %cst_21 : f32 to vector<256x256xf32>
    %30 = arith.mulf %28, %29 : vector<256x256xf32>
    %31 = arith.negf %30 : vector<256x256xf32>
    %32 = math.exp %31 : vector<256x256xf32>
    %cst_22 = arith.constant 1.000000e+00 : f32
    %33 = vector.broadcast %cst_22 : f32 to vector<256x256xf32>
    %34 = arith.addf %33, %32 : vector<256x256xf32>
    %35 = arith.divf %33, %34 : vector<256x256xf32>
    %36 = arith.truncf %35 : vector<256x256xf32> to vector<256x256xbf16>
    %c0_23 = arith.constant 0 : index
    %c0_24 = arith.constant 0 : index
    %37 = vector.load %arg8[%c0_23, %c0_24] : memref<256x256xbf16, #tpu.memory_space<vmem>>, vector<256x256xbf16>
    tpu.vector_store %arg8[%c0_23, %c0_24], %36 {strides = array<i32>} : memref<256x256xbf16, #tpu.memory_space<vmem>>, vector<256x256xbf16>,
    %c0_25 = arith.constant 0 : index
    %c0_26 = arith.constant 0 : index
    %38 = vector.load %arg9[%c0_25, %c0_26] : memref<256x128xf32, #tpu.memory_space<vmem>>, vector<256x32xf32>
    tpu.vector_store %arg9[%c0_25, %c0_26], %18 {strides = array<i32>} : memref<256x128xf32, #tpu.memory_space<vmem>>, vector<256x32xf32>,
    %c0_27 = arith.constant 0 : index
    %c32 = arith.constant 32 : index
    %39 = vector.load %arg9[%c0_27, %c32] : memref<256x128xf32, #tpu.memory_space<vmem>>, vector<256x32xf32>
    tpu.vector_store %arg9[%c0_27, %c32], %13 {strides = array<i32>} : memref<256x128xf32, #tpu.memory_space<vmem>>, vector<256x32xf32>,
    %c0_28 = arith.constant 0 : index
    %c64 = arith.constant 64 : index
    %40 = vector.load %arg9[%c0_28, %c64] : memref<256x128xf32, #tpu.memory_space<vmem>>, vector<256x32xf32>
    tpu.vector_store %arg9[%c0_28, %c64], %15 {strides = array<i32>} : memref<256x128xf32, #tpu.memory_space<vmem>>, vector<256x32xf32>,
    %cst_29 = arith.constant 0.000000e+00 : f32
    %41 = vector.broadcast %cst_29 : f32 to vector<256x32xf32>
    %c0_30 = arith.constant 0 : index
    %c96 = arith.constant 96 : index
    %42 = vector.load %arg9[%c0_30, %c96] : memref<256x128xf32, #tpu.memory_space<vmem>>, vector<256x32xf32>
    tpu.vector_store %arg9[%c0_30, %c96], %41 {strides = array<i32>} : memref<256x128xf32, #tpu.memory_space<vmem>>, vector<256x32xf32>,
    return
  }
  func.func @transform_0(%arg0: i32) -> (i32, i32) {
    %c0_i32 = arith.constant 0 : i32
    %c0_i32_0 = arith.constant 0 : i32
    return %arg0, %c0_i32 : i32, i32
  }
  func.func @transform_1(%arg0: i32) -> (i32, i32) {
    %c0_i32 = arith.constant 0 : i32
    %c0_i32_0 = arith.constant 0 : i32
    return %arg0, %c0_i32 : i32, i32
  }
  func.func @transform_2(%arg0: i32) -> (i32, i32) {
    %c0_i32 = arith.constant 0 : i32
    %c0_i32_0 = arith.constant 0 : i32
    %c0_i32_1 = arith.constant 0 : i32
    return %c0_i32, %c0_i32_0 : i32, i32
  }
  func.func @transform_3(%arg0: i32) -> (i32, i32) {
    %c0_i32 = arith.constant 0 : i32
    %c0_i32_0 = arith.constant 0 : i32
    %c0_i32_1 = arith.constant 0 : i32
    return %c0_i32, %c0_i32_0 : i32, i32
  }
  func.func @transform_4(%arg0: i32) -> (i32, i32) {
    %c0_i32 = arith.constant 0 : i32
    %c0_i32_0 = arith.constant 0 : i32
    %c0_i32_1 = arith.constant 0 : i32
    return %c0_i32, %c0_i32_0 : i32, i32
  }
  func.func @transform_5(%arg0: i32) -> (i32, i32) {
    %c0_i32 = arith.constant 0 : i32
    %c0_i32_0 = arith.constant 0 : i32
    %c0_i32_1 = arith.constant 0 : i32
    return %c0_i32, %c0_i32_0 : i32, i32
  }
  func.func @transform_6(%arg0: i32) -> (i32, i32) {
    %c0_i32 = arith.constant 0 : i32
    %c0_i32_0 = arith.constant 0 : i32
    %c0_i32_1 = arith.constant 0 : i32
    return %c0_i32, %c0_i32_0 : i32, i32
  }
  func.func @transform_7(%arg0: i32) -> (i32, i32) {
    %c0_i32 = arith.constant 0 : i32
    %c0_i32_0 = arith.constant 0 : i32
    return %arg0, %c0_i32 : i32, i32
  }
  func.func @transform_8(%arg0: i32) -> (i32, i32) {
    %c0_i32 = arith.constant 0 : i32
    %c0_i32_0 = arith.constant 0 : i32
    return %arg0, %c0_i32 : i32, i32
  }
}

</mosaic_0001>

<llo_original>
// kernel: tpu_custom_call.1
$region0: #{tpu_custom_call.1}
  #allocation0 [shape = 'u32[]', space=smem, size = 0x4, offset = 0x4, fixed_abs, tag = 'smem constant byte address 0x4 - core index']
  #allocation1 [shape = 'u32[144,128]{1,0:T(1,128)}', space=vmem, size = 0x12000, scoped, tag = 'internal scratch']
  %s0 = inlined_call_operand.vmem [shape: bf16[512,256], index: 0, kind: input, shape index: {}]
  %s1 = inlined_call_operand.vmem [shape: f32[512,32], index: 1, kind: input, shape index: {}]
  %s2 = inlined_call_operand.vmem [shape: bf16[256,128], index: 2, kind: input, shape index: {}]
  %s3 = inlined_call_operand.vmem [shape: bf16[128,64], index: 3, kind: input, shape index: {}]
  %s4 = inlined_call_operand.vmem [shape: bf16[64,64], index: 4, kind: input, shape index: {}]
  %s5 = inlined_call_operand.vmem [shape: bf16[32,128], index: 5, kind: input, shape index: {}]
  %s6 = inlined_call_operand.hbm [shape: bf16[128,256], index: 6, kind: input, shape index: {}]
  %s7 = inlined_call_operand.hbm [shape: bf16[512,256], index: 7, kind: output, shape index: {0}]
  %s8 = inlined_call_operand.hbm [shape: f32[512,128], index: 8, kind: output, shape index: {1}]
  %9 = xla_tuple %s7, %s8
  %s10 = sld [smem:[#allocation0]]
  $region73: #{tpu_custom_call.1} parent=0
    _
  %s12 = ssub.s32 1, %s10
  %s13 = scalar_select 0, %s12, %s10
  $region1: #{tpu_custom_call.1} parent=0
    #allocation2 [shape = 'u8[65536]{0}', space=vmem, size = 0x10000, scoped, tag = 'input window, operand 6, single buffered']
    #allocation3 [shape = 's32[2]{0}', space=sflag, size = 0x8, scoped, tag = 'scoped memory for tpu_custom_call.1']
    #allocation4 [shape = 's32[2]{0}', space=sflag, size = 0x8, scoped, tag = 'scoped memory for tpu_custom_call.1']
    #allocation5 [shape = 'u8[262144]{0}', space=vmem, size = 0x40000, scoped, tag = 'output window, operand 0']
    #allocation6 [shape = 'u8[262144]{0}', space=vmem, size = 0x40000, scoped, tag = 'output window, operand 1']
    #allocation7 [shape = 's32[2]{0}', space=sflag, size = 0x8, scoped, tag = 'scoped memory for tpu_custom_call.1']
    %14 = vsyncpa [#allocation3], 0
    %15 = vsyncpa [#allocation4], 0
    %s16 = scalar_lea.sflag [#allocation4], 1
    %17 = vsyncpa %s16, 0
    %18 = vsyncpa [#allocation7], 0
    %s19 = scalar_lea.sflag [#allocation7], 1
    %20 = vsyncpa %s19, 0
    loop: start=0, step=1, limit=4
    $region2: #{tpu_custom_call.1} parent=1 // loop_pre_header
      _
    $region3: #{tpu_custom_call.1} parent=1 // loop_header
      %s22 = sphi 0, %s26
      %p23 = scmp.ge.s32.totalorder %s22, 4
      %s32 = sphi 0, %s34
      %s35 = sphi 0, %s32
      %s36 = sphi 0, %s35
      %s52 = sphi 0, %s36
      %s58 = sphi 0, %s60
      %s61 = sphi 0, %s58
      %s62 = sphi 0, %s61
      %s78 = sphi 0, %s62
      %s82 = sphi 0, %s82
      %s84 = sphi 0, %s82
      %s85 = sphi 0, %s84
      %s99 = sphi 0, %s85
      %s103 = sphi 0, %s103
      %s105 = sphi 0, %s103
      %s106 = sphi 0, %s105
      %s120 = sphi 0, %s106
      %s124 = sphi 0, %s124
      %s126 = sphi 0, %s124
      %s127 = sphi 0, %s126
      %s141 = sphi 0, %s127
      %s145 = sphi 0, %s145
      %s147 = sphi 0, %s145
      %s148 = sphi 0, %s147
      %s162 = sphi 0, %s148
      %s166 = sphi 0, %s166
      %s168 = sphi 0, %s166
      %s169 = sphi 0, %s168
      %s183 = sphi 0, %s169
      %s189 = sphi 0, %s191
      %s192 = sphi 0, %s189
      %s193 = sphi 0, %s192
      %s209 = sphi 0, %s193
      %s215 = sphi 0, %s217
      %s218 = sphi 0, %s215
      %s219 = sphi 0, %s218
      %s235 = sphi 0, %s219
    $region4: #{tpu_custom_call.1} parent=1 // loop_header_branch
      %25 = sbr.rel (%p23) target = $region8
    $region5: #{tpu_custom_call.1} parent=1 // loop_body
      %s27 = ssub.s32 %s22, 1
      %s28 = ssub.s32 %s22, 2
      %s29 = sadd.s32 %s22, 1
      %s30 = ssub.s32 %s22, %s29
      %p31 = scmp.eq.s32.totalorder %s30, 0
      %s33 = sadd.s32 %s32, 1
      %s34 = scalar_select %p31, %s32, %s33
      %p37 = pneg %p31
      %p38 = scmp.eq.s32.totalorder %s22, 1
      %p39 = por %p37, %p38
      %p40 = scmp.ne.s32.totalorder %s32, %s35
      %p41 = scmp.eq.s32.totalorder %s22, 0
      %p42 = por %p40, %p41
      %p43 = scmp.ne.s32.totalorder %s32, %s35
      %p44 = scmp.eq.s32.totalorder %s27, 1
      %p45 = por %p43, %p44
      %p46 = scmp.ne.s32.totalorder %s35, %s36
      %p47 = scmp.eq.s32.totalorder %s27, 0
      %p48 = por %p46, %p47
      %p49 = scmp.ne.s32.totalorder %s35, %s36
      %p50 = scmp.eq.s32.totalorder %s28, 1
      %p51 = por %p49, %p50
      %p53 = scmp.ne.s32.totalorder %s36, %s52
      %p54 = scmp.eq.s32.totalorder %s28, 0
      %p55 = por %p53, %p54
      %s56 = ssub.s32 %s22, %s29
      %p57 = scmp.eq.s32.totalorder %s56, 0
      %s59 = sadd.s32 %s58, 1
      %s60 = scalar_select %p57, %s58, %s59
      %p63 = pneg %p57
      %p64 = scmp.eq.s32.totalorder %s22, 1
      %p65 = por %p63, %p64
      %p66 = scmp.ne.s32.totalorder %s58, %s61
      %p67 = scmp.eq.s32.totalorder %s22, 0
      %p68 = por %p66, %p67
      %p69 = scmp.ne.s32.totalorder %s58, %s61
      %p70 = scmp.eq.s32.totalorder %s27, 1
      %p71 = por %p69, %p70
      %p72 = scmp.ne.s32.totalorder %s61, %s62
      %p73 = scmp.eq.s32.totalorder %s27, 0
      %p74 = por %p72, %p73
      %p75 = scmp.ne.s32.totalorder %s61, %s62
      %p76 = scmp.eq.s32.totalorder %s28, 1
      %p77 = por %p75, %p76
      %p79 = scmp.ne.s32.totalorder %s62, %s78
      %p80 = scmp.eq.s32.totalorder %s28, 0
      %p81 = por %p79, %p80
      %s83 = sadd.s32 %s82, 1
      %p86 = scmp.eq.s32.totalorder %s22, 1
      %p87 = scmp.ne.s32.totalorder %s82, %s84
      %p88 = scmp.eq.s32.totalorder %s22, 0
      %p89 = por %p87, %p88
      %p90 = scmp.ne.s32.totalorder %s82, %s84
      %p91 = scmp.eq.s32.totalorder %s27, 1
      %p92 = por %p90, %p91
      %p93 = scmp.ne.s32.totalorder %s84, %s85
      %p94 = scmp.eq.s32.totalorder %s27, 0
      %p95 = por %p93, %p94
      %p96 = scmp.ne.s32.totalorder %s84, %s85
      %p97 = scmp.eq.s32.totalorder %s28, 1
      %p98 = por %p96, %p97
      %p100 = scmp.ne.s32.totalorder %s85, %s99
      %p101 = scmp.eq.s32.totalorder %s28, 0
      %p102 = por %p100, %p101
      %s104 = sadd.s32 %s103, 1
      %p107 = scmp.eq.s32.totalorder %s22, 1
      %p108 = scmp.ne.s32.totalorder %s103, %s105
      %p109 = scmp.eq.s32.totalorder %s22, 0
      %p110 = por %p108, %p109
      %p111 = scmp.ne.s32.totalorder %s103, %s105
      %p112 = scmp.eq.s32.totalorder %s27, 1
      %p113 = por %p111, %p112
      %p114 = scmp.ne.s32.totalorder %s105, %s106
      %p115 = scmp.eq.s32.totalorder %s27, 0
      %p116 = por %p114, %p115
      %p117 = scmp.ne.s32.totalorder %s105, %s106
      %p118 = scmp.eq.s32.totalorder %s28, 1
      %p119 = por %p117, %p118
      %p121 = scmp.ne.s32.totalorder %s106, %s120
      %p122 = scmp.eq.s32.totalorder %s28, 0
      %p123 = por %p121, %p122
      %s125 = sadd.s32 %s124, 1
      %p128 = scmp.eq.s32.totalorder %s22, 1
      %p129 = scmp.ne.s32.totalorder %s124, %s126
      %p130 = scmp.eq.s32.totalorder %s22, 0
      %p131 = por %p129, %p130
      %p132 = scmp.ne.s32.totalorder %s124, %s126
      %p133 = scmp.eq.s32.totalorder %s27, 1
      %p134 = por %p132, %p133
      %p135 = scmp.ne.s32.totalorder %s126, %s127
      %p136 = scmp.eq.s32.totalorder %s27, 0
      %p137 = por %p135, %p136
      %p138 = scmp.ne.s32.totalorder %s126, %s127
      %p139 = scmp.eq.s32.totalorder %s28, 1
      %p140 = por %p138, %p139
      %p142 = scmp.ne.s32.totalorder %s127, %s141
      %p143 = scmp.eq.s32.totalorder %s28, 0
      %p144 = por %p142, %p143
      %s146 = sadd.s32 %s145, 1
      %p149 = scmp.eq.s32.totalorder %s22, 1
      %p150 = scmp.ne.s32.totalorder %s145, %s147
      %p151 = scmp.eq.s32.totalorder %s22, 0
      %p152 = por %p150, %p151
      %p153 = scmp.ne.s32.totalorder %s145, %s147
      %p154 = scmp.eq.s32.totalorder %s27, 1
      %p155 = por %p153, %p154
      %p156 = scmp.ne.s32.totalorder %s147, %s148
      %p157 = scmp.eq.s32.totalorder %s27, 0
      %p158 = por %p156, %p157
      %p159 = scmp.ne.s32.totalorder %s147, %s148
      %p160 = scmp.eq.s32.totalorder %s28, 1
      %p161 = por %p159, %p160
      %p163 = scmp.ne.s32.totalorder %s148, %s162
      %p164 = scmp.eq.s32.totalorder %s28, 0
      %p165 = por %p163, %p164
      %s167 = sadd.s32 %s166, 1
      %p170 = scmp.eq.s32.totalorder %s22, 1
      %p171 = scmp.ne.s32.totalorder %s166, %s168
      %p172 = scmp.eq.s32.totalorder %s22, 0
      %p173 = por %p171, %p172
      %p174 = scmp.ne.s32.totalorder %s166, %s168
      %p175 = scmp.eq.s32.totalorder %s27, 1
      %p176 = por %p174, %p175
      %p177 = scmp.ne.s32.totalorder %s168, %s169
      %p178 = scmp.eq.s32.totalorder %s27, 0
      %p179 = por %p177, %p178
      %p180 = scmp.ne.s32.totalorder %s168, %s169
      %p181 = scmp.eq.s32.totalorder %s28, 1
      %p182 = por %p180, %p181
      %p184 = scmp.ne.s32.totalorder %s169, %s183
      %p185 = scmp.eq.s32.totalorder %s28, 0
      %p186 = por %p184, %p185
      %s187 = ssub.s32 %s22, %s29
      %p188 = scmp.eq.s32.totalorder %s187, 0
      %s190 = sadd.s32 %s189, 1
      %s191 = scalar_select %p188, %s189, %s190
      %p194 = pneg %p188
      %p195 = scmp.eq.s32.totalorder %s22, 1
      %p196 = por %p194, %p195
      %p197 = scmp.ne.s32.totalorder %s189, %s192
      %p198 = scmp.eq.s32.totalorder %s22, 0
      %p199 = por %p197, %p198
      %p200 = scmp.ne.s32.totalorder %s189, %s192
      %p201 = scmp.eq.s32.totalorder %s27, 1
      %p202 = por %p200, %p201
      %p203 = scmp.ne.s32.totalorder %s192, %s193
      %p204 = scmp.eq.s32.totalorder %s27, 0
      %p205 = por %p203, %p204
      %p206 = scmp.ne.s32.totalorder %s192, %s193
      %p207 = scmp.eq.s32.totalorder %s28, 1
      %p208 = por %p206, %p207
      %p210 = scmp.ne.s32.totalorder %s193, %s209
      %p211 = scmp.eq.s32.totalorder %s28, 0
      %p212 = por %p210, %p211
      %s213 = ssub.s32 %s22, %s29
      %p214 = scmp.eq.s32.totalorder %s213, 0
      %s216 = sadd.s32 %s215, 1
      %s217 = scalar_select %p214, %s215, %s216
      %p220 = pneg %p214
      %p221 = scmp.eq.s32.totalorder %s22, 1
      %p222 = por %p220, %p221
      %p223 = scmp.ne.s32.totalorder %s215, %s218
      %p224 = scmp.eq.s32.totalorder %s22, 0
      %p225 = por %p223, %p224
      %p226 = scmp.ne.s32.totalorder %s215, %s218
      %p227 = scmp.eq.s32.totalorder %s27, 1
      %p228 = por %p226, %p227
      %p229 = scmp.ne.s32.totalorder %s218, %s219
      %p230 = scmp.eq.s32.totalorder %s27, 0
      %p231 = por %p229, %p230
      %p232 = scmp.ne.s32.totalorder %s218, %s219
      %p233 = scmp.eq.s32.totalorder %s28, 1
      %p234 = por %p232, %p233
      %p236 = scmp.ne.s32.totalorder %s219, %s235
      %p237 = scmp.eq.s32.totalorder %s28, 0
      %p238 = por %p236, %p237
      %p239 = scmp.le.s32.totalorder 1, %s22
      %p240 = scmp.lt.s32.totalorder %s22, 3
      %p241 = pnand %p239, %p240
      %p242 = pneg %p241
      // Predicated region
      $region9: #{tpu_custom_call.1} parent=5 // pred_check
        _
      $region10: #{tpu_custom_call.1} parent=5 // pred_check_branch
        %244 = sbr.rel (%p241) target = $region12
      $region11: #{tpu_custom_call.1} parent=5 // pred_region
        %s245 = ssub.s32 %s22, 1
        // Predicated region
        $region13: #{tpu_custom_call.1} parent=11 // pred_check
          %p246 = pneg %p95
        $region14: #{tpu_custom_call.1} parent=11 // pred_check_branch
          %248 = sbr.rel (%p246) target = $region16
        $region15: #{tpu_custom_call.1} parent=11 // pred_region
          _
        $region16: #{tpu_custom_call.1} parent=11 // pred_fallthru
          _
        // Predicated region
        $region17: #{tpu_custom_call.1} parent=11 // pred_check
          %p249 = pneg %p116
        $region18: #{tpu_custom_call.1} parent=11 // pred_check_branch
          %251 = sbr.rel (%p249) target = $region20
        $region19: #{tpu_custom_call.1} parent=11 // pred_region
          _
        $region20: #{tpu_custom_call.1} parent=11 // pred_fallthru
          _
        // Predicated region
        $region21: #{tpu_custom_call.1} parent=11 // pred_check
          %p252 = pneg %p137
        $region22: #{tpu_custom_call.1} parent=11 // pred_check_branch
          %254 = sbr.rel (%p252) target = $region24
        $region23: #{tpu_custom_call.1} parent=11 // pred_region
          _
        $region24: #{tpu_custom_call.1} parent=11 // pred_fallthru
          _
        // Predicated region
        $region25: #{tpu_custom_call.1} parent=11 // pred_check
          %p255 = pneg %p158
        $region26: #{tpu_custom_call.1} parent=11 // pred_check_branch
          %257 = sbr.rel (%p255) target = $region28
        $region27: #{tpu_custom_call.1} parent=11 // pred_region
          _
        $region28: #{tpu_custom_call.1} parent=11 // pred_fallthru
          _
        // Predicated region
        $region29: #{tpu_custom_call.1} parent=11 // pred_check
          %p258 = pneg %p179
        $region30: #{tpu_custom_call.1} parent=11 // pred_check_branch
          %260 = sbr.rel (%p258) target = $region32
        $region31: #{tpu_custom_call.1} parent=11 // pred_region
          %s262 = ssub.s32 2048, 2048
          %263 = vsyncadd [#allocation3], %s262
          %s264 = sshll.u32 [#allocation2], 4
          %s265 = int_to_ptr.vmem [resolvable:$true] %s264
          %270 = dma.hbm_to_vmem [thread:$0]  %s6, 2048, %s265, [#allocation3], 128, 128, 8
        $region32: #{tpu_custom_call.1} parent=11 // pred_fallthru
          _
      $region12: #{tpu_custom_call.1} parent=5 // pred_fallthru
        _
      %p271 = scmp.lt.s32.totalorder %s22, 2
      // Predicated region
      $region33: #{tpu_custom_call.1} parent=5 // pred_check
        %p272 = pneg %p271
      $region34: #{tpu_custom_call.1} parent=5 // pred_check_branch
        %274 = sbr.rel (%p272) target = $region36
      $region35: #{tpu_custom_call.1} parent=5 // pred_region
        // Predicated region
        $region37: #{tpu_custom_call.1} parent=35 // pred_check
          %p275 = pneg %p42
        $region38: #{tpu_custom_call.1} parent=35 // pred_check_branch
          %277 = sbr.rel (%p275) target = $region40
        $region39: #{tpu_custom_call.1} parent=35 // pred_region
          %s278 = smul.u32 32, %s22
          %p279 = scmp.lt.s32.totalorder %s278, 63
          %s280 = scalar_select %p279, %s278, 63
          %s281 = smul.addr %s280, 2
          %s282 = smul.addr %s281, 4
          %s283 = scalar_lea.vmem %s0, %s282
          %s284 = smul.u32 32, %s22
        $region40: #{tpu_custom_call.1} parent=35 // pred_fallthru
          _
        // Predicated region
        $region41: #{tpu_custom_call.1} parent=35 // pred_check
          %p285 = pneg %p68
        $region42: #{tpu_custom_call.1} parent=35 // pred_check_branch
          %287 = sbr.rel (%p285) target = $region44
        $region43: #{tpu_custom_call.1} parent=35 // pred_region
          %s288 = smul.u32 32, %s22
          %p289 = scmp.lt.s32.totalorder %s288, 63
          %s290 = scalar_select %p289, %s288, 63
          %s291 = smul.addr %s290, 8
          %s292 = scalar_lea.vmem %s1, %s291
          %s293 = smul.u32 32, %s22
        $region44: #{tpu_custom_call.1} parent=35 // pred_fallthru
          _
      $region36: #{tpu_custom_call.1} parent=5 // pred_fallthru
        _
      %p294 = scmp.le.s32.totalorder 1, %s22
      %p295 = scmp.lt.s32.totalorder %s22, 3
      %p296 = pnand %p294, %p295
      %p297 = pneg %p296
      // Predicated region
      $region45: #{tpu_custom_call.1} parent=5 // pred_check
        _
      $region46: #{tpu_custom_call.1} parent=5 // pred_check_branch
        %299 = sbr.rel (%p296) target = $region48
      $region47: #{tpu_custom_call.1} parent=5 // pred_region
        %s300 = ssub.s32 %s22, 1
        // Predicated region
        $region49: #{tpu_custom_call.1} parent=47 // pred_check
          %p301 = pneg %p179
        $region50: #{tpu_custom_call.1} parent=47 // pred_check_branch
          %303 = sbr.rel (%p301) target = $region52
        $region51: #{tpu_custom_call.1} parent=47 // pred_region
          %304 = dma.done [#allocation3], 2048
        $region52: #{tpu_custom_call.1} parent=47 // pred_fallthru
          _
        %s305 = smul.u32 32, %s27
        %p306 = scmp.lt.s32.totalorder %s305, 63
        %s307 = scalar_select %p306, %s305, 63
        %s308 = smul.addr %s307, 2
        %s309 = smul.addr %s308, 4
        %s310 = scalar_lea.vmem %s0, %s309
        %p311 = pneg %p48
        %p312 = pneg %p45
        %s313 = smul.u32 32, %s27
        %p314 = scmp.lt.s32.totalorder %s313, 63
        %s315 = scalar_select %p314, %s313, 63
        %s316 = smul.addr %s315, 8
        %s317 = scalar_lea.vmem %s1, %s316
        %p318 = pneg %p74
        %p319 = pneg %p71
        %p320 = pneg %p95
        %p321 = pneg %p92
        %p322 = pneg %p116
        %p323 = pneg %p113
        %p324 = pneg %p137
        %p325 = pneg %p134
        %p326 = pneg %p158
        %p327 = pneg %p155
        %p328 = pneg %p179
        %p329 = pneg %p176
        %p330 = pneg %p205
        %p331 = pneg %p202
        %s332 = sand.u32 %s192, 1
        %s333 = scalar_lea.sflag [#allocation4], %s332
        %s334 = sand.u32 %s192, 1
        %s335 = smul.addr %s334, 256
        %s336 = scalar_lea.vmem [#allocation5], %s335
        %p337 = pneg %p231
        %p338 = pneg %p228
        %s339 = sand.u32 %s218, 1
        %s340 = scalar_lea.sflag [#allocation7], %s339
        %s341 = sand.u32 %s218, 1
        %s342 = smul.addr %s341, 256
        %s343 = scalar_lea.vmem [#allocation6], %s342
        %s344 = smul.u32 32, %s27
        %p345 = scmp.lt.s32.totalorder %s344, 63
        %s346 = scalar_select %p345, %s344, 63
        %s347 = smul.addr %s346, 2
        %s348 = smul.addr %s347, 4
        %s349 = scalar_lea.vmem %s0, %s348
        %s350 = smul.u32 32, %s27
        %s351 = smul.u32 32, %s27
        %p352 = scmp.lt.s32.totalorder %s351, 63
        %s353 = scalar_select %p352, %s351, 63
        %s354 = smul.addr %s353, 8
        %s355 = scalar_lea.vmem %s1, %s354
        %s356 = smul.u32 32, %s27
        %s357 = smul.u32 32, %s27
        %s358 = smul.u32 32, %s27
        %v360 = vld [vmem:[%s349] sm:$0xff]
        %v361 = vld [vmem:[%s349 + $0x8] sm:$0xff]
        %v362 = vld [vmem:[%s349 + $0x10] sm:$0xff]
        %v363 = vld [vmem:[%s349 + $0x18] sm:$0xff]
        %v364 = vld [vmem:[%s349 + $0x20] sm:$0xff]
        %v365 = vld [vmem:[%s349 + $0x28] sm:$0xff]
        %v366 = vld [vmem:[%s349 + $0x30] sm:$0xff]
        %v367 = vld [vmem:[%s349 + $0x38] sm:$0xff]
        %v368 = vld [vmem:[%s349 + $0x40] sm:$0xff]
        %v369 = vld [vmem:[%s349 + $0x48] sm:$0xff]
        %v370 = vld [vmem:[%s349 + $0x50] sm:$0xff]
        %v371 = vld [vmem:[%s349 + $0x58] sm:$0xff]
        %v372 = vld [vmem:[%s349 + $0x60] sm:$0xff]
        %v373 = vld [vmem:[%s349 + $0x68] sm:$0xff]
        %v374 = vld [vmem:[%s349 + $0x70] sm:$0xff]
        %v375 = vld [vmem:[%s349 + $0x78] sm:$0xff]
        %v376 = vld [vmem:[%s349 + $0x80] sm:$0xff]
        %v377 = vld [vmem:[%s349 + $0x88] sm:$0xff]
        %v378 = vld [vmem:[%s349 + $0x90] sm:$0xff]
        %v379 = vld [vmem:[%s349 + $0x98] sm:$0xff]
        %v380 = vld [vmem:[%s349 + $0xa0] sm:$0xff]
        %v381 = vld [vmem:[%s349 + $0xa8] sm:$0xff]
        %v382 = vld [vmem:[%s349 + $0xb0] sm:$0xff]
        %v383 = vld [vmem:[%s349 + $0xb8] sm:$0xff]
        %v384 = vld [vmem:[%s349 + $0xc0] sm:$0xff]
        %v385 = vld [vmem:[%s349 + $0xc8] sm:$0xff]
        %v386 = vld [vmem:[%s349 + $0xd0] sm:$0xff]
        %v387 = vld [vmem:[%s349 + $0xd8] sm:$0xff]
        %v388 = vld [vmem:[%s349 + $0xe0] sm:$0xff]
        %v389 = vld [vmem:[%s349 + $0xe8] sm:$0xff]
        %v390 = vld [vmem:[%s349 + $0xf0] sm:$0xff]
        %v391 = vld [vmem:[%s349 + $0xf8] sm:$0xff]
        %v392 = vld [vmem:[%s2] sm:$0xf]
        %v393 = vld [vmem:[%s2 + $0x4] sm:$0xf]
        %v394 = vld [vmem:[%s2 + $0x8] sm:$0xf]
        %v395 = vld [vmem:[%s2 + $0xc] sm:$0xf]
        %v396 = vld [vmem:[%s2 + $0x10] sm:$0xf]
        %v397 = vld [vmem:[%s2 + $0x14] sm:$0xf]
        %v398 = vld [vmem:[%s2 + $0x18] sm:$0xf]
        %v399 = vld [vmem:[%s2 + $0x1c] sm:$0xf]
        %v400 = vld [vmem:[%s2 + $0x20] sm:$0xf]
        %v401 = vld [vmem:[%s2 + $0x24] sm:$0xf]
        %v402 = vld [vmem:[%s2 + $0x28] sm:$0xf]
        %v403 = vld [vmem:[%s2 + $0x2c] sm:$0xf]
        %v404 = vld [vmem:[%s2 + $0x30] sm:$0xf]
        %v405 = vld [vmem:[%s2 + $0x34] sm:$0xf]
        %v406 = vld [vmem:[%s2 + $0x38] sm:$0xf]
        %v407 = vld [vmem:[%s2 + $0x3c] sm:$0xf]
        %v408 = vld [vmem:[%s2 + $0x40] sm:$0xf]
        %v409 = vld [vmem:[%s2 + $0x44] sm:$0xf]
        %v410 = vld [vmem:[%s2 + $0x48] sm:$0xf]
        %v411 = vld [vmem:[%s2 + $0x4c] sm:$0xf]
        %v412 = vld [vmem:[%s2 + $0x50] sm:$0xf]
        %v413 = vld [vmem:[%s2 + $0x54] sm:$0xf]
        %v414 = vld [vmem:[%s2 + $0x58] sm:$0xf]
        %v415 = vld [vmem:[%s2 + $0x5c] sm:$0xf]
        %v416 = vld [vmem:[%s2 + $0x60] sm:$0xf]
        %v417 = vld [vmem:[%s2 + $0x64] sm:$0xf]
        %v418 = vld [vmem:[%s2 + $0x68] sm:$0xf]
        %v419 = vld [vmem:[%s2 + $0x6c] sm:$0xf]
        %v420 = vld [vmem:[%s2 + $0x70] sm:$0xf]
        %v421 = vld [vmem:[%s2 + $0x74] sm:$0xf]
        %v422 = vld [vmem:[%s2 + $0x78] sm:$0xf]
        %v423 = vld [vmem:[%s2 + $0x7c] sm:$0xf]
        %v456 = vunpack.c.l.b16 %v360
        %v457 = vunpack.c.h.b16 %v360
        %v458 = vunpack.c.l.b16 %v361
        %v459 = vunpack.c.h.b16 %v361
        %v460 = vunpack.c.l.b16 %v362
        %v461 = vunpack.c.h.b16 %v362
        %v462 = vunpack.c.l.b16 %v363
        %v463 = vunpack.c.h.b16 %v363
        %v464 = vunpack.c.l.b16 %v364
        %v465 = vunpack.c.h.b16 %v364
        %v466 = vunpack.c.l.b16 %v365
        %v467 = vunpack.c.h.b16 %v365
        %v468 = vunpack.c.l.b16 %v366
        %v469 = vunpack.c.h.b16 %v366
        %v470 = vunpack.c.l.b16 %v367
        %v471 = vunpack.c.h.b16 %v367
        %v472 = vunpack.c.l.b16 %v368
        %v473 = vunpack.c.h.b16 %v368
        %v474 = vunpack.c.l.b16 %v369
        %v475 = vunpack.c.h.b16 %v369
        %v476 = vunpack.c.l.b16 %v370
        %v477 = vunpack.c.h.b16 %v370
        %v478 = vunpack.c.l.b16 %v371
        %v479 = vunpack.c.h.b16 %v371
        %v480 = vunpack.c.l.b16 %v372
        %v481 = vunpack.c.h.b16 %v372
        %v482 = vunpack.c.l.b16 %v373
        %v483 = vunpack.c.h.b16 %v373
        %v484 = vunpack.c.l.b16 %v374
        %v485 = vunpack.c.h.b16 %v374
        %v486 = vunpack.c.l.b16 %v375
        %v487 = vunpack.c.h.b16 %v375
        %v488 = vunpack.c.l.b16 %v376
        %v489 = vunpack.c.h.b16 %v376
        %v490 = vunpack.c.l.b16 %v377
        %v491 = vunpack.c.h.b16 %v377
        %v492 = vunpack.c.l.b16 %v378
        %v493 = vunpack.c.h.b16 %v378
        %v494 = vunpack.c.l.b16 %v379
        %v495 = vunpack.c.h.b16 %v379
        %v496 = vunpack.c.l.b16 %v380
        %v497 = vunpack.c.h.b16 %v380
        %v498 = vunpack.c.l.b16 %v381
        %v499 = vunpack.c.h.b16 %v381
        %v500 = vunpack.c.l.b16 %v382
        %v501 = vunpack.c.h.b16 %v382
        %v502 = vunpack.c.l.b16 %v383
        %v503 = vunpack.c.h.b16 %v383
        %v504 = vunpack.c.l.b16 %v384
        %v505 = vunpack.c.h.b16 %v384
        %v506 = vunpack.c.l.b16 %v385
        %v507 = vunpack.c.h.b16 %v385
        %v508 = vunpack.c.l.b16 %v386
        %v509 = vunpack.c.h.b16 %v386
        %v510 = vunpack.c.l.b16 %v387
        %v511 = vunpack.c.h.b16 %v387
        %v512 = vunpack.c.l.b16 %v388
        %v513 = vunpack.c.h.b16 %v388
        %v514 = vunpack.c.l.b16 %v389
        %v515 = vunpack.c.h.b16 %v389
        %v516 = vunpack.c.l.b16 %v390
        %v517 = vunpack.c.h.b16 %v390
        %v518 = vunpack.c.l.b16 %v391
        %v519 = vunpack.c.h.b16 %v391
        %v520 = vpack.c.b16 %v458, %v456
        %v521 = vpack.c.b16 %v459, %v457
        %v522 = vpack.c.b16 %v462, %v460
        %v523 = vpack.c.b16 %v463, %v461
        %v524 = vpack.c.b16 %v466, %v464
        %v525 = vpack.c.b16 %v467, %v465
        %v526 = vpack.c.b16 %v470, %v468
        %v527 = vpack.c.b16 %v471, %v469
        %v528 = vpack.c.b16 %v474, %v472
        %v529 = vpack.c.b16 %v475, %v473
        %v530 = vpack.c.b16 %v478, %v476
        %v531 = vpack.c.b16 %v479, %v477
        %v532 = vpack.c.b16 %v482, %v480
        %v533 = vpack.c.b16 %v483, %v481
        %v534 = vpack.c.b16 %v486, %v484
        %v535 = vpack.c.b16 %v487, %v485
        %v536 = vpack.c.b16 %v490, %v488
        %v537 = vpack.c.b16 %v491, %v489
        %v538 = vpack.c.b16 %v494, %v492
        %v539 = vpack.c.b16 %v495, %v493
        %v540 = vpack.c.b16 %v498, %v496
        %v541 = vpack.c.b16 %v499, %v497
        %v542 = vpack.c.b16 %v502, %v500
        %v543 = vpack.c.b16 %v503, %v501
        %v544 = vpack.c.b16 %v506, %v504
        %v545 = vpack.c.b16 %v507, %v505
        %v546 = vpack.c.b16 %v510, %v508
        %v547 = vpack.c.b16 %v511, %v509
        %v548 = vpack.c.b16 %v514, %v512
        %v549 = vpack.c.b16 %v515, %v513
        %v550 = vpack.c.b16 %v518, %v516
        %v551 = vpack.c.b16 %v519, %v517
        %v616 = vunpack.c.l.b16 %v392
        %v617 = vunpack.c.l.b16 %v393
        %v618 = vunpack.c.l.b16 %v394
        %v619 = vunpack.c.l.b16 %v395
        %v620 = vunpack.c.l.b16 %v396
        %v621 = vunpack.c.l.b16 %v397
        %v622 = vunpack.c.l.b16 %v398
        %v623 = vunpack.c.l.b16 %v399
        %v624 = vunpack.c.l.b16 %v400
        %v625 = vunpack.c.l.b16 %v401
        %v626 = vunpack.c.l.b16 %v402
        %v627 = vunpack.c.l.b16 %v403
        %v628 = vunpack.c.l.b16 %v404
        %v629 = vunpack.c.l.b16 %v405
        %v630 = vunpack.c.l.b16 %v406
        %v631 = vunpack.c.l.b16 %v407
        %v632 = vunpack.c.l.b16 %v408
        %v633 = vunpack.c.l.b16 %v409
        %v634 = vunpack.c.l.b16 %v410
        %v635 = vunpack.c.l.b16 %v411
        %v636 = vunpack.c.l.b16 %v412
        %v637 = vunpack.c.l.b16 %v413
        %v638 = vunpack.c.l.b16 %v414
        %v639 = vunpack.c.l.b16 %v415
        %v640 = vunpack.c.l.b16 %v416
        %v641 = vunpack.c.l.b16 %v417
        %v642 = vunpack.c.l.b16 %v418
        %v643 = vunpack.c.l.b16 %v419
        %v644 = vunpack.c.l.b16 %v420
        %v645 = vunpack.c.l.b16 %v421
        %v646 = vunpack.c.l.b16 %v422
        %v647 = vunpack.c.l.b16 %v423
        %v648 = vpack.c.b16 %v617, %v616
        %v649 = vpack.c.b16 %v619, %v618
        %v650 = vpack.c.b16 %v621, %v620
        %v651 = vpack.c.b16 %v623, %v622
        %v652 = vpack.c.b16 %v625, %v624
        %v653 = vpack.c.b16 %v627, %v626
        %v654 = vpack.c.b16 %v629, %v628
        %v655 = vpack.c.b16 %v631, %v630
        %v656 = vpack.c.b16 %v633, %v632
        %v657 = vpack.c.b16 %v635, %v634
        %v658 = vpack.c.b16 %v637, %v636
        %v659 = vpack.c.b16 %v639, %v638
        %v660 = vpack.c.b16 %v641, %v640
        %v661 = vpack.c.b16 %v643, %v642
        %v662 = vpack.c.b16 %v645, %v644
        %v663 = vpack.c.b16 %v647, %v646
        %680 = vmatprep.subr.bf16.mxu0 0
        %681 = vmatpush1.bf16.msra.mxu0 %v655
        %682 = vmatprep.subr.bf16.mxu0 0
        %683 = vmatpush1.bf16.msra.mxu0 %v654
        %684 = vmatprep.subr.bf16.mxu0 0
        %685 = vmatpush1.bf16.msra.mxu0 %v653
        %686 = vmatprep.subr.bf16.mxu0 0
        %687 = vmatpush1.bf16.msra.mxu0 %v652
        %688 = vmatprep.subr.bf16.mxu0 0
        %689 = vmatpush1.bf16.msra.mxu0 %v651
        %690 = vmatprep.subr.bf16.mxu0 0
        %691 = vmatpush1.bf16.msra.mxu0 %v650
        %692 = vmatprep.subr.bf16.mxu0 0
        %693 = vmatpush1.bf16.msra.mxu0 %v649
        %694 = vmatprep.subr.bf16.mxu0 0
        %695 = vmatpush1.bf16.msra.mxu0 %v648
        %696 = vmatprep.subr.bf16.mxu0 0
        %697 = vmatpush2.bf16.msra.mxu0 %v663
        %698 = vmatprep.subr.bf16.mxu0 0
        %699 = vmatpush2.bf16.msra.mxu0 %v662
        %700 = vmatprep.subr.bf16.mxu0 0
        %701 = vmatpush2.bf16.msra.mxu0 %v661
        %702 = vmatprep.subr.bf16.mxu0 0
        %703 = vmatpush2.bf16.msra.mxu0 %v660
        %704 = vmatprep.subr.bf16.mxu0 0
        %705 = vmatpush2.bf16.msra.mxu0 %v659
        %706 = vmatprep.subr.bf16.mxu0 0
        %707 = vmatpush2.bf16.msra.mxu0 %v658
        %708 = vmatprep.subr.bf16.mxu0 0
        %709 = vmatpush2.bf16.msra.mxu0 %v657
        %710 = vmatprep.subr.bf16.mxu0 0
        %711 = vmatpush2.bf16.msra.mxu0 %v656
        %712 = vmatprep.mubr.bf16.mxu0 %v521
        %713 = vmatmul.mubr.bf16.gmra.mxu0 %v520
        %v714 = vpop.f32.mrf.mxu0
        %v715 = vadd.f32 0.0, %v714
        %v716 = vpop.f32.mrf.mxu0
        %v717 = vpop.f32.mrf.mxu0
        %v718 = vadd.f32 0.0, %v717
        %v719 = vpop.f32.mrf.mxu0
        %720 = vmatprep.mubr.bf16.mxu0 %v523
        %721 = vmatmul.mubr.bf16.gmra.mxu0 %v522
        %v722 = vpop.f32.mrf.mxu0
        %v723 = vadd.f32 0.0, %v722
        %v724 = vpop.f32.mrf.mxu0
        %v725 = vpop.f32.mrf.mxu0
        %v726 = vadd.f32 0.0, %v725
        %v727 = vpop.f32.mrf.mxu0
        %728 = vmatprep.mubr.bf16.mxu0 %v525
        %729 = vmatmul.mubr.bf16.gmra.mxu0 %v524
        %v730 = vpop.f32.mrf.mxu0
        %v731 = vadd.f32 0.0, %v730
        %v732 = vpop.f32.mrf.mxu0
        %v733 = vpop.f32.mrf.mxu0
        %v734 = vadd.f32 0.0, %v733
        %v735 = vpop.f32.mrf.mxu0
        %736 = vmatprep.mubr.bf16.mxu0 %v527
        %737 = vmatmul.mubr.bf16.gmra.mxu0 %v526
        %v738 = vpop.f32.mrf.mxu0
        %v739 = vadd.f32 0.0, %v738
        %v740 = vpop.f32.mrf.mxu0
        %v741 = vpop.f32.mrf.mxu0
        %v742 = vadd.f32 0.0, %v741
        %v743 = vpop.f32.mrf.mxu0
        %744 = vmatprep.mubr.bf16.mxu0 %v529
        %745 = vmatmul.mubr.bf16.gmra.mxu0 %v528
        %v746 = vpop.f32.mrf.mxu0
        %v747 = vadd.f32 0.0, %v746
        %v748 = vpop.f32.mrf.mxu0
        %v749 = vpop.f32.mrf.mxu0
        %v750 = vadd.f32 0.0, %v749
        %v751 = vpop.f32.mrf.mxu0
        %752 = vmatprep.mubr.bf16.mxu0 %v531
        %753 = vmatmul.mubr.bf16.gmra.mxu0 %v530
        %v754 = vpop.f32.mrf.mxu0
        %v755 = vadd.f32 0.0, %v754
        %v756 = vpop.f32.mrf.mxu0
        %v757 = vpop.f32.mrf.mxu0
        %v758 = vadd.f32 0.0, %v757
        %v759 = vpop.f32.mrf.mxu0
        %760 = vmatprep.mubr.bf16.mxu0 %v533
        %761 = vmatmul.mubr.bf16.gmra.mxu0 %v532
        %v762 = vpop.f32.mrf.mxu0
        %v763 = vadd.f32 0.0, %v762
        %v764 = vpop.f32.mrf.mxu0
        %v765 = vpop.f32.mrf.mxu0
        %v766 = vadd.f32 0.0, %v765
        %v767 = vpop.f32.mrf.mxu0
        %768 = vmatprep.mubr.bf16.mxu0 %v535
        %769 = vmatmul.mubr.bf16.gmra.mxu0 %v534
        %v770 = vpop.f32.mrf.mxu0
        %v771 = vadd.f32 0.0, %v770
        %v772 = vpop.f32.mrf.mxu0
        %v773 = vpop.f32.mrf.mxu0
        %v774 = vadd.f32 0.0, %v773
        %v775 = vpop.f32.mrf.mxu0
        %776 = vmatprep.mubr.bf16.mxu0 %v537
        %777 = vmatmul.mubr.bf16.gmra.mxu0 %v536
        %v778 = vpop.f32.mrf.mxu0
        %v779 = vadd.f32 0.0, %v778
        %v780 = vpop.f32.mrf.mxu0
        %v781 = vpop.f32.mrf.mxu0
        %v782 = vadd.f32 0.0, %v781
        %v783 = vpop.f32.mrf.mxu0
        %784 = vmatprep.mubr.bf16.mxu0 %v539
        %785 = vmatmul.mubr.bf16.gmra.mxu0 %v538
        %v786 = vpop.f32.mrf.mxu0
        %v787 = vadd.f32 0.0, %v786
        %v788 = vpop.f32.mrf.mxu0
        %v789 = vpop.f32.mrf.mxu0
        %v790 = vadd.f32 0.0, %v789
        %v791 = vpop.f32.mrf.mxu0
        %792 = vmatprep.mubr.bf16.mxu0 %v541
        %793 = vmatmul.mubr.bf16.gmra.mxu0 %v540
        %v794 = vpop.f32.mrf.mxu0
        %v795 = vadd.f32 0.0, %v794
        %v796 = vpop.f32.mrf.mxu0
        %v797 = vpop.f32.mrf.mxu0
        %v798 = vadd.f32 0.0, %v797
        %v799 = vpop.f32.mrf.mxu0
        %800 = vmatprep.mubr.bf16.mxu0 %v543
        %801 = vmatmul.mubr.bf16.gmra.mxu0 %v542
        %v802 = vpop.f32.mrf.mxu0
        %v803 = vadd.f32 0.0, %v802
        %v804 = vpop.f32.mrf.mxu0
        %v805 = vpop.f32.mrf.mxu0
        %v806 = vadd.f32 0.0, %v805
        %v807 = vpop.f32.mrf.mxu0
        %808 = vmatprep.mubr.bf16.mxu0 %v545
        %809 = vmatmul.mubr.bf16.gmra.mxu0 %v544
        %v810 = vpop.f32.mrf.mxu0
        %v811 = vadd.f32 0.0, %v810
        %v812 = vpop.f32.mrf.mxu0
        %v813 = vpop.f32.mrf.mxu0
        %v814 = vadd.f32 0.0, %v813
        %v815 = vpop.f32.mrf.mxu0
        %816 = vmatprep.mubr.bf16.mxu0 %v547
        %817 = vmatmul.mubr.bf16.gmra.mxu0 %v546
        %v818 = vpop.f32.mrf.mxu0
        %v819 = vadd.f32 0.0, %v818
        %v820 = vpop.f32.mrf.mxu0
        %v821 = vpop.f32.mrf.mxu0
        %v822 = vadd.f32 0.0, %v821
        %v823 = vpop.f32.mrf.mxu0
        %824 = vmatprep.mubr.bf16.mxu0 %v549
        %825 = vmatmul.mubr.bf16.gmra.mxu0 %v548
        %v826 = vpop.f32.mrf.mxu0
        %v827 = vadd.f32 0.0, %v826
        %v828 = vpop.f32.mrf.mxu0
        %v829 = vpop.f32.mrf.mxu0
        %v830 = vadd.f32 0.0, %v829
        %v831 = vpop.f32.mrf.mxu0
        %832 = vmatprep.mubr.bf16.mxu0 %v551
        %833 = vmatmul.mubr.bf16.gmra.mxu0 %v550
        %v834 = vpop.f32.mrf.mxu0
        %v835 = vadd.f32 0.0, %v834
        %v836 = vpop.f32.mrf.mxu0
        %v837 = vpop.f32.mrf.mxu0
        %v838 = vadd.f32 0.0, %v837
        %v839 = vpop.f32.mrf.mxu0
        %840 = vdwg.mxu0
        %v841 = vmax.f32 %v715, 0.0
        %v842 = vmax.f32 %v718, 0.0
        %v843 = vmax.f32 %v723, 0.0
        %v844 = vmax.f32 %v726, 0.0
        %v845 = vmax.f32 %v731, 0.0
        %v846 = vmax.f32 %v734, 0.0
        %v847 = vmax.f32 %v739, 0.0
        %v848 = vmax.f32 %v742, 0.0
        %v849 = vmax.f32 %v747, 0.0
        %v850 = vmax.f32 %v750, 0.0
        %v851 = vmax.f32 %v755, 0.0
        %v852 = vmax.f32 %v758, 0.0
        %v853 = vmax.f32 %v763, 0.0
        %v854 = vmax.f32 %v766, 0.0
        %v855 = vmax.f32 %v771, 0.0
        %v856 = vmax.f32 %v774, 0.0
        %v857 = vmax.f32 %v779, 0.0
        %v858 = vmax.f32 %v782, 0.0
        %v859 = vmax.f32 %v787, 0.0
        %v860 = vmax.f32 %v790, 0.0
        %v861 = vmax.f32 %v795, 0.0
        %v862 = vmax.f32 %v798, 0.0
        %v863 = vmax.f32 %v803, 0.0
        %v864 = vmax.f32 %v806, 0.0
        %v865 = vmax.f32 %v811, 0.0
        %v866 = vmax.f32 %v814, 0.0
        %v867 = vmax.f32 %v819, 0.0
        %v868 = vmax.f32 %v822, 0.0
        %v869 = vmax.f32 %v827, 0.0
        %v870 = vmax.f32 %v830, 0.0
        %v871 = vmax.f32 %v835, 0.0
        %v872 = vmax.f32 %v838, 0.0
        %v873 = vpack.c.bf16 %v842, %v841
        %v874 = vpack.c.bf16 %v844, %v843
        %v875 = vpack.c.bf16 %v846, %v845
        %v876 = vpack.c.bf16 %v848, %v847
        %v877 = vpack.c.bf16 %v850, %v849
        %v878 = vpack.c.bf16 %v852, %v851
        %v879 = vpack.c.bf16 %v854, %v853
        %v880 = vpack.c.bf16 %v856, %v855
        %v881 = vpack.c.bf16 %v858, %v857
        %v882 = vpack.c.bf16 %v860, %v859
        %v883 = vpack.c.bf16 %v862, %v861
        %v884 = vpack.c.bf16 %v864, %v863
        %v885 = vpack.c.bf16 %v866, %v865
        %v886 = vpack.c.bf16 %v868, %v867
        %v887 = vpack.c.bf16 %v870, %v869
        %v888 = vpack.c.bf16 %v872, %v871
        %v889 = vld [vmem:[%s3] sm:$0xf]
        %v890 = vld [vmem:[%s3 + $0x4] sm:$0xf]
        %v891 = vld [vmem:[%s3 + $0x8] sm:$0xf]
        %v892 = vld [vmem:[%s3 + $0xc] sm:$0xf]
        %v893 = vld [vmem:[%s3 + $0x10] sm:$0xf]
        %v894 = vld [vmem:[%s3 + $0x14] sm:$0xf]
        %v895 = vld [vmem:[%s3 + $0x18] sm:$0xf]
        %v896 = vld [vmem:[%s3 + $0x1c] sm:$0xf]
        %v897 = vld [vmem:[%s3 + $0x20] sm:$0xf]
        %v898 = vld [vmem:[%s3 + $0x24] sm:$0xf]
        %v899 = vld [vmem:[%s3 + $0x28] sm:$0xf]
        %v900 = vld [vmem:[%s3 + $0x2c] sm:$0xf]
        %v901 = vld [vmem:[%s3 + $0x30] sm:$0xf]
        %v902 = vld [vmem:[%s3 + $0x34] sm:$0xf]
        %v903 = vld [vmem:[%s3 + $0x38] sm:$0xf]
        %v904 = vld [vmem:[%s3 + $0x3c] sm:$0xf]
        %v921 = vunpack.c.l.b16 %v889
        %v922 = vunpack.c.l.b16 %v890
        %v923 = vunpack.c.l.b16 %v891
        %v924 = vunpack.c.l.b16 %v892
        %v925 = vunpack.c.l.b16 %v893
        %v926 = vunpack.c.l.b16 %v894
        %v927 = vunpack.c.l.b16 %v895
        %v928 = vunpack.c.l.b16 %v896
        %v929 = vunpack.c.l.b16 %v897
        %v930 = vunpack.c.l.b16 %v898
        %v931 = vunpack.c.l.b16 %v899
        %v932 = vunpack.c.l.b16 %v900
        %v933 = vunpack.c.l.b16 %v901
        %v934 = vunpack.c.l.b16 %v902
        %v935 = vunpack.c.l.b16 %v903
        %v936 = vunpack.c.l.b16 %v904
        %v937 = vpack.c.b16 %v922, %v921
        %v938 = vpack.c.b16 %v924, %v923
        %v939 = vpack.c.b16 %v926, %v925
        %v940 = vpack.c.b16 %v928, %v927
        %v941 = vpack.c.b16 %v930, %v929
        %v942 = vpack.c.b16 %v932, %v931
        %v943 = vpack.c.b16 %v934, %v933
        %v944 = vpack.c.b16 %v936, %v935
        %953 = vmatprep.subr.bf16.mxu0 0
        %954 = vmatpush1.bf16.msra.mxu0 %v944
        %955 = vmatprep.subr.bf16.mxu0 0
        %956 = vmatpush1.bf16.msra.mxu0 %v943
        %957 = vmatprep.subr.bf16.mxu0 0
        %958 = vmatpush1.bf16.msra.mxu0 %v942
        %959 = vmatprep.subr.bf16.mxu0 0
        %960 = vmatpush1.bf16.msra.mxu0 %v941
        %961 = vmatprep.subr.bf16.mxu0 0
        %962 = vmatpush1.bf16.msra.mxu0 %v940
        %963 = vmatprep.subr.bf16.mxu0 0
        %964 = vmatpush1.bf16.msra.mxu0 %v939
        %965 = vmatprep.subr.bf16.mxu0 0
        %966 = vmatpush1.bf16.msra.mxu0 %v938
        %967 = vmatprep.subr.bf16.mxu0 0
        %968 = vmatpush1.bf16.msra.mxu0 %v937
        %969 = vmatprep.subr.bf16.mxu0 0
        %970 = vmatpush2.bf16.msra.mxu0 0
        %971 = vmatprep.subr.bf16.mxu0 0
        %972 = vmatpush2.bf16.msra.mxu0 0
        %973 = vmatprep.subr.bf16.mxu0 0
        %974 = vmatpush2.bf16.msra.mxu0 0
        %975 = vmatprep.subr.bf16.mxu0 0
        %976 = vmatpush2.bf16.msra.mxu0 0
        %977 = vmatprep.subr.bf16.mxu0 0
        %978 = vmatpush2.bf16.msra.mxu0 0
        %979 = vmatprep.subr.bf16.mxu0 0
        %980 = vmatpush2.bf16.msra.mxu0 0
        %981 = vmatprep.subr.bf16.mxu0 0
        %982 = vmatpush2.bf16.msra.mxu0 0
        %983 = vmatprep.subr.bf16.mxu0 0
        %984 = vmatpush2.bf16.msra.mxu0 0
        %985 = vmatprep.mubr.bf16.mxu0 0
        %986 = vmatmul.mubr.bf16.gmra.mxu0 %v873
        %v987 = vpop.f32.mrf.mxu0
        %v988 = vadd.f32 0.0, %v987
        %v989 = vpop.f32.mrf.mxu0
        %v990 = vpop.f32.mrf.mxu0
        %v991 = vadd.f32 0.0, %v990
        %v992 = vpop.f32.mrf.mxu0
        %993 = vmatprep.mubr.bf16.mxu0 0
        %994 = vmatmul.mubr.bf16.gmra.mxu0 %v874
        %v995 = vpop.f32.mrf.mxu0
        %v996 = vadd.f32 0.0, %v995
        %v997 = vpop.f32.mrf.mxu0
        %v998 = vpop.f32.mrf.mxu0
        %v999 = vadd.f32 0.0, %v998
        %v1000 = vpop.f32.mrf.mxu0
        %1001 = vmatprep.mubr.bf16.mxu0 0
        %1002 = vmatmul.mubr.bf16.gmra.mxu0 %v875
        %v1003 = vpop.f32.mrf.mxu0
        %v1004 = vadd.f32 0.0, %v1003
        %v1005 = vpop.f32.mrf.mxu0
        %v1006 = vpop.f32.mrf.mxu0
        %v1007 = vadd.f32 0.0, %v1006
        %v1008 = vpop.f32.mrf.mxu0
        %1009 = vmatprep.mubr.bf16.mxu0 0
        %1010 = vmatmul.mubr.bf16.gmra.mxu0 %v876
        %v1011 = vpop.f32.mrf.mxu0
        %v1012 = vadd.f32 0.0, %v1011
        %v1013 = vpop.f32.mrf.mxu0
        %v1014 = vpop.f32.mrf.mxu0
        %v1015 = vadd.f32 0.0, %v1014
        %v1016 = vpop.f32.mrf.mxu0
        %1017 = vmatprep.mubr.bf16.mxu0 0
        %1018 = vmatmul.mubr.bf16.gmra.mxu0 %v877
        %v1019 = vpop.f32.mrf.mxu0
        %v1020 = vadd.f32 0.0, %v1019
        %v1021 = vpop.f32.mrf.mxu0
        %v1022 = vpop.f32.mrf.mxu0
        %v1023 = vadd.f32 0.0, %v1022
        %v1024 = vpop.f32.mrf.mxu0
        %1025 = vmatprep.mubr.bf16.mxu0 0
        %1026 = vmatmul.mubr.bf16.gmra.mxu0 %v878
        %v1027 = vpop.f32.mrf.mxu0
        %v1028 = vadd.f32 0.0, %v1027
        %v1029 = vpop.f32.mrf.mxu0
        %v1030 = vpop.f32.mrf.mxu0
        %v1031 = vadd.f32 0.0, %v1030
        %v1032 = vpop.f32.mrf.mxu0
        %1033 = vmatprep.mubr.bf16.mxu0 0
        %1034 = vmatmul.mubr.bf16.gmra.mxu0 %v879
        %v1035 = vpop.f32.mrf.mxu0
        %v1036 = vadd.f32 0.0, %v1035
        %v1037 = vpop.f32.mrf.mxu0
        %v1038 = vpop.f32.mrf.mxu0
        %v1039 = vadd.f32 0.0, %v1038
        %v1040 = vpop.f32.mrf.mxu0
        %1041 = vmatprep.mubr.bf16.mxu0 0
        %1042 = vmatmul.mubr.bf16.gmra.mxu0 %v880
        %v1043 = vpop.f32.mrf.mxu0
        %v1044 = vadd.f32 0.0, %v1043
        %v1045 = vpop.f32.mrf.mxu0
        %v1046 = vpop.f32.mrf.mxu0
        %v1047 = vadd.f32 0.0, %v1046
        %v1048 = vpop.f32.mrf.mxu0
        %1049 = vmatprep.mubr.bf16.mxu0 0
        %1050 = vmatmul.mubr.bf16.gmra.mxu0 %v881
        %v1051 = vpop.f32.mrf.mxu0
        %v1052 = vadd.f32 0.0, %v1051
        %v1053 = vpop.f32.mrf.mxu0
        %v1054 = vpop.f32.mrf.mxu0
        %v1055 = vadd.f32 0.0, %v1054
        %v1056 = vpop.f32.mrf.mxu0
        %1057 = vmatprep.mubr.bf16.mxu0 0
        %1058 = vmatmul.mubr.bf16.gmra.mxu0 %v882
        %v1059 = vpop.f32.mrf.mxu0
        %v1060 = vadd.f32 0.0, %v1059
        %v1061 = vpop.f32.mrf.mxu0
        %v1062 = vpop.f32.mrf.mxu0
        %v1063 = vadd.f32 0.0, %v1062
        %v1064 = vpop.f32.mrf.mxu0
        %1065 = vmatprep.mubr.bf16.mxu0 0
        %1066 = vmatmul.mubr.bf16.gmra.mxu0 %v883
        %v1067 = vpop.f32.mrf.mxu0
        %v1068 = vadd.f32 0.0, %v1067
        %v1069 = vpop.f32.mrf.mxu0
        %v1070 = vpop.f32.mrf.mxu0
        %v1071 = vadd.f32 0.0, %v1070
        %v1072 = vpop.f32.mrf.mxu0
        %1073 = vmatprep.mubr.bf16.mxu0 0
        %1074 = vmatmul.mubr.bf16.gmra.mxu0 %v884
        %v1075 = vpop.f32.mrf.mxu0
        %v1076 = vadd.f32 0.0, %v1075
        %v1077 = vpop.f32.mrf.mxu0
        %v1078 = vpop.f32.mrf.mxu0
        %v1079 = vadd.f32 0.0, %v1078
        %v1080 = vpop.f32.mrf.mxu0
        %1081 = vmatprep.mubr.bf16.mxu0 0
        %1082 = vmatmul.mubr.bf16.gmra.mxu0 %v885
        %v1083 = vpop.f32.mrf.mxu0
        %v1084 = vadd.f32 0.0, %v1083
        %v1085 = vpop.f32.mrf.mxu0
        %v1086 = vpop.f32.mrf.mxu0
        %v1087 = vadd.f32 0.0, %v1086
        %v1088 = vpop.f32.mrf.mxu0
        %1089 = vmatprep.mubr.bf16.mxu0 0
        %1090 = vmatmul.mubr.bf16.gmra.mxu0 %v886
        %v1091 = vpop.f32.mrf.mxu0
        %v1092 = vadd.f32 0.0, %v1091
        %v1093 = vpop.f32.mrf.mxu0
        %v1094 = vpop.f32.mrf.mxu0
        %v1095 = vadd.f32 0.0, %v1094
        %v1096 = vpop.f32.mrf.mxu0
        %1097 = vmatprep.mubr.bf16.mxu0 0
        %1098 = vmatmul.mubr.bf16.gmra.mxu0 %v887
        %v1099 = vpop.f32.mrf.mxu0
        %v1100 = vadd.f32 0.0, %v1099
        %v1101 = vpop.f32.mrf.mxu0
        %v1102 = vpop.f32.mrf.mxu0
        %v1103 = vadd.f32 0.0, %v1102
        %v1104 = vpop.f32.mrf.mxu0
        %1105 = vmatprep.mubr.bf16.mxu0 0
        %1106 = vmatmul.mubr.bf16.gmra.mxu0 %v888
        %v1107 = vpop.f32.mrf.mxu0
        %v1108 = vadd.f32 0.0, %v1107
        %v1109 = vpop.f32.mrf.mxu0
        %v1110 = vpop.f32.mrf.mxu0
        %v1111 = vadd.f32 0.0, %v1110
        %v1112 = vpop.f32.mrf.mxu0
        %1113 = vdwg.mxu0
        %v1114 = vmax.f32 %v988, 0.0
        %v1115 = vmax.f32 %v991, 0.0
        %v1116 = vmax.f32 %v996, 0.0
        %v1117 = vmax.f32 %v999, 0.0
        %v1118 = vmax.f32 %v1004, 0.0
        %v1119 = vmax.f32 %v1007, 0.0
        %v1120 = vmax.f32 %v1012, 0.0
        %v1121 = vmax.f32 %v1015, 0.0
        %v1122 = vmax.f32 %v1020, 0.0
        %v1123 = vmax.f32 %v1023, 0.0
        %v1124 = vmax.f32 %v1028, 0.0
        %v1125 = vmax.f32 %v1031, 0.0
        %v1126 = vmax.f32 %v1036, 0.0
        %v1127 = vmax.f32 %v1039, 0.0
        %v1128 = vmax.f32 %v1044, 0.0
        %v1129 = vmax.f32 %v1047, 0.0
        %v1130 = vmax.f32 %v1052, 0.0
        %v1131 = vmax.f32 %v1055, 0.0
        %v1132 = vmax.f32 %v1060, 0.0
        %v1133 = vmax.f32 %v1063, 0.0
        %v1134 = vmax.f32 %v1068, 0.0
        %v1135 = vmax.f32 %v1071, 0.0
        %v1136 = vmax.f32 %v1076, 0.0
        %v1137 = vmax.f32 %v1079, 0.0
        %v1138 = vmax.f32 %v1084, 0.0
        %v1139 = vmax.f32 %v1087, 0.0
        %v1140 = vmax.f32 %v1092, 0.0
        %v1141 = vmax.f32 %v1095, 0.0
        %v1142 = vmax.f32 %v1100, 0.0
        %v1143 = vmax.f32 %v1103, 0.0
        %v1144 = vmax.f32 %v1108, 0.0
        %v1145 = vmax.f32 %v1111, 0.0
        %v1146 = vpack.c.bf16 %v1115, %v1114
        %v1147 = vpack.c.bf16 %v1117, %v1116
        %v1148 = vpack.c.bf16 %v1119, %v1118
        %v1149 = vpack.c.bf16 %v1121, %v1120
        %v1150 = vpack.c.bf16 %v1123, %v1122
        %v1151 = vpack.c.bf16 %v1125, %v1124
        %v1152 = vpack.c.bf16 %v1127, %v1126
        %v1153 = vpack.c.bf16 %v1129, %v1128
        %v1154 = vpack.c.bf16 %v1131, %v1130
        %v1155 = vpack.c.bf16 %v1133, %v1132
        %v1156 = vpack.c.bf16 %v1135, %v1134
        %v1157 = vpack.c.bf16 %v1137, %v1136
        %v1158 = vpack.c.bf16 %v1139, %v1138
        %v1159 = vpack.c.bf16 %v1141, %v1140
        %v1160 = vpack.c.bf16 %v1143, %v1142
        %v1161 = vpack.c.bf16 %v1145, %v1144
        %v1162 = vld [vmem:[%s4] sm:$0xf]
        %v1163 = vld [vmem:[%s4 + $0x4] sm:$0xf]
        %v1164 = vld [vmem:[%s4 + $0x8] sm:$0xf]
        %v1165 = vld [vmem:[%s4 + $0xc] sm:$0xf]
        %v1166 = vld [vmem:[%s4 + $0x10] sm:$0xf]
        %v1167 = vld [vmem:[%s4 + $0x14] sm:$0xf]
        %v1168 = vld [vmem:[%s4 + $0x18] sm:$0xf]
        %v1169 = vld [vmem:[%s4 + $0x1c] sm:$0xf]
        %v1178 = vunpack.c.l.b16 %v1162
        %v1179 = vunpack.c.l.b16 %v1163
        %v1180 = vunpack.c.l.b16 %v1164
        %v1181 = vunpack.c.l.b16 %v1165
        %v1182 = vunpack.c.l.b16 %v1166
        %v1183 = vunpack.c.l.b16 %v1167
        %v1184 = vunpack.c.l.b16 %v1168
        %v1185 = vunpack.c.l.b16 %v1169
        %v1186 = vpack.c.b16 %v1179, %v1178
        %v1187 = vpack.c.b16 %v1181, %v1180
        %v1188 = vpack.c.b16 %v1183, %v1182
        %v1189 = vpack.c.b16 %v1185, %v1184
        %vm1194 = vcmask 523264
        %v1196 = vsel %vm1194, %v1146, 0
        %v1199 = vsel %vm1194, %v1147, 0
        %v1202 = vsel %vm1194, %v1148, 0
        %v1205 = vsel %vm1194, %v1149, 0
        %v1208 = vsel %vm1194, %v1150, 0
        %v1211 = vsel %vm1194, %v1151, 0
        %v1214 = vsel %vm1194, %v1152, 0
        %v1217 = vsel %vm1194, %v1153, 0
        %v1220 = vsel %vm1194, %v1154, 0
        %v1223 = vsel %vm1194, %v1155, 0
        %v1226 = vsel %vm1194, %v1156, 0
        %v1229 = vsel %vm1194, %v1157, 0
        %v1232 = vsel %vm1194, %v1158, 0
        %v1235 = vsel %vm1194, %v1159, 0
        %v1238 = vsel %vm1194, %v1160, 0
        %v1241 = vsel %vm1194, %v1161, 0
        %1243 = vmatprep.subr.bf16.mxu0 0
        %1244 = vmatpush1.bf16.msra.mxu0 0
        %1245 = vmatprep.subr.bf16.mxu0 0
        %1246 = vmatpush1.bf16.msra.mxu0 0
        %1247 = vmatprep.subr.bf16.mxu0 0
        %1248 = vmatpush1.bf16.msra.mxu0 0
        %1249 = vmatprep.subr.bf16.mxu0 0
        %1250 = vmatpush1.bf16.msra.mxu0 0
        %1251 = vmatprep.subr.bf16.mxu0 0
        %1252 = vmatpush1.bf16.msra.mxu0 %v1189
        %1253 = vmatprep.subr.bf16.mxu0 0
        %1254 = vmatpush1.bf16.msra.mxu0 %v1188
        %1255 = vmatprep.subr.bf16.mxu0 0
        %1256 = vmatpush1.bf16.msra.mxu0 %v1187
        %1257 = vmatprep.subr.bf16.mxu0 0
        %1258 = vmatpush1.bf16.msra.mxu0 %v1186
        %1259 = vmatprep.subr.bf16.mxu0 0
        %1260 = vmatpush2.bf16.msra.mxu0 0
        %1261 = vmatprep.subr.bf16.mxu0 0
        %1262 = vmatpush2.bf16.msra.mxu0 0
        %1263 = vmatprep.subr.bf16.mxu0 0
        %1264 = vmatpush2.bf16.msra.mxu0 0
        %1265 = vmatprep.subr.bf16.mxu0 0
        %1266 = vmatpush2.bf16.msra.mxu0 0
        %1267 = vmatprep.subr.bf16.mxu0 0
        %1268 = vmatpush2.bf16.msra.mxu0 0
        %1269 = vmatprep.subr.bf16.mxu0 0
        %1270 = vmatpush2.bf16.msra.mxu0 0
        %1271 = vmatprep.subr.bf16.mxu0 0
        %1272 = vmatpush2.bf16.msra.mxu0 0
        %1273 = vmatprep.subr.bf16.mxu0 0
        %1274 = vmatpush2.bf16.msra.mxu0 0
        %1275 = vmatprep.mubr.bf16.mxu0 0
        %1276 = vmatmul.mubr.bf16.gmra.mxu0 %v1196
        %v1277 = vpop.f32.mrf.mxu0
        %v1278 = vadd.f32 0.0, %v1277
        %v1279 = vpop.f32.mrf.mxu0
        %v1280 = vpop.f32.mrf.mxu0
        %v1281 = vadd.f32 0.0, %v1280
        %v1282 = vpop.f32.mrf.mxu0
        %1283 = vmatprep.mubr.bf16.mxu0 0
        %1284 = vmatmul.mubr.bf16.gmra.mxu0 %v1199
        %v1285 = vpop.f32.mrf.mxu0
        %v1286 = vadd.f32 0.0, %v1285
        %v1287 = vpop.f32.mrf.mxu0
        %v1288 = vpop.f32.mrf.mxu0
        %v1289 = vadd.f32 0.0, %v1288
        %v1290 = vpop.f32.mrf.mxu0
        %1291 = vmatprep.mubr.bf16.mxu0 0
        %1292 = vmatmul.mubr.bf16.gmra.mxu0 %v1202
        %v1293 = vpop.f32.mrf.mxu0
        %v1294 = vadd.f32 0.0, %v1293
        %v1295 = vpop.f32.mrf.mxu0
        %v1296 = vpop.f32.mrf.mxu0
        %v1297 = vadd.f32 0.0, %v1296
        %v1298 = vpop.f32.mrf.mxu0
        %1299 = vmatprep.mubr.bf16.mxu0 0
        %1300 = vmatmul.mubr.bf16.gmra.mxu0 %v1205
        %v1301 = vpop.f32.mrf.mxu0
        %v1302 = vadd.f32 0.0, %v1301
        %v1303 = vpop.f32.mrf.mxu0
        %v1304 = vpop.f32.mrf.mxu0
        %v1305 = vadd.f32 0.0, %v1304
        %v1306 = vpop.f32.mrf.mxu0
        %1307 = vmatprep.mubr.bf16.mxu0 0
        %1308 = vmatmul.mubr.bf16.gmra.mxu0 %v1208
        %v1309 = vpop.f32.mrf.mxu0
        %v1310 = vadd.f32 0.0, %v1309
        %v1311 = vpop.f32.mrf.mxu0
        %v1312 = vpop.f32.mrf.mxu0
        %v1313 = vadd.f32 0.0, %v1312
        %v1314 = vpop.f32.mrf.mxu0
        %1315 = vmatprep.mubr.bf16.mxu0 0
        %1316 = vmatmul.mubr.bf16.gmra.mxu0 %v1211
        %v1317 = vpop.f32.mrf.mxu0
        %v1318 = vadd.f32 0.0, %v1317
        %v1319 = vpop.f32.mrf.mxu0
        %v1320 = vpop.f32.mrf.mxu0
        %v1321 = vadd.f32 0.0, %v1320
        %v1322 = vpop.f32.mrf.mxu0
        %1323 = vmatprep.mubr.bf16.mxu0 0
        %1324 = vmatmul.mubr.bf16.gmra.mxu0 %v1214
        %v1325 = vpop.f32.mrf.mxu0
        %v1326 = vadd.f32 0.0, %v1325
        %v1327 = vpop.f32.mrf.mxu0
        %v1328 = vpop.f32.mrf.mxu0
        %v1329 = vadd.f32 0.0, %v1328
        %v1330 = vpop.f32.mrf.mxu0
        %1331 = vmatprep.mubr.bf16.mxu0 0
        %1332 = vmatmul.mubr.bf16.gmra.mxu0 %v1217
        %v1333 = vpop.f32.mrf.mxu0
        %v1334 = vadd.f32 0.0, %v1333
        %v1335 = vpop.f32.mrf.mxu0
        %v1336 = vpop.f32.mrf.mxu0
        %v1337 = vadd.f32 0.0, %v1336
        %v1338 = vpop.f32.mrf.mxu0
        %1339 = vmatprep.mubr.bf16.mxu0 0
        %1340 = vmatmul.mubr.bf16.gmra.mxu0 %v1220
        %v1341 = vpop.f32.mrf.mxu0
        %v1342 = vadd.f32 0.0, %v1341
        %v1343 = vpop.f32.mrf.mxu0
        %v1344 = vpop.f32.mrf.mxu0
        %v1345 = vadd.f32 0.0, %v1344
        %v1346 = vpop.f32.mrf.mxu0
        %1347 = vmatprep.mubr.bf16.mxu0 0
        %1348 = vmatmul.mubr.bf16.gmra.mxu0 %v1223
        %v1349 = vpop.f32.mrf.mxu0
        %v1350 = vadd.f32 0.0, %v1349
        %v1351 = vpop.f32.mrf.mxu0
        %v1352 = vpop.f32.mrf.mxu0
        %v1353 = vadd.f32 0.0, %v1352
        %v1354 = vpop.f32.mrf.mxu0
        %1355 = vmatprep.mubr.bf16.mxu0 0
        %1356 = vmatmul.mubr.bf16.gmra.mxu0 %v1226
        %v1357 = vpop.f32.mrf.mxu0
        %v1358 = vadd.f32 0.0, %v1357
        %v1359 = vpop.f32.mrf.mxu0
        %v1360 = vpop.f32.mrf.mxu0
        %v1361 = vadd.f32 0.0, %v1360
        %v1362 = vpop.f32.mrf.mxu0
        %1363 = vmatprep.mubr.bf16.mxu0 0
        %1364 = vmatmul.mubr.bf16.gmra.mxu0 %v1229
        %v1365 = vpop.f32.mrf.mxu0
        %v1366 = vadd.f32 0.0, %v1365
        %v1367 = vpop.f32.mrf.mxu0
        %v1368 = vpop.f32.mrf.mxu0
        %v1369 = vadd.f32 0.0, %v1368
        %v1370 = vpop.f32.mrf.mxu0
        %1371 = vmatprep.mubr.bf16.mxu0 0
        %1372 = vmatmul.mubr.bf16.gmra.mxu0 %v1232
        %v1373 = vpop.f32.mrf.mxu0
        %v1374 = vadd.f32 0.0, %v1373
        %v1375 = vpop.f32.mrf.mxu0
        %v1376 = vpop.f32.mrf.mxu0
        %v1377 = vadd.f32 0.0, %v1376
        %v1378 = vpop.f32.mrf.mxu0
        %1379 = vmatprep.mubr.bf16.mxu0 0
        %1380 = vmatmul.mubr.bf16.gmra.mxu0 %v1235
        %v1381 = vpop.f32.mrf.mxu0
        %v1382 = vadd.f32 0.0, %v1381
        %v1383 = vpop.f32.mrf.mxu0
        %v1384 = vpop.f32.mrf.mxu0
        %v1385 = vadd.f32 0.0, %v1384
        %v1386 = vpop.f32.mrf.mxu0
        %1387 = vmatprep.mubr.bf16.mxu0 0
        %1388 = vmatmul.mubr.bf16.gmra.mxu0 %v1238
        %v1389 = vpop.f32.mrf.mxu0
        %v1390 = vadd.f32 0.0, %v1389
        %v1391 = vpop.f32.mrf.mxu0
        %v1392 = vpop.f32.mrf.mxu0
        %v1393 = vadd.f32 0.0, %v1392
        %v1394 = vpop.f32.mrf.mxu0
        %1395 = vmatprep.mubr.bf16.mxu0 0
        %1396 = vmatmul.mubr.bf16.gmra.mxu0 %v1241
        %v1397 = vpop.f32.mrf.mxu0
        %v1398 = vadd.f32 0.0, %v1397
        %v1399 = vpop.f32.mrf.mxu0
        %v1400 = vpop.f32.mrf.mxu0
        %v1401 = vadd.f32 0.0, %v1400
        %v1402 = vpop.f32.mrf.mxu0
        %1403 = vdwg.mxu0
        %v1404 = vmul.f32 %v1278, 1.442695
        %v1405 = vpow.pop %v1404
        %v1406 = vmul.f32 %v1281, 1.442695
        %v1407 = vpow.pop %v1406
        %v1408 = vmul.f32 %v1286, 1.442695
        %v1409 = vpow.pop %v1408
        %v1410 = vmul.f32 %v1289, 1.442695
        %v1411 = vpow.pop %v1410
        %v1412 = vmul.f32 %v1294, 1.442695
        %v1413 = vpow.pop %v1412
        %v1414 = vmul.f32 %v1297, 1.442695
        %v1415 = vpow.pop %v1414
        %v1416 = vmul.f32 %v1302, 1.442695
        %v1417 = vpow.pop %v1416
        %v1418 = vmul.f32 %v1305, 1.442695
        %v1419 = vpow.pop %v1418
        %v1420 = vmul.f32 %v1310, 1.442695
        %v1421 = vpow.pop %v1420
        %v1422 = vmul.f32 %v1313, 1.442695
        %v1423 = vpow.pop %v1422
        %v1424 = vmul.f32 %v1318, 1.442695
        %v1425 = vpow.pop %v1424
        %v1426 = vmul.f32 %v1321, 1.442695
        %v1427 = vpow.pop %v1426
        %v1428 = vmul.f32 %v1326, 1.442695
        %v1429 = vpow.pop %v1428
        %v1430 = vmul.f32 %v1329, 1.442695
        %v1431 = vpow.pop %v1430
        %v1432 = vmul.f32 %v1334, 1.442695
        %v1433 = vpow.pop %v1432
        %v1434 = vmul.f32 %v1337, 1.442695
        %v1435 = vpow.pop %v1434
        %v1436 = vmul.f32 %v1342, 1.442695
        %v1437 = vpow.pop %v1436
        %v1438 = vmul.f32 %v1345, 1.442695
        %v1439 = vpow.pop %v1438
        %v1440 = vmul.f32 %v1350, 1.442695
        %v1441 = vpow.pop %v1440
        %v1442 = vmul.f32 %v1353, 1.442695
        %v1443 = vpow.pop %v1442
        %v1444 = vmul.f32 %v1358, 1.442695
        %v1445 = vpow.pop %v1444
        %v1446 = vmul.f32 %v1361, 1.442695
        %v1447 = vpow.pop %v1446
        %v1448 = vmul.f32 %v1366, 1.442695
        %v1449 = vpow.pop %v1448
        %v1450 = vmul.f32 %v1369, 1.442695
        %v1451 = vpow.pop %v1450
        %v1452 = vmul.f32 %v1374, 1.442695
        %v1453 = vpow.pop %v1452
        %v1454 = vmul.f32 %v1377, 1.442695
        %v1455 = vpow.pop %v1454
        %v1456 = vmul.f32 %v1382, 1.442695
        %v1457 = vpow.pop %v1456
        %v1458 = vmul.f32 %v1385, 1.442695
        %v1459 = vpow.pop %v1458
        %v1460 = vmul.f32 %v1390, 1.442695
        %v1461 = vpow.pop %v1460
        %v1462 = vmul.f32 %v1393, 1.442695
        %v1463 = vpow.pop %v1462
        %v1464 = vmul.f32 %v1398, 1.442695
        %v1465 = vpow.pop %v1464
        %v1466 = vmul.f32 %v1401, 1.442695
        %v1467 = vpow.pop %v1466
        %v1468 = vld [vmem:[%s355] sm:$0xff]
        %v1469 = vld [vmem:[%s355 + $0x8] sm:$0xff]
        %v1470 = vld [vmem:[%s355 + $0x10] sm:$0xff]
        %v1471 = vld [vmem:[%s355 + $0x18] sm:$0xff]
        %v1472 = vld [vmem:[%s355 + $0x20] sm:$0xff]
        %v1473 = vld [vmem:[%s355 + $0x28] sm:$0xff]
        %v1474 = vld [vmem:[%s355 + $0x30] sm:$0xff]
        %v1475 = vld [vmem:[%s355 + $0x38] sm:$0xff]
        %v1476 = vld [vmem:[%s355 + $0x40] sm:$0xff]
        %v1477 = vld [vmem:[%s355 + $0x48] sm:$0xff]
        %v1478 = vld [vmem:[%s355 + $0x50] sm:$0xff]
        %v1479 = vld [vmem:[%s355 + $0x58] sm:$0xff]
        %v1480 = vld [vmem:[%s355 + $0x60] sm:$0xff]
        %v1481 = vld [vmem:[%s355 + $0x68] sm:$0xff]
        %v1482 = vld [vmem:[%s355 + $0x70] sm:$0xff]
        %v1483 = vld [vmem:[%s355 + $0x78] sm:$0xff]
        %v1484 = vld [vmem:[%s355 + $0x80] sm:$0xff]
        %v1485 = vld [vmem:[%s355 + $0x88] sm:$0xff]
        %v1486 = vld [vmem:[%s355 + $0x90] sm:$0xff]
        %v1487 = vld [vmem:[%s355 + $0x98] sm:$0xff]
        %v1488 = vld [vmem:[%s355 + $0xa0] sm:$0xff]
        %v1489 = vld [vmem:[%s355 + $0xa8] sm:$0xff]
        %v1490 = vld [vmem:[%s355 + $0xb0] sm:$0xff]
        %v1491 = vld [vmem:[%s355 + $0xb8] sm:$0xff]
        %v1492 = vld [vmem:[%s355 + $0xc0] sm:$0xff]
        %v1493 = vld [vmem:[%s355 + $0xc8] sm:$0xff]
        %v1494 = vld [vmem:[%s355 + $0xd0] sm:$0xff]
        %v1495 = vld [vmem:[%s355 + $0xd8] sm:$0xff]
        %v1496 = vld [vmem:[%s355 + $0xe0] sm:$0xff]
        %v1497 = vld [vmem:[%s355 + $0xe8] sm:$0xff]
        %v1498 = vld [vmem:[%s355 + $0xf0] sm:$0xff]
        %v1499 = vld [vmem:[%s355 + $0xf8] sm:$0xff]
        %1532 = vrot.lane.b32.xlu0 %v1468, 32
        %v1533 = vpop.permute.xlu0 %1532
        %1534 = vrot.lane.b32.xlu0 %v1469, 32
        %v1535 = vpop.permute.xlu0 %1534
        %1536 = vrot.lane.b32.xlu0 %v1470, 32
        %v1537 = vpop.permute.xlu0 %1536
        %1538 = vrot.lane.b32.xlu0 %v1471, 32
        %v1539 = vpop.permute.xlu0 %1538
        %1540 = vrot.lane.b32.xlu0 %v1472, 32
        %v1541 = vpop.permute.xlu0 %1540
        %1542 = vrot.lane.b32.xlu0 %v1473, 32
        %v1543 = vpop.permute.xlu0 %1542
        %1544 = vrot.lane.b32.xlu0 %v1474, 32
        %v1545 = vpop.permute.xlu0 %1544
        %1546 = vrot.lane.b32.xlu0 %v1475, 32
        %v1547 = vpop.permute.xlu0 %1546
        %1548 = vrot.lane.b32.xlu0 %v1476, 32
        %v1549 = vpop.permute.xlu0 %1548
        %1550 = vrot.lane.b32.xlu0 %v1477, 32
        %v1551 = vpop.permute.xlu0 %1550
        %1552 = vrot.lane.b32.xlu0 %v1478, 32
        %v1553 = vpop.permute.xlu0 %1552
        %1554 = vrot.lane.b32.xlu0 %v1479, 32
        %v1555 = vpop.permute.xlu0 %1554
        %1556 = vrot.lane.b32.xlu0 %v1480, 32
        %v1557 = vpop.permute.xlu0 %1556
        %1558 = vrot.lane.b32.xlu0 %v1481, 32
        %v1559 = vpop.permute.xlu0 %1558
        %1560 = vrot.lane.b32.xlu0 %v1482, 32
        %v1561 = vpop.permute.xlu0 %1560
        %1562 = vrot.lane.b32.xlu0 %v1483, 32
        %v1563 = vpop.permute.xlu0 %1562
        %1564 = vrot.lane.b32.xlu0 %v1484, 32
        %v1565 = vpop.permute.xlu0 %1564
        %1566 = vrot.lane.b32.xlu0 %v1485, 32
        %v1567 = vpop.permute.xlu0 %1566
        %1568 = vrot.lane.b32.xlu0 %v1486, 32
        %v1569 = vpop.permute.xlu0 %1568
        %1570 = vrot.lane.b32.xlu0 %v1487, 32
        %v1571 = vpop.permute.xlu0 %1570
        %1572 = vrot.lane.b32.xlu0 %v1488, 32
        %v1573 = vpop.permute.xlu0 %1572
        %1574 = vrot.lane.b32.xlu0 %v1489, 32
        %v1575 = vpop.permute.xlu0 %1574
        %1576 = vrot.lane.b32.xlu0 %v1490, 32
        %v1577 = vpop.permute.xlu0 %1576
        %1578 = vrot.lane.b32.xlu0 %v1491, 32
        %v1579 = vpop.permute.xlu0 %1578
        %1580 = vrot.lane.b32.xlu0 %v1492, 32
        %v1581 = vpop.permute.xlu0 %1580
        %1582 = vrot.lane.b32.xlu0 %v1493, 32
        %v1583 = vpop.permute.xlu0 %1582
        %1584 = vrot.lane.b32.xlu0 %v1494, 32
        %v1585 = vpop.permute.xlu0 %1584
        %1586 = vrot.lane.b32.xlu0 %v1495, 32
        %v1587 = vpop.permute.xlu0 %1586
        %1588 = vrot.lane.b32.xlu0 %v1496, 32
        %v1589 = vpop.permute.xlu0 %1588
        %1590 = vrot.lane.b32.xlu0 %v1497, 32
        %v1591 = vpop.permute.xlu0 %1590
        %1592 = vrot.lane.b32.xlu0 %v1498, 32
        %v1593 = vpop.permute.xlu0 %1592
        %1594 = vrot.lane.b32.xlu0 %v1499, 32
        %v1595 = vpop.permute.xlu0 %1594
        %v1628 = vmul.f32 %v1405, %v1533
        %v1629 = vmul.f32 %v1407, %v1535
        %v1630 = vmul.f32 %v1409, %v1537
        %v1631 = vmul.f32 %v1411, %v1539
        %v1632 = vmul.f32 %v1413, %v1541
        %v1633 = vmul.f32 %v1415, %v1543
        %v1634 = vmul.f32 %v1417, %v1545
        %v1635 = vmul.f32 %v1419, %v1547
        %v1636 = vmul.f32 %v1421, %v1549
        %v1637 = vmul.f32 %v1423, %v1551
        %v1638 = vmul.f32 %v1425, %v1553
        %v1639 = vmul.f32 %v1427, %v1555
        %v1640 = vmul.f32 %v1429, %v1557
        %v1641 = vmul.f32 %v1431, %v1559
        %v1642 = vmul.f32 %v1433, %v1561
        %v1643 = vmul.f32 %v1435, %v1563
        %v1644 = vmul.f32 %v1437, %v1565
        %v1645 = vmul.f32 %v1439, %v1567
        %v1646 = vmul.f32 %v1441, %v1569
        %v1647 = vmul.f32 %v1443, %v1571
        %v1648 = vmul.f32 %v1445, %v1573
        %v1649 = vmul.f32 %v1447, %v1575
        %v1650 = vmul.f32 %v1449, %v1577
        %v1651 = vmul.f32 %v1451, %v1579
        %v1652 = vmul.f32 %v1453, %v1581
        %v1653 = vmul.f32 %v1455, %v1583
        %v1654 = vmul.f32 %v1457, %v1585
        %v1655 = vmul.f32 %v1459, %v1587
        %v1656 = vmul.f32 %v1461, %v1589
        %v1657 = vmul.f32 %v1463, %v1591
        %v1658 = vmul.f32 %v1465, %v1593
        %v1659 = vmul.f32 %v1467, %v1595
        %1692 = vrot.lane.b32.xlu0 %v1628, 96
        %v1693 = vpop.permute.xlu0 %1692
        %1694 = vrot.lane.b32.xlu0 %v1629, 96
        %v1695 = vpop.permute.xlu0 %1694
        %1696 = vrot.lane.b32.xlu0 %v1630, 96
        %v1697 = vpop.permute.xlu0 %1696
        %1698 = vrot.lane.b32.xlu0 %v1631, 96
        %v1699 = vpop.permute.xlu0 %1698
        %1700 = vrot.lane.b32.xlu0 %v1632, 96
        %v1701 = vpop.permute.xlu0 %1700
        %1702 = vrot.lane.b32.xlu0 %v1633, 96
        %v1703 = vpop.permute.xlu0 %1702
        %1704 = vrot.lane.b32.xlu0 %v1634, 96
        %v1705 = vpop.permute.xlu0 %1704
        %1706 = vrot.lane.b32.xlu0 %v1635, 96
        %v1707 = vpop.permute.xlu0 %1706
        %1708 = vrot.lane.b32.xlu0 %v1636, 96
        %v1709 = vpop.permute.xlu0 %1708
        %1710 = vrot.lane.b32.xlu0 %v1637, 96
        %v1711 = vpop.permute.xlu0 %1710
        %1712 = vrot.lane.b32.xlu0 %v1638, 96
        %v1713 = vpop.permute.xlu0 %1712
        %1714 = vrot.lane.b32.xlu0 %v1639, 96
        %v1715 = vpop.permute.xlu0 %1714
        %1716 = vrot.lane.b32.xlu0 %v1640, 96
        %v1717 = vpop.permute.xlu0 %1716
        %1718 = vrot.lane.b32.xlu0 %v1641, 96
        %v1719 = vpop.permute.xlu0 %1718
        %1720 = vrot.lane.b32.xlu0 %v1642, 96
        %v1721 = vpop.permute.xlu0 %1720
        %1722 = vrot.lane.b32.xlu0 %v1643, 96
        %v1723 = vpop.permute.xlu0 %1722
        %1724 = vrot.lane.b32.xlu0 %v1644, 96
        %v1725 = vpop.permute.xlu0 %1724
        %1726 = vrot.lane.b32.xlu0 %v1645, 96
        %v1727 = vpop.permute.xlu0 %1726
        %1728 = vrot.lane.b32.xlu0 %v1646, 96
        %v1729 = vpop.permute.xlu0 %1728
        %1730 = vrot.lane.b32.xlu0 %v1647, 96
        %v1731 = vpop.permute.xlu0 %1730
        %1732 = vrot.lane.b32.xlu0 %v1648, 96
        %v1733 = vpop.permute.xlu0 %1732
        %1734 = vrot.lane.b32.xlu0 %v1649, 96
        %v1735 = vpop.permute.xlu0 %1734
        %1736 = vrot.lane.b32.xlu0 %v1650, 96
        %v1737 = vpop.permute.xlu0 %1736
        %1738 = vrot.lane.b32.xlu0 %v1651, 96
        %v1739 = vpop.permute.xlu0 %1738
        %1740 = vrot.lane.b32.xlu0 %v1652, 96
        %v1741 = vpop.permute.xlu0 %1740
        %1742 = vrot.lane.b32.xlu0 %v1653, 96
        %v1743 = vpop.permute.xlu0 %1742
        %1744 = vrot.lane.b32.xlu0 %v1654, 96
        %v1745 = vpop.permute.xlu0 %1744
        %1746 = vrot.lane.b32.xlu0 %v1655, 96
        %v1747 = vpop.permute.xlu0 %1746
        %1748 = vrot.lane.b32.xlu0 %v1656, 96
        %v1749 = vpop.permute.xlu0 %1748
        %1750 = vrot.lane.b32.xlu0 %v1657, 96
        %v1751 = vpop.permute.xlu0 %1750
        %1752 = vrot.lane.b32.xlu0 %v1658, 96
        %v1753 = vpop.permute.xlu0 %1752
        %1754 = vrot.lane.b32.xlu0 %v1659, 96
        %v1755 = vpop.permute.xlu0 %1754
        %v1788 = vadd.f32 %v1278, %v1693
        %v1789 = vadd.f32 %v1281, %v1695
        %v1790 = vadd.f32 %v1286, %v1697
        %v1791 = vadd.f32 %v1289, %v1699
        %v1792 = vadd.f32 %v1294, %v1701
        %v1793 = vadd.f32 %v1297, %v1703
        %v1794 = vadd.f32 %v1302, %v1705
        %v1795 = vadd.f32 %v1305, %v1707
        %v1796 = vadd.f32 %v1310, %v1709
        %v1797 = vadd.f32 %v1313, %v1711
        %v1798 = vadd.f32 %v1318, %v1713
        %v1799 = vadd.f32 %v1321, %v1715
        %v1800 = vadd.f32 %v1326, %v1717
        %v1801 = vadd.f32 %v1329, %v1719
        %v1802 = vadd.f32 %v1334, %v1721
        %v1803 = vadd.f32 %v1337, %v1723
        %v1804 = vadd.f32 %v1342, %v1725
        %v1805 = vadd.f32 %v1345, %v1727
        %v1806 = vadd.f32 %v1350, %v1729
        %v1807 = vadd.f32 %v1353, %v1731
        %v1808 = vadd.f32 %v1358, %v1733
        %v1809 = vadd.f32 %v1361, %v1735
        %v1810 = vadd.f32 %v1366, %v1737
        %v1811 = vadd.f32 %v1369, %v1739
        %v1812 = vadd.f32 %v1374, %v1741
        %v1813 = vadd.f32 %v1377, %v1743
        %v1814 = vadd.f32 %v1382, %v1745
        %v1815 = vadd.f32 %v1385, %v1747
        %v1816 = vadd.f32 %v1390, %v1749
        %v1817 = vadd.f32 %v1393, %v1751
        %v1818 = vadd.f32 %v1398, %v1753
        %v1819 = vadd.f32 %v1401, %v1755
        %v1820 = vpack.c.bf16 %v1789, %v1788
        %v1821 = vpack.c.bf16 %v1791, %v1790
        %v1822 = vpack.c.bf16 %v1793, %v1792
        %v1823 = vpack.c.bf16 %v1795, %v1794
        %v1824 = vpack.c.bf16 %v1797, %v1796
        %v1825 = vpack.c.bf16 %v1799, %v1798
        %v1826 = vpack.c.bf16 %v1801, %v1800
        %v1827 = vpack.c.bf16 %v1803, %v1802
        %v1828 = vpack.c.bf16 %v1805, %v1804
        %v1829 = vpack.c.bf16 %v1807, %v1806
        %v1830 = vpack.c.bf16 %v1809, %v1808
        %v1831 = vpack.c.bf16 %v1811, %v1810
        %v1832 = vpack.c.bf16 %v1813, %v1812
        %v1833 = vpack.c.bf16 %v1815, %v1814
        %v1834 = vpack.c.bf16 %v1817, %v1816
        %v1835 = vpack.c.bf16 %v1819, %v1818
        %v1836 = vld [vmem:[%s5] sm:$0xf]
        %v1837 = vld [vmem:[%s5 + $0x4] sm:$0xf]
        %v1838 = vld [vmem:[%s5 + $0x8] sm:$0xf]
        %v1839 = vld [vmem:[%s5 + $0xc] sm:$0xf]
        %v1844 = vunpack.c.l.b16 %v1836
        %v1845 = vunpack.c.l.b16 %v1837
        %v1846 = vunpack.c.l.b16 %v1838
        %v1847 = vunpack.c.l.b16 %v1839
        %v1848 = vpack.c.b16 %v1845, %v1844
        %v1849 = vpack.c.b16 %v1847, %v1846
        %vm1852 = vcmask 261120
        %v1854 = vsel %vm1852, %v1820, 0
        %v1857 = vsel %vm1852, %v1821, 0
        %v1860 = vsel %vm1852, %v1822, 0
        %v1863 = vsel %vm1852, %v1823, 0
        %v1866 = vsel %vm1852, %v1824, 0
        %v1869 = vsel %vm1852, %v1825, 0
        %v1872 = vsel %vm1852, %v1826, 0
        %v1875 = vsel %vm1852, %v1827, 0
        %v1878 = vsel %vm1852, %v1828, 0
        %v1881 = vsel %vm1852, %v1829, 0
        %v1884 = vsel %vm1852, %v1830, 0
        %v1887 = vsel %vm1852, %v1831, 0
        %v1890 = vsel %vm1852, %v1832, 0
        %v1893 = vsel %vm1852, %v1833, 0
        %v1896 = vsel %vm1852, %v1834, 0
        %v1899 = vsel %vm1852, %v1835, 0
        %1901 = vmatprep.subr.bf16.mxu0 0
        %1902 = vmatpush1.bf16.msra.mxu0 0
        %1903 = vmatprep.subr.bf16.mxu0 0
        %1904 = vmatpush1.bf16.msra.mxu0 0
        %1905 = vmatprep.subr.bf16.mxu0 0
        %1906 = vmatpush1.bf16.msra.mxu0 0
        %1907 = vmatprep.subr.bf16.mxu0 0
        %1908 = vmatpush1.bf16.msra.mxu0 0
        %1909 = vmatprep.subr.bf16.mxu0 0
        %1910 = vmatpush1.bf16.msra.mxu0 0
        %1911 = vmatprep.subr.bf16.mxu0 0
        %1912 = vmatpush1.bf16.msra.mxu0 0
        %1913 = vmatprep.subr.bf16.mxu0 0
        %1914 = vmatpush1.bf16.msra.mxu0 %v1849
        %1915 = vmatprep.subr.bf16.mxu0 0
        %1916 = vmatpush1.bf16.msra.mxu0 %v1848
        %1917 = vmatprep.subr.bf16.mxu0 0
        %1918 = vmatpush2.bf16.msra.mxu0 0
        %1919 = vmatprep.subr.bf16.mxu0 0
        %1920 = vmatpush2.bf16.msra.mxu0 0
        %1921 = vmatprep.subr.bf16.mxu0 0
        %1922 = vmatpush2.bf16.msra.mxu0 0
        %1923 = vmatprep.subr.bf16.mxu0 0
        %1924 = vmatpush2.bf16.msra.mxu0 0
        %1925 = vmatprep.subr.bf16.mxu0 0
        %1926 = vmatpush2.bf16.msra.mxu0 0
        %1927 = vmatprep.subr.bf16.mxu0 0
        %1928 = vmatpush2.bf16.msra.mxu0 0
        %1929 = vmatprep.subr.bf16.mxu0 0
        %1930 = vmatpush2.bf16.msra.mxu0 0
        %1931 = vmatprep.subr.bf16.mxu0 0
        %1932 = vmatpush2.bf16.msra.mxu0 0
        %1933 = vmatprep.mubr.bf16.mxu0 0
        %1934 = vmatmul.mubr.bf16.gmra.mxu0 %v1854
        %v1935 = vpop.f32.mrf.mxu0
        %v1936 = vadd.f32 0.0, %v1935
        %v1937 = vpop.f32.mrf.mxu0
        %v1938 = vpop.f32.mrf.mxu0
        %v1939 = vadd.f32 0.0, %v1938
        %v1940 = vpop.f32.mrf.mxu0
        %1941 = vmatprep.mubr.bf16.mxu0 0
        %1942 = vmatmul.mubr.bf16.gmra.mxu0 %v1857
        %v1943 = vpop.f32.mrf.mxu0
        %v1944 = vadd.f32 0.0, %v1943
        %v1945 = vpop.f32.mrf.mxu0
        %v1946 = vpop.f32.mrf.mxu0
        %v1947 = vadd.f32 0.0, %v1946
        %v1948 = vpop.f32.mrf.mxu0
        %1949 = vmatprep.mubr.bf16.mxu0 0
        %1950 = vmatmul.mubr.bf16.gmra.mxu0 %v1860
        %v1951 = vpop.f32.mrf.mxu0
        %v1952 = vadd.f32 0.0, %v1951
        %v1953 = vpop.f32.mrf.mxu0
        %v1954 = vpop.f32.mrf.mxu0
        %v1955 = vadd.f32 0.0, %v1954
        %v1956 = vpop.f32.mrf.mxu0
        %1957 = vmatprep.mubr.bf16.mxu0 0
        %1958 = vmatmul.mubr.bf16.gmra.mxu0 %v1863
        %v1959 = vpop.f32.mrf.mxu0
        %v1960 = vadd.f32 0.0, %v1959
        %v1961 = vpop.f32.mrf.mxu0
        %v1962 = vpop.f32.mrf.mxu0
        %v1963 = vadd.f32 0.0, %v1962
        %v1964 = vpop.f32.mrf.mxu0
        %1965 = vmatprep.mubr.bf16.mxu0 0
        %1966 = vmatmul.mubr.bf16.gmra.mxu0 %v1866
        %v1967 = vpop.f32.mrf.mxu0
        %v1968 = vadd.f32 0.0, %v1967
        %v1969 = vpop.f32.mrf.mxu0
        %v1970 = vpop.f32.mrf.mxu0
        %v1971 = vadd.f32 0.0, %v1970
        %v1972 = vpop.f32.mrf.mxu0
        %1973 = vmatprep.mubr.bf16.mxu0 0
        %1974 = vmatmul.mubr.bf16.gmra.mxu0 %v1869
        %v1975 = vpop.f32.mrf.mxu0
        %v1976 = vadd.f32 0.0, %v1975
        %v1977 = vpop.f32.mrf.mxu0
        %v1978 = vpop.f32.mrf.mxu0
        %v1979 = vadd.f32 0.0, %v1978
        %v1980 = vpop.f32.mrf.mxu0
        %1981 = vmatprep.mubr.bf16.mxu0 0
        %1982 = vmatmul.mubr.bf16.gmra.mxu0 %v1872
        %v1983 = vpop.f32.mrf.mxu0
        %v1984 = vadd.f32 0.0, %v1983
        %v1985 = vpop.f32.mrf.mxu0
        %v1986 = vpop.f32.mrf.mxu0
        %v1987 = vadd.f32 0.0, %v1986
        %v1988 = vpop.f32.mrf.mxu0
        %1989 = vmatprep.mubr.bf16.mxu0 0
        %1990 = vmatmul.mubr.bf16.gmra.mxu0 %v1875
        %v1991 = vpop.f32.mrf.mxu0
        %v1992 = vadd.f32 0.0, %v1991
        %v1993 = vpop.f32.mrf.mxu0
        %v1994 = vpop.f32.mrf.mxu0
        %v1995 = vadd.f32 0.0, %v1994
        %v1996 = vpop.f32.mrf.mxu0
        %1997 = vmatprep.mubr.bf16.mxu0 0
        %1998 = vmatmul.mubr.bf16.gmra.mxu0 %v1878
        %v1999 = vpop.f32.mrf.mxu0
        %v2000 = vadd.f32 0.0, %v1999
        %v2001 = vpop.f32.mrf.mxu0
        %v2002 = vpop.f32.mrf.mxu0
        %v2003 = vadd.f32 0.0, %v2002
        %v2004 = vpop.f32.mrf.mxu0
        %2005 = vmatprep.mubr.bf16.mxu0 0
        %2006 = vmatmul.mubr.bf16.gmra.mxu0 %v1881
        %v2007 = vpop.f32.mrf.mxu0
        %v2008 = vadd.f32 0.0, %v2007
        %v2009 = vpop.f32.mrf.mxu0
        %v2010 = vpop.f32.mrf.mxu0
        %v2011 = vadd.f32 0.0, %v2010
        %v2012 = vpop.f32.mrf.mxu0
        %2013 = vmatprep.mubr.bf16.mxu0 0
        %2014 = vmatmul.mubr.bf16.gmra.mxu0 %v1884
        %v2015 = vpop.f32.mrf.mxu0
        %v2016 = vadd.f32 0.0, %v2015
        %v2017 = vpop.f32.mrf.mxu0
        %v2018 = vpop.f32.mrf.mxu0
        %v2019 = vadd.f32 0.0, %v2018
        %v2020 = vpop.f32.mrf.mxu0
        %2021 = vmatprep.mubr.bf16.mxu0 0
        %2022 = vmatmul.mubr.bf16.gmra.mxu0 %v1887
        %v2023 = vpop.f32.mrf.mxu0
        %v2024 = vadd.f32 0.0, %v2023
        %v2025 = vpop.f32.mrf.mxu0
        %v2026 = vpop.f32.mrf.mxu0
        %v2027 = vadd.f32 0.0, %v2026
        %v2028 = vpop.f32.mrf.mxu0
        %2029 = vmatprep.mubr.bf16.mxu0 0
        %2030 = vmatmul.mubr.bf16.gmra.mxu0 %v1890
        %v2031 = vpop.f32.mrf.mxu0
        %v2032 = vadd.f32 0.0, %v2031
        %v2033 = vpop.f32.mrf.mxu0
        %v2034 = vpop.f32.mrf.mxu0
        %v2035 = vadd.f32 0.0, %v2034
        %v2036 = vpop.f32.mrf.mxu0
        %2037 = vmatprep.mubr.bf16.mxu0 0
        %2038 = vmatmul.mubr.bf16.gmra.mxu0 %v1893
        %v2039 = vpop.f32.mrf.mxu0
        %v2040 = vadd.f32 0.0, %v2039
        %v2041 = vpop.f32.mrf.mxu0
        %v2042 = vpop.f32.mrf.mxu0
        %v2043 = vadd.f32 0.0, %v2042
        %v2044 = vpop.f32.mrf.mxu0
        %2045 = vmatprep.mubr.bf16.mxu0 0
        %2046 = vmatmul.mubr.bf16.gmra.mxu0 %v1896
        %v2047 = vpop.f32.mrf.mxu0
        %v2048 = vadd.f32 0.0, %v2047
        %v2049 = vpop.f32.mrf.mxu0
        %v2050 = vpop.f32.mrf.mxu0
        %v2051 = vadd.f32 0.0, %v2050
        %v2052 = vpop.f32.mrf.mxu0
        %2053 = vmatprep.mubr.bf16.mxu0 0
        %2054 = vmatmul.mubr.bf16.gmra.mxu0 %v1899
        %v2055 = vpop.f32.mrf.mxu0
        %v2056 = vadd.f32 0.0, %v2055
        %v2057 = vpop.f32.mrf.mxu0
        %v2058 = vpop.f32.mrf.mxu0
        %v2059 = vadd.f32 0.0, %v2058
        %v2060 = vpop.f32.mrf.mxu0
        %2061 = vdwg.mxu0
        %v2062 = vmax.f32 %v1936, 0.0
        %v2063 = vmax.f32 %v1939, 0.0
        %v2064 = vmax.f32 %v1944, 0.0
        %v2065 = vmax.f32 %v1947, 0.0
        %v2066 = vmax.f32 %v1952, 0.0
        %v2067 = vmax.f32 %v1955, 0.0
        %v2068 = vmax.f32 %v1960, 0.0
        %v2069 = vmax.f32 %v1963, 0.0
        %v2070 = vmax.f32 %v1968, 0.0
        %v2071 = vmax.f32 %v1971, 0.0
        %v2072 = vmax.f32 %v1976, 0.0
        %v2073 = vmax.f32 %v1979, 0.0
        %v2074 = vmax.f32 %v1984, 0.0
        %v2075 = vmax.f32 %v1987, 0.0
        %v2076 = vmax.f32 %v1992, 0.0
        %v2077 = vmax.f32 %v1995, 0.0
        %v2078 = vmax.f32 %v2000, 0.0
        %v2079 = vmax.f32 %v2003, 0.0
        %v2080 = vmax.f32 %v2008, 0.0
        %v2081 = vmax.f32 %v2011, 0.0
        %v2082 = vmax.f32 %v2016, 0.0
        %v2083 = vmax.f32 %v2019, 0.0
        %v2084 = vmax.f32 %v2024, 0.0
        %v2085 = vmax.f32 %v2027, 0.0
        %v2086 = vmax.f32 %v2032, 0.0
        %v2087 = vmax.f32 %v2035, 0.0
        %v2088 = vmax.f32 %v2040, 0.0
        %v2089 = vmax.f32 %v2043, 0.0
        %v2090 = vmax.f32 %v2048, 0.0
        %v2091 = vmax.f32 %v2051, 0.0
        %v2092 = vmax.f32 %v2056, 0.0
        %v2093 = vmax.f32 %v2059, 0.0
        %v2094 = vpack.c.bf16 %v2063, %v2062
        %v2095 = vpack.c.bf16 %v2065, %v2064
        %v2096 = vpack.c.bf16 %v2067, %v2066
        %v2097 = vpack.c.bf16 %v2069, %v2068
        %v2098 = vpack.c.bf16 %v2071, %v2070
        %v2099 = vpack.c.bf16 %v2073, %v2072
        %v2100 = vpack.c.bf16 %v2075, %v2074
        %v2101 = vpack.c.bf16 %v2077, %v2076
        %v2102 = vpack.c.bf16 %v2079, %v2078
        %v2103 = vpack.c.bf16 %v2081, %v2080
        %v2104 = vpack.c.bf16 %v2083, %v2082
        %v2105 = vpack.c.bf16 %v2085, %v2084
        %v2106 = vpack.c.bf16 %v2087, %v2086
        %v2107 = vpack.c.bf16 %v2089, %v2088
        %v2108 = vpack.c.bf16 %v2091, %v2090
        %v2109 = vpack.c.bf16 %v2093, %v2092
        %v2110 = vld [vmem:[#allocation2] sm:$0xff]
        %v2111 = vld [vmem:[#allocation2 + $0x8] sm:$0xff]
        %v2112 = vld [vmem:[#allocation2 + $0x10] sm:$0xff]
        %v2113 = vld [vmem:[#allocation2 + $0x18] sm:$0xff]
        %v2114 = vld [vmem:[#allocation2 + $0x20] sm:$0xff]
        %v2115 = vld [vmem:[#allocation2 + $0x28] sm:$0xff]
        %v2116 = vld [vmem:[#allocation2 + $0x30] sm:$0xff]
        %v2117 = vld [vmem:[#allocation2 + $0x38] sm:$0xff]
        %v2118 = vld [vmem:[#allocation2 + $0x40] sm:$0xff]
        %v2119 = vld [vmem:[#allocation2 + $0x48] sm:$0xff]
        %v2120 = vld [vmem:[#allocation2 + $0x50] sm:$0xff]
        %v2121 = vld [vmem:[#allocation2 + $0x58] sm:$0xff]
        %v2122 = vld [vmem:[#allocation2 + $0x60] sm:$0xff]
        %v2123 = vld [vmem:[#allocation2 + $0x68] sm:$0xff]
        %v2124 = vld [vmem:[#allocation2 + $0x70] sm:$0xff]
        %v2125 = vld [vmem:[#allocation2 + $0x78] sm:$0xff]
        %v2142 = vunpack.c.l.b16 %v2110
        %v2143 = vunpack.c.h.b16 %v2110
        %v2144 = vunpack.c.l.b16 %v2111
        %v2145 = vunpack.c.h.b16 %v2111
        %v2146 = vunpack.c.l.b16 %v2112
        %v2147 = vunpack.c.h.b16 %v2112
        %v2148 = vunpack.c.l.b16 %v2113
        %v2149 = vunpack.c.h.b16 %v2113
        %v2150 = vunpack.c.l.b16 %v2114
        %v2151 = vunpack.c.h.b16 %v2114
        %v2152 = vunpack.c.l.b16 %v2115
        %v2153 = vunpack.c.h.b16 %v2115
        %v2154 = vunpack.c.l.b16 %v2116
        %v2155 = vunpack.c.h.b16 %v2116
        %v2156 = vunpack.c.l.b16 %v2117
        %v2157 = vunpack.c.h.b16 %v2117
        %v2158 = vunpack.c.l.b16 %v2118
        %v2159 = vunpack.c.h.b16 %v2118
        %v2160 = vunpack.c.l.b16 %v2119
        %v2161 = vunpack.c.h.b16 %v2119
        %v2162 = vunpack.c.l.b16 %v2120
        %v2163 = vunpack.c.h.b16 %v2120
        %v2164 = vunpack.c.l.b16 %v2121
        %v2165 = vunpack.c.h.b16 %v2121
        %v2166 = vunpack.c.l.b16 %v2122
        %v2167 = vunpack.c.h.b16 %v2122
        %v2168 = vunpack.c.l.b16 %v2123
        %v2169 = vunpack.c.h.b16 %v2123
        %v2170 = vunpack.c.l.b16 %v2124
        %v2171 = vunpack.c.h.b16 %v2124
        %v2172 = vunpack.c.l.b16 %v2125
        %v2173 = vunpack.c.h.b16 %v2125
        %v2174 = vpack.c.b16 %v2144, %v2142
        %v2175 = vpack.c.b16 %v2145, %v2143
        %v2176 = vpack.c.b16 %v2148, %v2146
        %v2177 = vpack.c.b16 %v2149, %v2147
        %v2178 = vpack.c.b16 %v2152, %v2150
        %v2179 = vpack.c.b16 %v2153, %v2151
        %v2180 = vpack.c.b16 %v2156, %v2154
        %v2181 = vpack.c.b16 %v2157, %v2155
        %v2182 = vpack.c.b16 %v2160, %v2158
        %v2183 = vpack.c.b16 %v2161, %v2159
        %v2184 = vpack.c.b16 %v2164, %v2162
        %v2185 = vpack.c.b16 %v2165, %v2163
        %v2186 = vpack.c.b16 %v2168, %v2166
        %v2187 = vpack.c.b16 %v2169, %v2167
        %v2188 = vpack.c.b16 %v2172, %v2170
        %v2189 = vpack.c.b16 %v2173, %v2171
        %2206 = vmatprep.subr.bf16.mxu0 %v2189
        %2207 = vmatpush1.bf16.msra.mxu0 %v2188
        %2208 = vmatprep.subr.bf16.mxu0 %v2187
        %2209 = vmatpush1.bf16.msra.mxu0 %v2186
        %2210 = vmatprep.subr.bf16.mxu0 %v2185
        %2211 = vmatpush1.bf16.msra.mxu0 %v2184
        %2212 = vmatprep.subr.bf16.mxu0 %v2183
        %2213 = vmatpush1.bf16.msra.mxu0 %v2182
        %2214 = vmatprep.subr.bf16.mxu0 %v2181
        %2215 = vmatpush1.bf16.msra.mxu0 %v2180
        %2216 = vmatprep.subr.bf16.mxu0 %v2179
        %2217 = vmatpush1.bf16.msra.mxu0 %v2178
        %2218 = vmatprep.subr.bf16.mxu0 %v2177
        %2219 = vmatpush1.bf16.msra.mxu0 %v2176
        %2220 = vmatprep.subr.bf16.mxu0 %v2175
        %2221 = vmatpush1.bf16.msra.mxu0 %v2174
        %2222 = vmatprep.subr.bf16.mxu0 0
        %2223 = vmatpush2.bf16.msra.mxu0 0
        %2224 = vmatprep.subr.bf16.mxu0 0
        %2225 = vmatpush2.bf16.msra.mxu0 0
        %2226 = vmatprep.subr.bf16.mxu0 0
        %2227 = vmatpush2.bf16.msra.mxu0 0
        %2228 = vmatprep.subr.bf16.mxu0 0
        %2229 = vmatpush2.bf16.msra.mxu0 0
        %2230 = vmatprep.subr.bf16.mxu0 0
        %2231 = vmatpush2.bf16.msra.mxu0 0
        %2232 = vmatprep.subr.bf16.mxu0 0
        %2233 = vmatpush2.bf16.msra.mxu0 0
        %2234 = vmatprep.subr.bf16.mxu0 0
        %2235 = vmatpush2.bf16.msra.mxu0 0
        %2236 = vmatprep.subr.bf16.mxu0 0
        %2237 = vmatpush2.bf16.msra.mxu0 0
        %2238 = vmatprep.mubr.bf16.mxu0 0
        %2239 = vmatmul.mubr.bf16.gmra.mxu0 %v2094
        %v2240 = vpop.f32.mrf.mxu0
        %v2241 = vadd.f32 0.0, %v2240
        %v2242 = vpop.f32.mrf.mxu0
        %v2243 = vadd.f32 0.0, %v2242
        %v2244 = vpop.f32.mrf.mxu0
        %v2245 = vadd.f32 0.0, %v2244
        %v2246 = vpop.f32.mrf.mxu0
        %v2247 = vadd.f32 0.0, %v2246
        %2248 = vmatprep.mubr.bf16.mxu0 0
        %2249 = vmatmul.mubr.bf16.gmra.mxu0 %v2095
        %v2250 = vpop.f32.mrf.mxu0
        %v2251 = vadd.f32 0.0, %v2250
        %v2252 = vpop.f32.mrf.mxu0
        %v2253 = vadd.f32 0.0, %v2252
        %v2254 = vpop.f32.mrf.mxu0
        %v2255 = vadd.f32 0.0, %v2254
        %v2256 = vpop.f32.mrf.mxu0
        %v2257 = vadd.f32 0.0, %v2256
        %2258 = vmatprep.mubr.bf16.mxu0 0
        %2259 = vmatmul.mubr.bf16.gmra.mxu0 %v2096
        %v2260 = vpop.f32.mrf.mxu0
        %v2261 = vadd.f32 0.0, %v2260
        %v2262 = vpop.f32.mrf.mxu0
        %v2263 = vadd.f32 0.0, %v2262
        %v2264 = vpop.f32.mrf.mxu0
        %v2265 = vadd.f32 0.0, %v2264
        %v2266 = vpop.f32.mrf.mxu0
        %v2267 = vadd.f32 0.0, %v2266
        %2268 = vmatprep.mubr.bf16.mxu0 0
        %2269 = vmatmul.mubr.bf16.gmra.mxu0 %v2097
        %v2270 = vpop.f32.mrf.mxu0
        %v2271 = vadd.f32 0.0, %v2270
        %v2272 = vpop.f32.mrf.mxu0
        %v2273 = vadd.f32 0.0, %v2272
        %v2274 = vpop.f32.mrf.mxu0
        %v2275 = vadd.f32 0.0, %v2274
        %v2276 = vpop.f32.mrf.mxu0
        %v2277 = vadd.f32 0.0, %v2276
        %2278 = vmatprep.mubr.bf16.mxu0 0
        %2279 = vmatmul.mubr.bf16.gmra.mxu0 %v2098
        %v2280 = vpop.f32.mrf.mxu0
        %v2281 = vadd.f32 0.0, %v2280
        %v2282 = vpop.f32.mrf.mxu0
        %v2283 = vadd.f32 0.0, %v2282
        %v2284 = vpop.f32.mrf.mxu0
        %v2285 = vadd.f32 0.0, %v2284
        %v2286 = vpop.f32.mrf.mxu0
        %v2287 = vadd.f32 0.0, %v2286
        %2288 = vmatprep.mubr.bf16.mxu0 0
        %2289 = vmatmul.mubr.bf16.gmra.mxu0 %v2099
        %v2290 = vpop.f32.mrf.mxu0
        %v2291 = vadd.f32 0.0, %v2290
        %v2292 = vpop.f32.mrf.mxu0
        %v2293 = vadd.f32 0.0, %v2292
        %v2294 = vpop.f32.mrf.mxu0
        %v2295 = vadd.f32 0.0, %v2294
        %v2296 = vpop.f32.mrf.mxu0
        %v2297 = vadd.f32 0.0, %v2296
        %2298 = vmatprep.mubr.bf16.mxu0 0
        %2299 = vmatmul.mubr.bf16.gmra.mxu0 %v2100
        %v2300 = vpop.f32.mrf.mxu0
        %v2301 = vadd.f32 0.0, %v2300
        %v2302 = vpop.f32.mrf.mxu0
        %v2303 = vadd.f32 0.0, %v2302
        %v2304 = vpop.f32.mrf.mxu0
        %v2305 = vadd.f32 0.0, %v2304
        %v2306 = vpop.f32.mrf.mxu0
        %v2307 = vadd.f32 0.0, %v2306
        %2308 = vmatprep.mubr.bf16.mxu0 0
        %2309 = vmatmul.mubr.bf16.gmra.mxu0 %v2101
        %v2310 = vpop.f32.mrf.mxu0
        %v2311 = vadd.f32 0.0, %v2310
        %v2312 = vpop.f32.mrf.mxu0
        %v2313 = vadd.f32 0.0, %v2312
        %v2314 = vpop.f32.mrf.mxu0
        %v2315 = vadd.f32 0.0, %v2314
        %v2316 = vpop.f32.mrf.mxu0
        %v2317 = vadd.f32 0.0, %v2316
        %2318 = vmatprep.mubr.bf16.mxu0 0
        %2319 = vmatmul.mubr.bf16.gmra.mxu0 %v2102
        %v2320 = vpop.f32.mrf.mxu0
        %v2321 = vadd.f32 0.0, %v2320
        %v2322 = vpop.f32.mrf.mxu0
        %v2323 = vadd.f32 0.0, %v2322
        %v2324 = vpop.f32.mrf.mxu0
        %v2325 = vadd.f32 0.0, %v2324
        %v2326 = vpop.f32.mrf.mxu0
        %v2327 = vadd.f32 0.0, %v2326
        %2328 = vmatprep.mubr.bf16.mxu0 0
        %2329 = vmatmul.mubr.bf16.gmra.mxu0 %v2103
        %v2330 = vpop.f32.mrf.mxu0
        %v2331 = vadd.f32 0.0, %v2330
        %v2332 = vpop.f32.mrf.mxu0
        %v2333 = vadd.f32 0.0, %v2332
        %v2334 = vpop.f32.mrf.mxu0
        %v2335 = vadd.f32 0.0, %v2334
        %v2336 = vpop.f32.mrf.mxu0
        %v2337 = vadd.f32 0.0, %v2336
        %2338 = vmatprep.mubr.bf16.mxu0 0
        %2339 = vmatmul.mubr.bf16.gmra.mxu0 %v2104
        %v2340 = vpop.f32.mrf.mxu0
        %v2341 = vadd.f32 0.0, %v2340
        %v2342 = vpop.f32.mrf.mxu0
        %v2343 = vadd.f32 0.0, %v2342
        %v2344 = vpop.f32.mrf.mxu0
        %v2345 = vadd.f32 0.0, %v2344
        %v2346 = vpop.f32.mrf.mxu0
        %v2347 = vadd.f32 0.0, %v2346
        %2348 = vmatprep.mubr.bf16.mxu0 0
        %2349 = vmatmul.mubr.bf16.gmra.mxu0 %v2105
        %v2350 = vpop.f32.mrf.mxu0
        %v2351 = vadd.f32 0.0, %v2350
        %v2352 = vpop.f32.mrf.mxu0
        %v2353 = vadd.f32 0.0, %v2352
        %v2354 = vpop.f32.mrf.mxu0
        %v2355 = vadd.f32 0.0, %v2354
        %v2356 = vpop.f32.mrf.mxu0
        %v2357 = vadd.f32 0.0, %v2356
        %2358 = vmatprep.mubr.bf16.mxu0 0
        %2359 = vmatmul.mubr.bf16.gmra.mxu0 %v2106
        %v2360 = vpop.f32.mrf.mxu0
        %v2361 = vadd.f32 0.0, %v2360
        %v2362 = vpop.f32.mrf.mxu0
        %v2363 = vadd.f32 0.0, %v2362
        %v2364 = vpop.f32.mrf.mxu0
        %v2365 = vadd.f32 0.0, %v2364
        %v2366 = vpop.f32.mrf.mxu0
        %v2367 = vadd.f32 0.0, %v2366
        %2368 = vmatprep.mubr.bf16.mxu0 0
        %2369 = vmatmul.mubr.bf16.gmra.mxu0 %v2107
        %v2370 = vpop.f32.mrf.mxu0
        %v2371 = vadd.f32 0.0, %v2370
        %v2372 = vpop.f32.mrf.mxu0
        %v2373 = vadd.f32 0.0, %v2372
        %v2374 = vpop.f32.mrf.mxu0
        %v2375 = vadd.f32 0.0, %v2374
        %v2376 = vpop.f32.mrf.mxu0
        %v2377 = vadd.f32 0.0, %v2376
        %2378 = vmatprep.mubr.bf16.mxu0 0
        %2379 = vmatmul.mubr.bf16.gmra.mxu0 %v2108
        %v2380 = vpop.f32.mrf.mxu0
        %v2381 = vadd.f32 0.0, %v2380
        %v2382 = vpop.f32.mrf.mxu0
        %v2383 = vadd.f32 0.0, %v2382
        %v2384 = vpop.f32.mrf.mxu0
        %v2385 = vadd.f32 0.0, %v2384
        %v2386 = vpop.f32.mrf.mxu0
        %v2387 = vadd.f32 0.0, %v2386
        %2388 = vmatprep.mubr.bf16.mxu0 0
        %2389 = vmatmul.mubr.bf16.gmra.mxu0 %v2109
        %v2390 = vpop.f32.mrf.mxu0
        %v2391 = vadd.f32 0.0, %v2390
        %v2392 = vpop.f32.mrf.mxu0
        %v2393 = vadd.f32 0.0, %v2392
        %v2394 = vpop.f32.mrf.mxu0
        %v2395 = vadd.f32 0.0, %v2394
        %v2396 = vpop.f32.mrf.mxu0
        %v2397 = vadd.f32 0.0, %v2396
        %2398 = vdwg.mxu0
        %v2399 = vmax.f32 %v2241, 0.0
        %v2400 = vmax.f32 %v2243, 0.0
        %v2401 = vmax.f32 %v2245, 0.0
        %v2402 = vmax.f32 %v2247, 0.0
        %v2403 = vmax.f32 %v2251, 0.0
        %v2404 = vmax.f32 %v2253, 0.0
        %v2405 = vmax.f32 %v2255, 0.0
        %v2406 = vmax.f32 %v2257, 0.0
        %v2407 = vmax.f32 %v2261, 0.0
        %v2408 = vmax.f32 %v2263, 0.0
        %v2409 = vmax.f32 %v2265, 0.0
        %v2410 = vmax.f32 %v2267, 0.0
        %v2411 = vmax.f32 %v2271, 0.0
        %v2412 = vmax.f32 %v2273, 0.0
        %v2413 = vmax.f32 %v2275, 0.0
        %v2414 = vmax.f32 %v2277, 0.0
        %v2415 = vmax.f32 %v2281, 0.0
        %v2416 = vmax.f32 %v2283, 0.0
        %v2417 = vmax.f32 %v2285, 0.0
        %v2418 = vmax.f32 %v2287, 0.0
        %v2419 = vmax.f32 %v2291, 0.0
        %v2420 = vmax.f32 %v2293, 0.0
        %v2421 = vmax.f32 %v2295, 0.0
        %v2422 = vmax.f32 %v2297, 0.0
        %v2423 = vmax.f32 %v2301, 0.0
        %v2424 = vmax.f32 %v2303, 0.0
        %v2425 = vmax.f32 %v2305, 0.0
        %v2426 = vmax.f32 %v2307, 0.0
        %v2427 = vmax.f32 %v2311, 0.0
        %v2428 = vmax.f32 %v2313, 0.0
        %v2429 = vmax.f32 %v2315, 0.0
        %v2430 = vmax.f32 %v2317, 0.0
        %v2431 = vmax.f32 %v2321, 0.0
        %v2432 = vmax.f32 %v2323, 0.0
        %v2433 = vmax.f32 %v2325, 0.0
        %v2434 = vmax.f32 %v2327, 0.0
        %v2435 = vmax.f32 %v2331, 0.0
        %v2436 = vmax.f32 %v2333, 0.0
        %v2437 = vmax.f32 %v2335, 0.0
        %v2438 = vmax.f32 %v2337, 0.0
        %v2439 = vmax.f32 %v2341, 0.0
        %v2440 = vmax.f32 %v2343, 0.0
        %v2441 = vmax.f32 %v2345, 0.0
        %v2442 = vmax.f32 %v2347, 0.0
        %v2443 = vmax.f32 %v2351, 0.0
        %v2444 = vmax.f32 %v2353, 0.0
        %v2445 = vmax.f32 %v2355, 0.0
        %v2446 = vmax.f32 %v2357, 0.0
        %v2447 = vmax.f32 %v2361, 0.0
        %v2448 = vmax.f32 %v2363, 0.0
        %v2449 = vmax.f32 %v2365, 0.0
        %v2450 = vmax.f32 %v2367, 0.0
        %v2451 = vmax.f32 %v2371, 0.0
        %v2452 = vmax.f32 %v2373, 0.0
        %v2453 = vmax.f32 %v2375, 0.0
        %v2454 = vmax.f32 %v2377, 0.0
        %v2455 = vmax.f32 %v2381, 0.0
        %v2456 = vmax.f32 %v2383, 0.0
        %v2457 = vmax.f32 %v2385, 0.0
        %v2458 = vmax.f32 %v2387, 0.0
        %v2459 = vmax.f32 %v2391, 0.0
        %v2460 = vmax.f32 %v2393, 0.0
        %v2461 = vmax.f32 %v2395, 0.0
        %v2462 = vmax.f32 %v2397, 0.0
        %v2463 = vmul.f32 %v2399, 0.1
        %v2464 = vmul.f32 %v2400, 0.1
        %v2465 = vmul.f32 %v2401, 0.1
        %v2466 = vmul.f32 %v2402, 0.1
        %v2467 = vmul.f32 %v2403, 0.1
        %v2468 = vmul.f32 %v2404, 0.1
        %v2469 = vmul.f32 %v2405, 0.1
        %v2470 = vmul.f32 %v2406, 0.1
        %v2471 = vmul.f32 %v2407, 0.1
        %v2472 = vmul.f32 %v2408, 0.1
        %v2473 = vmul.f32 %v2409, 0.1
        %v2474 = vmul.f32 %v2410, 0.1
        %v2475 = vmul.f32 %v2411, 0.1
        %v2476 = vmul.f32 %v2412, 0.1
        %v2477 = vmul.f32 %v2413, 0.1
        %v2478 = vmul.f32 %v2414, 0.1
        %v2479 = vmul.f32 %v2415, 0.1
        %v2480 = vmul.f32 %v2416, 0.1
        %v2481 = vmul.f32 %v2417, 0.1
        %v2482 = vmul.f32 %v2418, 0.1
        %v2483 = vmul.f32 %v2419, 0.1
        %v2484 = vmul.f32 %v2420, 0.1
        %v2485 = vmul.f32 %v2421, 0.1
        %v2486 = vmul.f32 %v2422, 0.1
        %v2487 = vmul.f32 %v2423, 0.1
        %v2488 = vmul.f32 %v2424, 0.1
        %v2489 = vmul.f32 %v2425, 0.1
        %v2490 = vmul.f32 %v2426, 0.1
        %v2491 = vmul.f32 %v2427, 0.1
        %v2492 = vmul.f32 %v2428, 0.1
        %v2493 = vmul.f32 %v2429, 0.1
        %v2494 = vmul.f32 %v2430, 0.1
        %v2495 = vmul.f32 %v2431, 0.1
        %v2496 = vmul.f32 %v2432, 0.1
        %v2497 = vmul.f32 %v2433, 0.1
        %v2498 = vmul.f32 %v2434, 0.1
        %v2499 = vmul.f32 %v2435, 0.1
        %v2500 = vmul.f32 %v2436, 0.1
        %v2501 = vmul.f32 %v2437, 0.1
        %v2502 = vmul.f32 %v2438, 0.1
        %v2503 = vmul.f32 %v2439, 0.1
        %v2504 = vmul.f32 %v2440, 0.1
        %v2505 = vmul.f32 %v2441, 0.1
        %v2506 = vmul.f32 %v2442, 0.1
        %v2507 = vmul.f32 %v2443, 0.1
        %v2508 = vmul.f32 %v2444, 0.1
        %v2509 = vmul.f32 %v2445, 0.1
        %v2510 = vmul.f32 %v2446, 0.1
        %v2511 = vmul.f32 %v2447, 0.1
        %v2512 = vmul.f32 %v2448, 0.1
        %v2513 = vmul.f32 %v2449, 0.1
        %v2514 = vmul.f32 %v2450, 0.1
        %v2515 = vmul.f32 %v2451, 0.1
        %v2516 = vmul.f32 %v2452, 0.1
        %v2517 = vmul.f32 %v2453, 0.1
        %v2518 = vmul.f32 %v2454, 0.1
        %v2519 = vmul.f32 %v2455, 0.1
        %v2520 = vmul.f32 %v2456, 0.1
        %v2521 = vmul.f32 %v2457, 0.1
        %v2522 = vmul.f32 %v2458, 0.1
        %v2523 = vmul.f32 %v2459, 0.1
        %v2524 = vmul.f32 %v2460, 0.1
        %v2525 = vmul.f32 %v2461, 0.1
        %v2526 = vmul.f32 %v2462, 0.1
        %v2527 = vxor.u32 %v2463, 2147483648
        %v2528 = vxor.u32 %v2464, 2147483648
        %v2529 = vxor.u32 %v2465, 2147483648
        %v2530 = vxor.u32 %v2466, 2147483648
        %v2531 = vxor.u32 %v2467, 2147483648
        %v2532 = vxor.u32 %v2468, 2147483648
        %v2533 = vxor.u32 %v2469, 2147483648
        %v2534 = vxor.u32 %v2470, 2147483648
        %v2535 = vxor.u32 %v2471, 2147483648
        %v2536 = vxor.u32 %v2472, 2147483648
        %v2537 = vxor.u32 %v2473, 2147483648
        %v2538 = vxor.u32 %v2474, 2147483648
        %v2539 = vxor.u32 %v2475, 2147483648
        %v2540 = vxor.u32 %v2476, 2147483648
        %v2541 = vxor.u32 %v2477, 2147483648
        %v2542 = vxor.u32 %v2478, 2147483648
        %v2543 = vxor.u32 %v2479, 2147483648
        %v2544 = vxor.u32 %v2480, 2147483648
        %v2545 = vxor.u32 %v2481, 2147483648
        %v2546 = vxor.u32 %v2482, 2147483648
        %v2547 = vxor.u32 %v2483, 2147483648
        %v2548 = vxor.u32 %v2484, 2147483648
        %v2549 = vxor.u32 %v2485, 2147483648
        %v2550 = vxor.u32 %v2486, 2147483648
        %v2551 = vxor.u32 %v2487, 2147483648
        %v2552 = vxor.u32 %v2488, 2147483648
        %v2553 = vxor.u32 %v2489, 2147483648
        %v2554 = vxor.u32 %v2490, 2147483648
        %v2555 = vxor.u32 %v2491, 2147483648
        %v2556 = vxor.u32 %v2492, 2147483648
        %v2557 = vxor.u32 %v2493, 2147483648
        %v2558 = vxor.u32 %v2494, 2147483648
        %v2559 = vxor.u32 %v2495, 2147483648
        %v2560 = vxor.u32 %v2496, 2147483648
        %v2561 = vxor.u32 %v2497, 2147483648
        %v2562 = vxor.u32 %v2498, 2147483648
        %v2563 = vxor.u32 %v2499, 2147483648
        %v2564 = vxor.u32 %v2500, 2147483648
        %v2565 = vxor.u32 %v2501, 2147483648
        %v2566 = vxor.u32 %v2502, 2147483648
        %v2567 = vxor.u32 %v2503, 2147483648
        %v2568 = vxor.u32 %v2504, 2147483648
        %v2569 = vxor.u32 %v2505, 2147483648
        %v2570 = vxor.u32 %v2506, 2147483648
        %v2571 = vxor.u32 %v2507, 2147483648
        %v2572 = vxor.u32 %v2508, 2147483648
        %v2573 = vxor.u32 %v2509, 2147483648
        %v2574 = vxor.u32 %v2510, 2147483648
        %v2575 = vxor.u32 %v2511, 2147483648
        %v2576 = vxor.u32 %v2512, 2147483648
        %v2577 = vxor.u32 %v2513, 2147483648
        %v2578 = vxor.u32 %v2514, 2147483648
        %v2579 = vxor.u32 %v2515, 2147483648
        %v2580 = vxor.u32 %v2516, 2147483648
        %v2581 = vxor.u32 %v2517, 2147483648
        %v2582 = vxor.u32 %v2518, 2147483648
        %v2583 = vxor.u32 %v2519, 2147483648
        %v2584 = vxor.u32 %v2520, 2147483648
        %v2585 = vxor.u32 %v2521, 2147483648
        %v2586 = vxor.u32 %v2522, 2147483648
        %v2587 = vxor.u32 %v2523, 2147483648
        %v2588 = vxor.u32 %v2524, 2147483648
        %v2589 = vxor.u32 %v2525, 2147483648
        %v2590 = vxor.u32 %v2526, 2147483648
        %v2591 = vmul.f32 %v2527, 1.442695
        %v2592 = vpow.pop %v2591
        %v2593 = vmul.f32 %v2528, 1.442695
        %v2594 = vpow.pop %v2593
        %v2595 = vmul.f32 %v2529, 1.442695
        %v2596 = vpow.pop %v2595
        %v2597 = vmul.f32 %v2530, 1.442695
        %v2598 = vpow.pop %v2597
        %v2599 = vmul.f32 %v2531, 1.442695
        %v2600 = vpow.pop %v2599
        %v2601 = vmul.f32 %v2532, 1.442695
        %v2602 = vpow.pop %v2601
        %v2603 = vmul.f32 %v2533, 1.442695
        %v2604 = vpow.pop %v2603
        %v2605 = vmul.f32 %v2534, 1.442695
        %v2606 = vpow.pop %v2605
        %v2607 = vmul.f32 %v2535, 1.442695
        %v2608 = vpow.pop %v2607
        %v2609 = vmul.f32 %v2536, 1.442695
        %v2610 = vpow.pop %v2609
        %v2611 = vmul.f32 %v2537, 1.442695
        %v2612 = vpow.pop %v2611
        %v2613 = vmul.f32 %v2538, 1.442695
        %v2614 = vpow.pop %v2613
        %v2615 = vmul.f32 %v2539, 1.442695
        %v2616 = vpow.pop %v2615
        %v2617 = vmul.f32 %v2540, 1.442695
        %v2618 = vpow.pop %v2617
        %v2619 = vmul.f32 %v2541, 1.442695
        %v2620 = vpow.pop %v2619
        %v2621 = vmul.f32 %v2542, 1.442695
        %v2622 = vpow.pop %v2621
        %v2623 = vmul.f32 %v2543, 1.442695
        %v2624 = vpow.pop %v2623
        %v2625 = vmul.f32 %v2544, 1.442695
        %v2626 = vpow.pop %v2625
        %v2627 = vmul.f32 %v2545, 1.442695
        %v2628 = vpow.pop %v2627
        %v2629 = vmul.f32 %v2546, 1.442695
        %v2630 = vpow.pop %v2629
        %v2631 = vmul.f32 %v2547, 1.442695
        %v2632 = vpow.pop %v2631
        %v2633 = vmul.f32 %v2548, 1.442695
        %v2634 = vpow.pop %v2633
        %v2635 = vmul.f32 %v2549, 1.442695
        %v2636 = vpow.pop %v2635
        %v2637 = vmul.f32 %v2550, 1.442695
        %v2638 = vpow.pop %v2637
        %v2639 = vmul.f32 %v2551, 1.442695
        %v2640 = vpow.pop %v2639
        %v2641 = vmul.f32 %v2552, 1.442695
        %v2642 = vpow.pop %v2641
        %v2643 = vmul.f32 %v2553, 1.442695
        %v2644 = vpow.pop %v2643
        %v2645 = vmul.f32 %v2554, 1.442695
        %v2646 = vpow.pop %v2645
        %v2647 = vmul.f32 %v2555, 1.442695
        %v2648 = vpow.pop %v2647
        %v2649 = vmul.f32 %v2556, 1.442695
        %v2650 = vpow.pop %v2649
        %v2651 = vmul.f32 %v2557, 1.442695
        %v2652 = vpow.pop %v2651
        %v2653 = vmul.f32 %v2558, 1.442695
        %v2654 = vpow.pop %v2653
        %v2655 = vmul.f32 %v2559, 1.442695
        %v2656 = vpow.pop %v2655
        %v2657 = vmul.f32 %v2560, 1.442695
        %v2658 = vpow.pop %v2657
        %v2659 = vmul.f32 %v2561, 1.442695
        %v2660 = vpow.pop %v2659
        %v2661 = vmul.f32 %v2562, 1.442695
        %v2662 = vpow.pop %v2661
        %v2663 = vmul.f32 %v2563, 1.442695
        %v2664 = vpow.pop %v2663
        %v2665 = vmul.f32 %v2564, 1.442695
        %v2666 = vpow.pop %v2665
        %v2667 = vmul.f32 %v2565, 1.442695
        %v2668 = vpow.pop %v2667
        %v2669 = vmul.f32 %v2566, 1.442695
        %v2670 = vpow.pop %v2669
        %v2671 = vmul.f32 %v2567, 1.442695
        %v2672 = vpow.pop %v2671
        %v2673 = vmul.f32 %v2568, 1.442695
        %v2674 = vpow.pop %v2673
        %v2675 = vmul.f32 %v2569, 1.442695
        %v2676 = vpow.pop %v2675
        %v2677 = vmul.f32 %v2570, 1.442695
        %v2678 = vpow.pop %v2677
        %v2679 = vmul.f32 %v2571, 1.442695
        %v2680 = vpow.pop %v2679
        %v2681 = vmul.f32 %v2572, 1.442695
        %v2682 = vpow.pop %v2681
        %v2683 = vmul.f32 %v2573, 1.442695
        %v2684 = vpow.pop %v2683
        %v2685 = vmul.f32 %v2574, 1.442695
        %v2686 = vpow.pop %v2685
        %v2687 = vmul.f32 %v2575, 1.442695
        %v2688 = vpow.pop %v2687
        %v2689 = vmul.f32 %v2576, 1.442695
        %v2690 = vpow.pop %v2689
        %v2691 = vmul.f32 %v2577, 1.442695
        %v2692 = vpow.pop %v2691
        %v2693 = vmul.f32 %v2578, 1.442695
        %v2694 = vpow.pop %v2693
        %v2695 = vmul.f32 %v2579, 1.442695
        %v2696 = vpow.pop %v2695
        %v2697 = vmul.f32 %v2580, 1.442695
        %v2698 = vpow.pop %v2697
        %v2699 = vmul.f32 %v2581, 1.442695
        %v2700 = vpow.pop %v2699
        %v2701 = vmul.f32 %v2582, 1.442695
        %v2702 = vpow.pop %v2701
        %v2703 = vmul.f32 %v2583, 1.442695
        %v2704 = vpow.pop %v2703
        %v2705 = vmul.f32 %v2584, 1.442695
        %v2706 = vpow.pop %v2705
        %v2707 = vmul.f32 %v2585, 1.442695
        %v2708 = vpow.pop %v2707
        %v2709 = vmul.f32 %v2586, 1.442695
        %v2710 = vpow.pop %v2709
        %v2711 = vmul.f32 %v2587, 1.442695
        %v2712 = vpow.pop %v2711
        %v2713 = vmul.f32 %v2588, 1.442695
        %v2714 = vpow.pop %v2713
        %v2715 = vmul.f32 %v2589, 1.442695
        %v2716 = vpow.pop %v2715
        %v2717 = vmul.f32 %v2590, 1.442695
        %v2718 = vpow.pop %v2717
        %v2719 = vadd.f32 %v2592, 1.0
        %v2720 = vadd.f32 %v2594, 1.0
        %v2721 = vadd.f32 %v2596, 1.0
        %v2722 = vadd.f32 %v2598, 1.0
        %v2723 = vadd.f32 %v2600, 1.0
        %v2724 = vadd.f32 %v2602, 1.0
        %v2725 = vadd.f32 %v2604, 1.0
        %v2726 = vadd.f32 %v2606, 1.0
        %v2727 = vadd.f32 %v2608, 1.0
        %v2728 = vadd.f32 %v2610, 1.0
        %v2729 = vadd.f32 %v2612, 1.0
        %v2730 = vadd.f32 %v2614, 1.0
        %v2731 = vadd.f32 %v2616, 1.0
        %v2732 = vadd.f32 %v2618, 1.0
        %v2733 = vadd.f32 %v2620, 1.0
        %v2734 = vadd.f32 %v2622, 1.0
        %v2735 = vadd.f32 %v2624, 1.0
        %v2736 = vadd.f32 %v2626, 1.0
        %v2737 = vadd.f32 %v2628, 1.0
        %v2738 = vadd.f32 %v2630, 1.0
        %v2739 = vadd.f32 %v2632, 1.0
        %v2740 = vadd.f32 %v2634, 1.0
        %v2741 = vadd.f32 %v2636, 1.0
        %v2742 = vadd.f32 %v2638, 1.0
        %v2743 = vadd.f32 %v2640, 1.0
        %v2744 = vadd.f32 %v2642, 1.0
        %v2745 = vadd.f32 %v2644, 1.0
        %v2746 = vadd.f32 %v2646, 1.0
        %v2747 = vadd.f32 %v2648, 1.0
        %v2748 = vadd.f32 %v2650, 1.0
        %v2749 = vadd.f32 %v2652, 1.0
        %v2750 = vadd.f32 %v2654, 1.0
        %v2751 = vadd.f32 %v2656, 1.0
        %v2752 = vadd.f32 %v2658, 1.0
        %v2753 = vadd.f32 %v2660, 1.0
        %v2754 = vadd.f32 %v2662, 1.0
        %v2755 = vadd.f32 %v2664, 1.0
        %v2756 = vadd.f32 %v2666, 1.0
        %v2757 = vadd.f32 %v2668, 1.0
        %v2758 = vadd.f32 %v2670, 1.0
        %v2759 = vadd.f32 %v2672, 1.0
        %v2760 = vadd.f32 %v2674, 1.0
        %v2761 = vadd.f32 %v2676, 1.0
        %v2762 = vadd.f32 %v2678, 1.0
        %v2763 = vadd.f32 %v2680, 1.0
        %v2764 = vadd.f32 %v2682, 1.0
        %v2765 = vadd.f32 %v2684, 1.0
        %v2766 = vadd.f32 %v2686, 1.0
        %v2767 = vadd.f32 %v2688, 1.0
        %v2768 = vadd.f32 %v2690, 1.0
        %v2769 = vadd.f32 %v2692, 1.0
        %v2770 = vadd.f32 %v2694, 1.0
        %v2771 = vadd.f32 %v2696, 1.0
        %v2772 = vadd.f32 %v2698, 1.0
        %v2773 = vadd.f32 %v2700, 1.0
        %v2774 = vadd.f32 %v2702, 1.0
        %v2775 = vadd.f32 %v2704, 1.0
        %v2776 = vadd.f32 %v2706, 1.0
        %v2777 = vadd.f32 %v2708, 1.0
        %v2778 = vadd.f32 %v2710, 1.0
        %v2779 = vadd.f32 %v2712, 1.0
        %v2780 = vadd.f32 %v2714, 1.0
        %v2781 = vadd.f32 %v2716, 1.0
        %v2782 = vadd.f32 %v2718, 1.0
        %v2783 = vrcp.pop %v2719
        %v2784 = vmul.f32 1.0, %v2783
        %v2785 = vrcp.pop %v2720
        %v2786 = vmul.f32 1.0, %v2785
        %v2787 = vrcp.pop %v2721
        %v2788 = vmul.f32 1.0, %v2787
        %v2789 = vrcp.pop %v2722
        %v2790 = vmul.f32 1.0, %v2789
        %v2791 = vrcp.pop %v2723
        %v2792 = vmul.f32 1.0, %v2791
        %v2793 = vrcp.pop %v2724
        %v2794 = vmul.f32 1.0, %v2793
        %v2795 = vrcp.pop %v2725
        %v2796 = vmul.f32 1.0, %v2795
        %v2797 = vrcp.pop %v2726
        %v2798 = vmul.f32 1.0, %v2797
        %v2799 = vrcp.pop %v2727
        %v2800 = vmul.f32 1.0, %v2799
        %v2801 = vrcp.pop %v2728
        %v2802 = vmul.f32 1.0, %v2801
        %v2803 = vrcp.pop %v2729
        %v2804 = vmul.f32 1.0, %v2803
        %v2805 = vrcp.pop %v2730
        %v2806 = vmul.f32 1.0, %v2805
        %v2807 = vrcp.pop %v2731
        %v2808 = vmul.f32 1.0, %v2807
        %v2809 = vrcp.pop %v2732
        %v2810 = vmul.f32 1.0, %v2809
        %v2811 = vrcp.pop %v2733
        %v2812 = vmul.f32 1.0, %v2811
        %v2813 = vrcp.pop %v2734
        %v2814 = vmul.f32 1.0, %v2813
        %v2815 = vrcp.pop %v2735
        %v2816 = vmul.f32 1.0, %v2815
        %v2817 = vrcp.pop %v2736
        %v2818 = vmul.f32 1.0, %v2817
        %v2819 = vrcp.pop %v2737
        %v2820 = vmul.f32 1.0, %v2819
        %v2821 = vrcp.pop %v2738
        %v2822 = vmul.f32 1.0, %v2821
        %v2823 = vrcp.pop %v2739
        %v2824 = vmul.f32 1.0, %v2823
        %v2825 = vrcp.pop %v2740
        %v2826 = vmul.f32 1.0, %v2825
        %v2827 = vrcp.pop %v2741
        %v2828 = vmul.f32 1.0, %v2827
        %v2829 = vrcp.pop %v2742
        %v2830 = vmul.f32 1.0, %v2829
        %v2831 = vrcp.pop %v2743
        %v2832 = vmul.f32 1.0, %v2831
        %v2833 = vrcp.pop %v2744
        %v2834 = vmul.f32 1.0, %v2833
        %v2835 = vrcp.pop %v2745
        %v2836 = vmul.f32 1.0, %v2835
        %v2837 = vrcp.pop %v2746
        %v2838 = vmul.f32 1.0, %v2837
        %v2839 = vrcp.pop %v2747
        %v2840 = vmul.f32 1.0, %v2839
        %v2841 = vrcp.pop %v2748
        %v2842 = vmul.f32 1.0, %v2841
        %v2843 = vrcp.pop %v2749
        %v2844 = vmul.f32 1.0, %v2843
        %v2845 = vrcp.pop %v2750
        %v2846 = vmul.f32 1.0, %v2845
        %v2847 = vrcp.pop %v2751
        %v2848 = vmul.f32 1.0, %v2847
        %v2849 = vrcp.pop %v2752
        %v2850 = vmul.f32 1.0, %v2849
        %v2851 = vrcp.pop %v2753
        %v2852 = vmul.f32 1.0, %v2851
        %v2853 = vrcp.pop %v2754
        %v2854 = vmul.f32 1.0, %v2853
        %v2855 = vrcp.pop %v2755
        %v2856 = vmul.f32 1.0, %v2855
        %v2857 = vrcp.pop %v2756
        %v2858 = vmul.f32 1.0, %v2857
        %v2859 = vrcp.pop %v2757
        %v2860 = vmul.f32 1.0, %v2859
        %v2861 = vrcp.pop %v2758
        %v2862 = vmul.f32 1.0, %v2861
        %v2863 = vrcp.pop %v2759
        %v2864 = vmul.f32 1.0, %v2863
        %v2865 = vrcp.pop %v2760
        %v2866 = vmul.f32 1.0, %v2865
        %v2867 = vrcp.pop %v2761
        %v2868 = vmul.f32 1.0, %v2867
        %v2869 = vrcp.pop %v2762
        %v2870 = vmul.f32 1.0, %v2869
        %v2871 = vrcp.pop %v2763
        %v2872 = vmul.f32 1.0, %v2871
        %v2873 = vrcp.pop %v2764
        %v2874 = vmul.f32 1.0, %v2873
        %v2875 = vrcp.pop %v2765
        %v2876 = vmul.f32 1.0, %v2875
        %v2877 = vrcp.pop %v2766
        %v2878 = vmul.f32 1.0, %v2877
        %v2879 = vrcp.pop %v2767
        %v2880 = vmul.f32 1.0, %v2879
        %v2881 = vrcp.pop %v2768
        %v2882 = vmul.f32 1.0, %v2881
        %v2883 = vrcp.pop %v2769
        %v2884 = vmul.f32 1.0, %v2883
        %v2885 = vrcp.pop %v2770
        %v2886 = vmul.f32 1.0, %v2885
        %v2887 = vrcp.pop %v2771
        %v2888 = vmul.f32 1.0, %v2887
        %v2889 = vrcp.pop %v2772
        %v2890 = vmul.f32 1.0, %v2889
        %v2891 = vrcp.pop %v2773
        %v2892 = vmul.f32 1.0, %v2891
        %v2893 = vrcp.pop %v2774
        %v2894 = vmul.f32 1.0, %v2893
        %v2895 = vrcp.pop %v2775
        %v2896 = vmul.f32 1.0, %v2895
        %v2897 = vrcp.pop %v2776
        %v2898 = vmul.f32 1.0, %v2897
        %v2899 = vrcp.pop %v2777
        %v2900 = vmul.f32 1.0, %v2899
        %v2901 = vrcp.pop %v2778
        %v2902 = vmul.f32 1.0, %v2901
        %v2903 = vrcp.pop %v2779
        %v2904 = vmul.f32 1.0, %v2903
        %v2905 = vrcp.pop %v2780
        %v2906 = vmul.f32 1.0, %v2905
        %v2907 = vrcp.pop %v2781
        %v2908 = vmul.f32 1.0, %v2907
        %v2909 = vrcp.pop %v2782
        %v2910 = vmul.f32 1.0, %v2909
        %v2911 = vpack.c.bf16 %v2788, %v2784
        %v2912 = vpack.c.bf16 %v2790, %v2786
        %v2913 = vpack.c.bf16 %v2796, %v2792
        %v2914 = vpack.c.bf16 %v2798, %v2794
        %v2915 = vpack.c.bf16 %v2804, %v2800
        %v2916 = vpack.c.bf16 %v2806, %v2802
        %v2917 = vpack.c.bf16 %v2812, %v2808
        %v2918 = vpack.c.bf16 %v2814, %v2810
        %v2919 = vpack.c.bf16 %v2820, %v2816
        %v2920 = vpack.c.bf16 %v2822, %v2818
        %v2921 = vpack.c.bf16 %v2828, %v2824
        %v2922 = vpack.c.bf16 %v2830, %v2826
        %v2923 = vpack.c.bf16 %v2836, %v2832
        %v2924 = vpack.c.bf16 %v2838, %v2834
        %v2925 = vpack.c.bf16 %v2844, %v2840
        %v2926 = vpack.c.bf16 %v2846, %v2842
        %v2927 = vpack.c.bf16 %v2852, %v2848
        %v2928 = vpack.c.bf16 %v2854, %v2850
        %v2929 = vpack.c.bf16 %v2860, %v2856
        %v2930 = vpack.c.bf16 %v2862, %v2858
        %v2931 = vpack.c.bf16 %v2868, %v2864
        %v2932 = vpack.c.bf16 %v2870, %v2866
        %v2933 = vpack.c.bf16 %v2876, %v2872
        %v2934 = vpack.c.bf16 %v2878, %v2874
        %v2935 = vpack.c.bf16 %v2884, %v2880
        %v2936 = vpack.c.bf16 %v2886, %v2882
        %v2937 = vpack.c.bf16 %v2892, %v2888
        %v2938 = vpack.c.bf16 %v2894, %v2890
        %v2939 = vpack.c.bf16 %v2900, %v2896
        %v2940 = vpack.c.bf16 %v2902, %v2898
        %v2941 = vpack.c.bf16 %v2908, %v2904
        %v2942 = vpack.c.bf16 %v2910, %v2906
        %v2975 = vunpack.c.l.b16 %v2911
        %v2976 = vunpack.c.l.b16 %v2912
        %v2977 = vunpack.c.h.b16 %v2911
        %v2978 = vunpack.c.h.b16 %v2912
        %v2979 = vunpack.c.l.b16 %v2913
        %v2980 = vunpack.c.l.b16 %v2914
        %v2981 = vunpack.c.h.b16 %v2913
        %v2982 = vunpack.c.h.b16 %v2914
        %v2983 = vunpack.c.l.b16 %v2915
        %v2984 = vunpack.c.l.b16 %v2916
        %v2985 = vunpack.c.h.b16 %v2915
        %v2986 = vunpack.c.h.b16 %v2916
        %v2987 = vunpack.c.l.b16 %v2917
        %v2988 = vunpack.c.l.b16 %v2918
        %v2989 = vunpack.c.h.b16 %v2917
        %v2990 = vunpack.c.h.b16 %v2918
        %v2991 = vunpack.c.l.b16 %v2919
        %v2992 = vunpack.c.l.b16 %v2920
        %v2993 = vunpack.c.h.b16 %v2919
        %v2994 = vunpack.c.h.b16 %v2920
        %v2995 = vunpack.c.l.b16 %v2921
        %v2996 = vunpack.c.l.b16 %v2922
        %v2997 = vunpack.c.h.b16 %v2921
        %v2998 = vunpack.c.h.b16 %v2922
        %v2999 = vunpack.c.l.b16 %v2923
        %v3000 = vunpack.c.l.b16 %v2924
        %v3001 = vunpack.c.h.b16 %v2923
        %v3002 = vunpack.c.h.b16 %v2924
        %v3003 = vunpack.c.l.b16 %v2925
        %v3004 = vunpack.c.l.b16 %v2926
        %v3005 = vunpack.c.h.b16 %v2925
        %v3006 = vunpack.c.h.b16 %v2926
        %v3007 = vunpack.c.l.b16 %v2927
        %v3008 = vunpack.c.l.b16 %v2928
        %v3009 = vunpack.c.h.b16 %v2927
        %v3010 = vunpack.c.h.b16 %v2928
        %v3011 = vunpack.c.l.b16 %v2929
        %v3012 = vunpack.c.l.b16 %v2930
        %v3013 = vunpack.c.h.b16 %v2929
        %v3014 = vunpack.c.h.b16 %v2930
        %v3015 = vunpack.c.l.b16 %v2931
        %v3016 = vunpack.c.l.b16 %v2932
        %v3017 = vunpack.c.h.b16 %v2931
        %v3018 = vunpack.c.h.b16 %v2932
        %v3019 = vunpack.c.l.b16 %v2933
        %v3020 = vunpack.c.l.b16 %v2934
        %v3021 = vunpack.c.h.b16 %v2933
        %v3022 = vunpack.c.h.b16 %v2934
        %v3023 = vunpack.c.l.b16 %v2935
        %v3024 = vunpack.c.l.b16 %v2936
        %v3025 = vunpack.c.h.b16 %v2935
        %v3026 = vunpack.c.h.b16 %v2936
        %v3027 = vunpack.c.l.b16 %v2937
        %v3028 = vunpack.c.l.b16 %v2938
        %v3029 = vunpack.c.h.b16 %v2937
        %v3030 = vunpack.c.h.b16 %v2938
        %v3031 = vunpack.c.l.b16 %v2939
        %v3032 = vunpack.c.l.b16 %v2940
        %v3033 = vunpack.c.h.b16 %v2939
        %v3034 = vunpack.c.h.b16 %v2940
        %v3035 = vunpack.c.l.b16 %v2941
        %v3036 = vunpack.c.l.b16 %v2942
        %v3037 = vunpack.c.h.b16 %v2941
        %v3038 = vunpack.c.h.b16 %v2942
        %v3039 = vpack.c.b16 %v2976, %v2975
        %v3040 = vpack.c.b16 %v2978, %v2977
        %v3041 = vpack.c.b16 %v2980, %v2979
        %v3042 = vpack.c.b16 %v2982, %v2981
        %v3043 = vpack.c.b16 %v2984, %v2983
        %v3044 = vpack.c.b16 %v2986, %v2985
        %v3045 = vpack.c.b16 %v2988, %v2987
        %v3046 = vpack.c.b16 %v2990, %v2989
        %v3047 = vpack.c.b16 %v2992, %v2991
        %v3048 = vpack.c.b16 %v2994, %v2993
        %v3049 = vpack.c.b16 %v2996, %v2995
        %v3050 = vpack.c.b16 %v2998, %v2997
        %v3051 = vpack.c.b16 %v3000, %v2999
        %v3052 = vpack.c.b16 %v3002, %v3001
        %v3053 = vpack.c.b16 %v3004, %v3003
        %v3054 = vpack.c.b16 %v3006, %v3005
        %v3055 = vpack.c.b16 %v3008, %v3007
        %v3056 = vpack.c.b16 %v3010, %v3009
        %v3057 = vpack.c.b16 %v3012, %v3011
        %v3058 = vpack.c.b16 %v3014, %v3013
        %v3059 = vpack.c.b16 %v3016, %v3015
        %v3060 = vpack.c.b16 %v3018, %v3017
        %v3061 = vpack.c.b16 %v3020, %v3019
        %v3062 = vpack.c.b16 %v3022, %v3021
        %v3063 = vpack.c.b16 %v3024, %v3023
        %v3064 = vpack.c.b16 %v3026, %v3025
        %v3065 = vpack.c.b16 %v3028, %v3027
        %v3066 = vpack.c.b16 %v3030, %v3029
        %v3067 = vpack.c.b16 %v3032, %v3031
        %v3068 = vpack.c.b16 %v3034, %v3033
        %v3069 = vpack.c.b16 %v3036, %v3035
        %v3070 = vpack.c.b16 %v3038, %v3037
        %3103 = vst [vmem:[%s336] sm:$0xff] %v3039
        %3104 = vst [vmem:[%s336 + $0x8] sm:$0xff] %v3040
        %3105 = vst [vmem:[%s336 + $0x10] sm:$0xff] %v3041
        %3106 = vst [vmem:[%s336 + $0x18] sm:$0xff] %v3042
        %3107 = vst [vmem:[%s336 + $0x20] sm:$0xff] %v3043
        %3108 = vst [vmem:[%s336 + $0x28] sm:$0xff] %v3044
        %3109 = vst [vmem:[%s336 + $0x30] sm:$0xff] %v3045
        %3110 = vst [vmem:[%s336 + $0x38] sm:$0xff] %v3046
        %3111 = vst [vmem:[%s336 + $0x40] sm:$0xff] %v3047
        %3112 = vst [vmem:[%s336 + $0x48] sm:$0xff] %v3048
        %3113 = vst [vmem:[%s336 + $0x50] sm:$0xff] %v3049
        %3114 = vst [vmem:[%s336 + $0x58] sm:$0xff] %v3050
        %3115 = vst [vmem:[%s336 + $0x60] sm:$0xff] %v3051
        %3116 = vst [vmem:[%s336 + $0x68] sm:$0xff] %v3052
        %3117 = vst [vmem:[%s336 + $0x70] sm:$0xff] %v3053
        %3118 = vst [vmem:[%s336 + $0x78] sm:$0xff] %v3054
        %3119 = vst [vmem:[%s336 + $0x80] sm:$0xff] %v3055
        %3120 = vst [vmem:[%s336 + $0x88] sm:$0xff] %v3056
        %3121 = vst [vmem:[%s336 + $0x90] sm:$0xff] %v3057
        %3122 = vst [vmem:[%s336 + $0x98] sm:$0xff] %v3058
        %3123 = vst [vmem:[%s336 + $0xa0] sm:$0xff] %v3059
        %3124 = vst [vmem:[%s336 + $0xa8] sm:$0xff] %v3060
        %3125 = vst [vmem:[%s336 + $0xb0] sm:$0xff] %v3061
        %3126 = vst [vmem:[%s336 + $0xb8] sm:$0xff] %v3062
        %3127 = vst [vmem:[%s336 + $0xc0] sm:$0xff] %v3063
        %3128 = vst [vmem:[%s336 + $0xc8] sm:$0xff] %v3064
        %3129 = vst [vmem:[%s336 + $0xd0] sm:$0xff] %v3065
        %3130 = vst [vmem:[%s336 + $0xd8] sm:$0xff] %v3066
        %3131 = vst [vmem:[%s336 + $0xe0] sm:$0xff] %v3067
        %3132 = vst [vmem:[%s336 + $0xe8] sm:$0xff] %v3068
        %3133 = vst [vmem:[%s336 + $0xf0] sm:$0xff] %v3069
        %3134 = vst [vmem:[%s336 + $0xf8] sm:$0xff] %v3070
        %3135 = vst.msk [vmem:[%s343] sm:$0xff] %vm1852, %v1788
        %3136 = vst.msk [vmem:[%s343 + $0x8] sm:$0xff] %vm1852, %v1789
        %3137 = vst.msk [vmem:[%s343 + $0x10] sm:$0xff] %vm1852, %v1790
        %3138 = vst.msk [vmem:[%s343 + $0x18] sm:$0xff] %vm1852, %v1791
        %3139 = vst.msk [vmem:[%s343 + $0x20] sm:$0xff] %vm1852, %v1792
        %3140 = vst.msk [vmem:[%s343 + $0x28] sm:$0xff] %vm1852, %v1793
        %3141 = vst.msk [vmem:[%s343 + $0x30] sm:$0xff] %vm1852, %v1794
        %3142 = vst.msk [vmem:[%s343 + $0x38] sm:$0xff] %vm1852, %v1795
        %3143 = vst.msk [vmem:[%s343 + $0x40] sm:$0xff] %vm1852, %v1796
        %3144 = vst.msk [vmem:[%s343 + $0x48] sm:$0xff] %vm1852, %v1797
        %3145 = vst.msk [vmem:[%s343 + $0x50] sm:$0xff] %vm1852, %v1798
        %3146 = vst.msk [vmem:[%s343 + $0x58] sm:$0xff] %vm1852, %v1799
        %3147 = vst.msk [vmem:[%s343 + $0x60] sm:$0xff] %vm1852, %v1800
        %3148 = vst.msk [vmem:[%s343 + $0x68] sm:$0xff] %vm1852, %v1801
        %3149 = vst.msk [vmem:[%s343 + $0x70] sm:$0xff] %vm1852, %v1802
        %3150 = vst.msk [vmem:[%s343 + $0x78] sm:$0xff] %vm1852, %v1803
        %3151 = vst.msk [vmem:[%s343 + $0x80] sm:$0xff] %vm1852, %v1804
        %3152 = vst.msk [vmem:[%s343 + $0x88] sm:$0xff] %vm1852, %v1805
        %3153 = vst.msk [vmem:[%s343 + $0x90] sm:$0xff] %vm1852, %v1806
        %3154 = vst.msk [vmem:[%s343 + $0x98] sm:$0xff] %vm1852, %v1807
        %3155 = vst.msk [vmem:[%s343 + $0xa0] sm:$0xff] %vm1852, %v1808
        %3156 = vst.msk [vmem:[%s343 + $0xa8] sm:$0xff] %vm1852, %v1809
        %3157 = vst.msk [vmem:[%s343 + $0xb0] sm:$0xff] %vm1852, %v1810
        %3158 = vst.msk [vmem:[%s343 + $0xb8] sm:$0xff] %vm1852, %v1811
        %3159 = vst.msk [vmem:[%s343 + $0xc0] sm:$0xff] %vm1852, %v1812
        %3160 = vst.msk [vmem:[%s343 + $0xc8] sm:$0xff] %vm1852, %v1813
        %3161 = vst.msk [vmem:[%s343 + $0xd0] sm:$0xff] %vm1852, %v1814
        %3162 = vst.msk [vmem:[%s343 + $0xd8] sm:$0xff] %vm1852, %v1815
        %3163 = vst.msk [vmem:[%s343 + $0xe0] sm:$0xff] %vm1852, %v1816
        %3164 = vst.msk [vmem:[%s343 + $0xe8] sm:$0xff] %vm1852, %v1817
        %3165 = vst.msk [vmem:[%s343 + $0xf0] sm:$0xff] %vm1852, %v1818
        %3166 = vst.msk [vmem:[%s343 + $0xf8] sm:$0xff] %vm1852, %v1819
        %3199 = vrot.lane.b32.xlu0 %v1278, 32
        %v3200 = vpop.permute.xlu0 %3199
        %3201 = vrot.lane.b32.xlu0 %v1281, 32
        %v3202 = vpop.permute.xlu0 %3201
        %3203 = vrot.lane.b32.xlu0 %v1286, 32
        %v3204 = vpop.permute.xlu0 %3203
        %3205 = vrot.lane.b32.xlu0 %v1289, 32
        %v3206 = vpop.permute.xlu0 %3205
        %3207 = vrot.lane.b32.xlu0 %v1294, 32
        %v3208 = vpop.permute.xlu0 %3207
        %3209 = vrot.lane.b32.xlu0 %v1297, 32
        %v3210 = vpop.permute.xlu0 %3209
        %3211 = vrot.lane.b32.xlu0 %v1302, 32
        %v3212 = vpop.permute.xlu0 %3211
        %3213 = vrot.lane.b32.xlu0 %v1305, 32
        %v3214 = vpop.permute.xlu0 %3213
        %3215 = vrot.lane.b32.xlu0 %v1310, 32
        %v3216 = vpop.permute.xlu0 %3215
        %3217 = vrot.lane.b32.xlu0 %v1313, 32
        %v3218 = vpop.permute.xlu0 %3217
        %3219 = vrot.lane.b32.xlu0 %v1318, 32
        %v3220 = vpop.permute.xlu0 %3219
        %3221 = vrot.lane.b32.xlu0 %v1321, 32
        %v3222 = vpop.permute.xlu0 %3221
        %3223 = vrot.lane.b32.xlu0 %v1326, 32
        %v3224 = vpop.permute.xlu0 %3223
        %3225 = vrot.lane.b32.xlu0 %v1329, 32
        %v3226 = vpop.permute.xlu0 %3225
        %3227 = vrot.lane.b32.xlu0 %v1334, 32
        %v3228 = vpop.permute.xlu0 %3227
        %3229 = vrot.lane.b32.xlu0 %v1337, 32
        %v3230 = vpop.permute.xlu0 %3229
        %3231 = vrot.lane.b32.xlu0 %v1342, 32
        %v3232 = vpop.permute.xlu0 %3231
        %3233 = vrot.lane.b32.xlu0 %v1345, 32
        %v3234 = vpop.permute.xlu0 %3233
        %3235 = vrot.lane.b32.xlu0 %v1350, 32
        %v3236 = vpop.permute.xlu0 %3235
        %3237 = vrot.lane.b32.xlu0 %v1353, 32
        %v3238 = vpop.permute.xlu0 %3237
        %3239 = vrot.lane.b32.xlu0 %v1358, 32
        %v3240 = vpop.permute.xlu0 %3239
        %3241 = vrot.lane.b32.xlu0 %v1361, 32
        %v3242 = vpop.permute.xlu0 %3241
        %3243 = vrot.lane.b32.xlu0 %v1366, 32
        %v3244 = vpop.permute.xlu0 %3243
        %3245 = vrot.lane.b32.xlu0 %v1369, 32
        %v3246 = vpop.permute.xlu0 %3245
        %3247 = vrot.lane.b32.xlu0 %v1374, 32
        %v3248 = vpop.permute.xlu0 %3247
        %3249 = vrot.lane.b32.xlu0 %v1377, 32
        %v3250 = vpop.permute.xlu0 %3249
        %3251 = vrot.lane.b32.xlu0 %v1382, 32
        %v3252 = vpop.permute.xlu0 %3251
        %3253 = vrot.lane.b32.xlu0 %v1385, 32
        %v3254 = vpop.permute.xlu0 %3253
        %3255 = vrot.lane.b32.xlu0 %v1390, 32
        %v3256 = vpop.permute.xlu0 %3255
        %3257 = vrot.lane.b32.xlu0 %v1393, 32
        %v3258 = vpop.permute.xlu0 %3257
        %3259 = vrot.lane.b32.xlu0 %v1398, 32
        %v3260 = vpop.permute.xlu0 %3259
        %3261 = vrot.lane.b32.xlu0 %v1401, 32
        %v3262 = vpop.permute.xlu0 %3261
        %vm3295 = vcmask 523520
        %3296 = vst.msk [vmem:[%s343] sm:$0xff] %vm3295, %v3200
        %3297 = vst.msk [vmem:[%s343 + $0x8] sm:$0xff] %vm3295, %v3202
        %3298 = vst.msk [vmem:[%s343 + $0x10] sm:$0xff] %vm3295, %v3204
        %3299 = vst.msk [vmem:[%s343 + $0x18] sm:$0xff] %vm3295, %v3206
        %3300 = vst.msk [vmem:[%s343 + $0x20] sm:$0xff] %vm3295, %v3208
        %3301 = vst.msk [vmem:[%s343 + $0x28] sm:$0xff] %vm3295, %v3210
        %3302 = vst.msk [vmem:[%s343 + $0x30] sm:$0xff] %vm3295, %v3212
        %3303 = vst.msk [vmem:[%s343 + $0x38] sm:$0xff] %vm3295, %v3214
        %3304 = vst.msk [vmem:[%s343 + $0x40] sm:$0xff] %vm3295, %v3216
        %3305 = vst.msk [vmem:[%s343 + $0x48] sm:$0xff] %vm3295, %v3218
        %3306 = vst.msk [vmem:[%s343 + $0x50] sm:$0xff] %vm3295, %v3220
        %3307 = vst.msk [vmem:[%s343 + $0x58] sm:$0xff] %vm3295, %v3222
        %3308 = vst.msk [vmem:[%s343 + $0x60] sm:$0xff] %vm3295, %v3224
        %3309 = vst.msk [vmem:[%s343 + $0x68] sm:$0xff] %vm3295, %v3226
        %3310 = vst.msk [vmem:[%s343 + $0x70] sm:$0xff] %vm3295, %v3228
        %3311 = vst.msk [vmem:[%s343 + $0x78] sm:$0xff] %vm3295, %v3230
        %3312 = vst.msk [vmem:[%s343 + $0x80] sm:$0xff] %vm3295, %v3232
        %3313 = vst.msk [vmem:[%s343 + $0x88] sm:$0xff] %vm3295, %v3234
        %3314 = vst.msk [vmem:[%s343 + $0x90] sm:$0xff] %vm3295, %v3236
        %3315 = vst.msk [vmem:[%s343 + $0x98] sm:$0xff] %vm3295, %v3238
        %3316 = vst.msk [vmem:[%s343 + $0xa0] sm:$0xff] %vm3295, %v3240
        %3317 = vst.msk [vmem:[%s343 + $0xa8] sm:$0xff] %vm3295, %v3242
        %3318 = vst.msk [vmem:[%s343 + $0xb0] sm:$0xff] %vm3295, %v3244
        %3319 = vst.msk [vmem:[%s343 + $0xb8] sm:$0xff] %vm3295, %v3246
        %3320 = vst.msk [vmem:[%s343 + $0xc0] sm:$0xff] %vm3295, %v3248
        %3321 = vst.msk [vmem:[%s343 + $0xc8] sm:$0xff] %vm3295, %v3250
        %3322 = vst.msk [vmem:[%s343 + $0xd0] sm:$0xff] %vm3295, %v3252
        %3323 = vst.msk [vmem:[%s343 + $0xd8] sm:$0xff] %vm3295, %v3254
        %3324 = vst.msk [vmem:[%s343 + $0xe0] sm:$0xff] %vm3295, %v3256
        %3325 = vst.msk [vmem:[%s343 + $0xe8] sm:$0xff] %vm3295, %v3258
        %3326 = vst.msk [vmem:[%s343 + $0xf0] sm:$0xff] %vm3295, %v3260
        %3327 = vst.msk [vmem:[%s343 + $0xf8] sm:$0xff] %vm3295, %v3262
        %3360 = vrot.lane.b32.xlu0 %v1405, 32
        %v3361 = vpop.permute.xlu0 %3360
        %3362 = vrot.lane.b32.xlu0 %v1407, 32
        %v3363 = vpop.permute.xlu0 %3362
        %3364 = vrot.lane.b32.xlu0 %v1409, 32
        %v3365 = vpop.permute.xlu0 %3364
        %3366 = vrot.lane.b32.xlu0 %v1411, 32
        %v3367 = vpop.permute.xlu0 %3366
        %3368 = vrot.lane.b32.xlu0 %v1413, 32
        %v3369 = vpop.permute.xlu0 %3368
        %3370 = vrot.lane.b32.xlu0 %v1415, 32
        %v3371 = vpop.permute.xlu0 %3370
        %3372 = vrot.lane.b32.xlu0 %v1417, 32
        %v3373 = vpop.permute.xlu0 %3372
        %3374 = vrot.lane.b32.xlu0 %v1419, 32
        %v3375 = vpop.permute.xlu0 %3374
        %3376 = vrot.lane.b32.xlu0 %v1421, 32
        %v3377 = vpop.permute.xlu0 %3376
        %3378 = vrot.lane.b32.xlu0 %v1423, 32
        %v3379 = vpop.permute.xlu0 %3378
        %3380 = vrot.lane.b32.xlu0 %v1425, 32
        %v3381 = vpop.permute.xlu0 %3380
        %3382 = vrot.lane.b32.xlu0 %v1427, 32
        %v3383 = vpop.permute.xlu0 %3382
        %3384 = vrot.lane.b32.xlu0 %v1429, 32
        %v3385 = vpop.permute.xlu0 %3384
        %3386 = vrot.lane.b32.xlu0 %v1431, 32
        %v3387 = vpop.permute.xlu0 %3386
        %3388 = vrot.lane.b32.xlu0 %v1433, 32
        %v3389 = vpop.permute.xlu0 %3388
        %3390 = vrot.lane.b32.xlu0 %v1435, 32
        %v3391 = vpop.permute.xlu0 %3390
        %3392 = vrot.lane.b32.xlu0 %v1437, 32
        %v3393 = vpop.permute.xlu0 %3392
        %3394 = vrot.lane.b32.xlu0 %v1439, 32
        %v3395 = vpop.permute.xlu0 %3394
        %3396 = vrot.lane.b32.xlu0 %v1441, 32
        %v3397 = vpop.permute.xlu0 %3396
        %3398 = vrot.lane.b32.xlu0 %v1443, 32
        %v3399 = vpop.permute.xlu0 %3398
        %3400 = vrot.lane.b32.xlu0 %v1445, 32
        %v3401 = vpop.permute.xlu0 %3400
        %3402 = vrot.lane.b32.xlu0 %v1447, 32
        %v3403 = vpop.permute.xlu0 %3402
        %3404 = vrot.lane.b32.xlu0 %v1449, 32
        %v3405 = vpop.permute.xlu0 %3404
        %3406 = vrot.lane.b32.xlu0 %v1451, 32
        %v3407 = vpop.permute.xlu0 %3406
        %3408 = vrot.lane.b32.xlu0 %v1453, 32
        %v3409 = vpop.permute.xlu0 %3408
        %3410 = vrot.lane.b32.xlu0 %v1455, 32
        %v3411 = vpop.permute.xlu0 %3410
        %3412 = vrot.lane.b32.xlu0 %v1457, 32
        %v3413 = vpop.permute.xlu0 %3412
        %3414 = vrot.lane.b32.xlu0 %v1459, 32
        %v3415 = vpop.permute.xlu0 %3414
        %3416 = vrot.lane.b32.xlu0 %v1461, 32
        %v3417 = vpop.permute.xlu0 %3416
        %3418 = vrot.lane.b32.xlu0 %v1463, 32
        %v3419 = vpop.permute.xlu0 %3418
        %3420 = vrot.lane.b32.xlu0 %v1465, 32
        %v3421 = vpop.permute.xlu0 %3420
        %3422 = vrot.lane.b32.xlu0 %v1467, 32
        %v3423 = vpop.permute.xlu0 %3422
        %vm3456 = vcmask 785920
        %3457 = vst.msk [vmem:[%s343] sm:$0xff] %vm3456, %v3361
        %3458 = vst.msk [vmem:[%s343 + $0x8] sm:$0xff] %vm3456, %v3363
        %3459 = vst.msk [vmem:[%s343 + $0x10] sm:$0xff] %vm3456, %v3365
        %3460 = vst.msk [vmem:[%s343 + $0x18] sm:$0xff] %vm3456, %v3367
        %3461 = vst.msk [vmem:[%s343 + $0x20] sm:$0xff] %vm3456, %v3369
        %3462 = vst.msk [vmem:[%s343 + $0x28] sm:$0xff] %vm3456, %v3371
        %3463 = vst.msk [vmem:[%s343 + $0x30] sm:$0xff] %vm3456, %v3373
        %3464 = vst.msk [vmem:[%s343 + $0x38] sm:$0xff] %vm3456, %v3375
        %3465 = vst.msk [vmem:[%s343 + $0x40] sm:$0xff] %vm3456, %v3377
        %3466 = vst.msk [vmem:[%s343 + $0x48] sm:$0xff] %vm3456, %v3379
        %3467 = vst.msk [vmem:[%s343 + $0x50] sm:$0xff] %vm3456, %v3381
        %3468 = vst.msk [vmem:[%s343 + $0x58] sm:$0xff] %vm3456, %v3383
        %3469 = vst.msk [vmem:[%s343 + $0x60] sm:$0xff] %vm3456, %v3385
        %3470 = vst.msk [vmem:[%s343 + $0x68] sm:$0xff] %vm3456, %v3387
        %3471 = vst.msk [vmem:[%s343 + $0x70] sm:$0xff] %vm3456, %v3389
        %3472 = vst.msk [vmem:[%s343 + $0x78] sm:$0xff] %vm3456, %v3391
        %3473 = vst.msk [vmem:[%s343 + $0x80] sm:$0xff] %vm3456, %v3393
        %3474 = vst.msk [vmem:[%s343 + $0x88] sm:$0xff] %vm3456, %v3395
        %3475 = vst.msk [vmem:[%s343 + $0x90] sm:$0xff] %vm3456, %v3397
        %3476 = vst.msk [vmem:[%s343 + $0x98] sm:$0xff] %vm3456, %v3399
        %3477 = vst.msk [vmem:[%s343 + $0xa0] sm:$0xff] %vm3456, %v3401
        %3478 = vst.msk [vmem:[%s343 + $0xa8] sm:$0xff] %vm3456, %v3403
        %3479 = vst.msk [vmem:[%s343 + $0xb0] sm:$0xff] %vm3456, %v3405
        %3480 = vst.msk [vmem:[%s343 + $0xb8] sm:$0xff] %vm3456, %v3407
        %3481 = vst.msk [vmem:[%s343 + $0xc0] sm:$0xff] %vm3456, %v3409
        %3482 = vst.msk [vmem:[%s343 + $0xc8] sm:$0xff] %vm3456, %v3411
        %3483 = vst.msk [vmem:[%s343 + $0xd0] sm:$0xff] %vm3456, %v3413
        %3484 = vst.msk [vmem:[%s343 + $0xd8] sm:$0xff] %vm3456, %v3415
        %3485 = vst.msk [vmem:[%s343 + $0xe0] sm:$0xff] %vm3456, %v3417
        %3486 = vst.msk [vmem:[%s343 + $0xe8] sm:$0xff] %vm3456, %v3419
        %3487 = vst.msk [vmem:[%s343 + $0xf0] sm:$0xff] %vm3456, %v3421
        %3488 = vst.msk [vmem:[%s343 + $0xf8] sm:$0xff] %vm3456, %v3423
        %vm3489 = vcmask 1048320
        %3490 = vst.msk [vmem:[%s343] sm:$0xff] %vm3489, 0.0
        %3491 = vst.msk [vmem:[%s343 + $0x8] sm:$0xff] %vm3489, 0.0
        %3492 = vst.msk [vmem:[%s343 + $0x10] sm:$0xff] %vm3489, 0.0
        %3493 = vst.msk [vmem:[%s343 + $0x18] sm:$0xff] %vm3489, 0.0
        %3494 = vst.msk [vmem:[%s343 + $0x20] sm:$0xff] %vm3489, 0.0
        %3495 = vst.msk [vmem:[%s343 + $0x28] sm:$0xff] %vm3489, 0.0
        %3496 = vst.msk [vmem:[%s343 + $0x30] sm:$0xff] %vm3489, 0.0
        %3497 = vst.msk [vmem:[%s343 + $0x38] sm:$0xff] %vm3489, 0.0
        %3498 = vst.msk [vmem:[%s343 + $0x40] sm:$0xff] %vm3489, 0.0
        %3499 = vst.msk [vmem:[%s343 + $0x48] sm:$0xff] %vm3489, 0.0
        %3500 = vst.msk [vmem:[%s343 + $0x50] sm:$0xff] %vm3489, 0.0
        %3501 = vst.msk [vmem:[%s343 + $0x58] sm:$0xff] %vm3489, 0.0
        %3502 = vst.msk [vmem:[%s343 + $0x60] sm:$0xff] %vm3489, 0.0
        %3503 = vst.msk [vmem:[%s343 + $0x68] sm:$0xff] %vm3489, 0.0
        %3504 = vst.msk [vmem:[%s343 + $0x70] sm:$0xff] %vm3489, 0.0
        %3505 = vst.msk [vmem:[%s343 + $0x78] sm:$0xff] %vm3489, 0.0
        %3506 = vst.msk [vmem:[%s343 + $0x80] sm:$0xff] %vm3489, 0.0
        %3507 = vst.msk [vmem:[%s343 + $0x88] sm:$0xff] %vm3489, 0.0
        %3508 = vst.msk [vmem:[%s343 + $0x90] sm:$0xff] %vm3489, 0.0
        %3509 = vst.msk [vmem:[%s343 + $0x98] sm:$0xff] %vm3489, 0.0
        %3510 = vst.msk [vmem:[%s343 + $0xa0] sm:$0xff] %vm3489, 0.0
        %3511 = vst.msk [vmem:[%s343 + $0xa8] sm:$0xff] %vm3489, 0.0
        %3512 = vst.msk [vmem:[%s343 + $0xb0] sm:$0xff] %vm3489, 0.0
        %3513 = vst.msk [vmem:[%s343 + $0xb8] sm:$0xff] %vm3489, 0.0
        %3514 = vst.msk [vmem:[%s343 + $0xc0] sm:$0xff] %vm3489, 0.0
        %3515 = vst.msk [vmem:[%s343 + $0xc8] sm:$0xff] %vm3489, 0.0
        %3516 = vst.msk [vmem:[%s343 + $0xd0] sm:$0xff] %vm3489, 0.0
        %3517 = vst.msk [vmem:[%s343 + $0xd8] sm:$0xff] %vm3489, 0.0
        %3518 = vst.msk [vmem:[%s343 + $0xe0] sm:$0xff] %vm3489, 0.0
        %3519 = vst.msk [vmem:[%s343 + $0xe8] sm:$0xff] %vm3489, 0.0
        %3520 = vst.msk [vmem:[%s343 + $0xf0] sm:$0xff] %vm3489, 0.0
        %3521 = vst.msk [vmem:[%s343 + $0xf8] sm:$0xff] %vm3489, 0.0
        %s3522 = sand.u32 %s192, 1
        %s3523 = scalar_lea.sflag [#allocation4], %s3522
        %s3524 = sand.u32 %s192, 1
        %s3525 = smul.addr %s3524, 256
        %s3526 = scalar_lea.vmem [#allocation5], %s3525
        %s3527 = sand.u32 %s218, 1
        %s3528 = scalar_lea.sflag [#allocation7], %s3527
        %s3529 = sand.u32 %s218, 1
        %s3530 = smul.addr %s3529, 256
        %s3531 = scalar_lea.vmem [#allocation6], %s3530
        // Predicated region
        $region53: #{tpu_custom_call.1} parent=47 // pred_check
          %p3532 = pneg %p202
        $region54: #{tpu_custom_call.1} parent=47 // pred_check_branch
          %3534 = sbr.rel (%p3532) target = $region56
        $region55: #{tpu_custom_call.1} parent=47 // pred_region
          %s3535 = smul.u32 32, %s27
          %s3537 = ssub.s32 4096, 4096
          %3538 = vsyncadd %s3523, %s3537
          %s3539 = smul.addr %s3535, 2
          %s3540 = smul.addr %s3539, 64
          %s3541 = scalar_lea.hbm %s7, %s3540
          %s3542 = sshll.u32 %s3526, 4
          %s3543 = int_to_ptr.vmem [resolvable:$true] %s3542
          %3548 = dma.vmem_to_hbm [thread:$0]  %s3543, 4096, %s3541, %s3523, 128, 128, 8
        $region56: #{tpu_custom_call.1} parent=47 // pred_fallthru
          _
        // Predicated region
        $region57: #{tpu_custom_call.1} parent=47 // pred_check
          %p3549 = pneg %p228
        $region58: #{tpu_custom_call.1} parent=47 // pred_check_branch
          %3551 = sbr.rel (%p3549) target = $region60
        $region59: #{tpu_custom_call.1} parent=47 // pred_region
          %s3552 = smul.u32 32, %s27
          %s3554 = ssub.s32 4096, 4096
          %3555 = vsyncadd %s3528, %s3554
          %s3556 = smul.addr %s3552, 128
          %s3557 = scalar_lea.hbm %s8, %s3556
          %s3558 = sshll.u32 %s3531, 4
          %s3559 = int_to_ptr.vmem [resolvable:$true] %s3558
          %3564 = dma.vmem_to_hbm [thread:$0]  %s3559, 4096, %s3557, %s3528, 128, 128, 8
        $region60: #{tpu_custom_call.1} parent=47 // pred_fallthru
          _
      $region48: #{tpu_custom_call.1} parent=5 // pred_fallthru
        _
      %p3565 = scmp.le.s32.totalorder 2, %s22
      // Predicated region
      $region61: #{tpu_custom_call.1} parent=5 // pred_check
        %p3566 = pneg %p3565
      $region62: #{tpu_custom_call.1} parent=5 // pred_check_branch
        %3568 = sbr.rel (%p3566) target = $region64
      $region63: #{tpu_custom_call.1} parent=5 // pred_region
        %s3569 = ssub.s32 %s22, 2
        // Predicated region
        $region65: #{tpu_custom_call.1} parent=63 // pred_check
          %p3570 = pneg %p208
        $region66: #{tpu_custom_call.1} parent=63 // pred_check_branch
          %3572 = sbr.rel (%p3570) target = $region68
        $region67: #{tpu_custom_call.1} parent=63 // pred_region
          %s3573 = sand.u32 %s193, 1
          %s3574 = scalar_lea.sflag [#allocation4], %s3573
          %s3575 = sand.u32 %s193, 1
          %s3576 = smul.addr %s3575, 256
          %s3577 = scalar_lea.vmem [#allocation5], %s3576
          %3578 = dma.done %s3574, 4096
        $region68: #{tpu_custom_call.1} parent=63 // pred_fallthru
          _
        // Predicated region
        $region69: #{tpu_custom_call.1} parent=63 // pred_check
          %p3579 = pneg %p234
        $region70: #{tpu_custom_call.1} parent=63 // pred_check_branch
          %3581 = sbr.rel (%p3579) target = $region72
        $region71: #{tpu_custom_call.1} parent=63 // pred_region
          %s3582 = sand.u32 %s219, 1
          %s3583 = scalar_lea.sflag [#allocation7], %s3582
          %s3584 = sand.u32 %s219, 1
          %s3585 = smul.addr %s3584, 256
          %s3586 = scalar_lea.vmem [#allocation6], %s3585
          %3587 = dma.done %s3583, 4096
        $region72: #{tpu_custom_call.1} parent=63 // pred_fallthru
          _
      $region64: #{tpu_custom_call.1} parent=5 // pred_fallthru
        _
    $region6: #{tpu_custom_call.1} parent=1 // loop_footer
      %s26 = sadd.s32 1, %s22
    $region7: #{tpu_custom_call.1} parent=1 // loop_footer_branch
      %21 = sbr.rel target = $region3
    $region8: #{tpu_custom_call.1} parent=1 // loop_exit
      _
    %3588 = vsyncpa [#allocation3], 1
    %s3589 = scalar_lea.sflag [#allocation3], 1
    %3590 = vsyncpa %s3589, 1
    %3591 = vsyncpa [#allocation4], 1
    %s3592 = scalar_lea.sflag [#allocation4], 1
    %3593 = vsyncpa %s3592, 1
    %3594 = vsyncpa [#allocation7], 1
    %s3595 = scalar_lea.sflag [#allocation7], 1
    %3596 = vsyncpa %s3595, 1

</llo_original>
